<compile_context>
chip_gen: v7x
topology: tpu7x:2x2x1
jax: 0.10.0
libtpu: 0.0.40
codegen_flags: <defaults>
</compile_context>

<pallas_src>
import functools

import jax
import jax.numpy as jnp
from jax import lax
from jax.experimental import pallas as pl
from jax.experimental.pallas import tpu as pltpu


def _make_row_toeplitz(w_hwio, width):
    """w_hwio: (3, 3, I, O) HWIO -> T: (3, width*I, width*O).

    T[dy, xi*I + ci, xo*O + co] = w[dy, xi - xo + 1, ci, co]
    when 0 <= xi - xo + 1 <= 2, else 0  (encodes padding=1 along W).
    """
    _, _, cin, cout = w_hwio.shape
    xi = jnp.arange(width)[:, None]
    xo = jnp.arange(width)[None, :]
    dx = xi - xo + 1                                        # (W, W)
    valid = (dx >= 0) & (dx <= 2)
    taps = w_hwio[:, jnp.clip(dx, 0, 2), :, :]              # (3, W, W, I, O)
    taps = jnp.where(valid[None, :, :, None, None], taps, 0.0)
    taps = jnp.transpose(taps, (0, 1, 3, 2, 4))             # (3, xi, I, xo, O)
    return taps.reshape(3, width * cin, width * cout)


def _downconv_kernel(x_ref, t1_ref, b1_ref, t2_ref, b2_ref,
                     skip_ref, pool_ref, h1pad_ref, *, H, W, Cout, pool_pack):
    # Per grid step (one image):
    #   x_ref:    (1, H+2, W*Cin)   vertically pre-padded, lane-dense rows
    #   t1_ref:   (3, W*Cin,  W*Cout)   b1_ref: (1, W*Cout)
    #   t2_ref:   (3, W*Cout, W*Cout)   b2_ref: (1, W*Cout)
    #   skip_ref: (1, H, W*Cout)
    #   pool_ref: (1, H//(2*pack), pack*(W//2)*Cout)   (lane-dense packing)
    #   h1pad_ref: VMEM (H+2, W*Cout) scratch (conv2 input with 1-row halo)
    f32 = jnp.float32
    hi = lax.Precision.HIGHEST
    WCo = W * Cout

    # One-time halo init: scratch persists across grid iterations; the
    # interior rows are fully rewritten every step, so only rows 0 and H+1
    # ever need zeroing.
    @pl.when(pl.program_id(0) == 0)
    def _init_halo():
        zrow = jnp.zeros((1, WCo), f32)
        h1pad_ref[0:1, :] = zrow
        h1pad_ref[H + 1:H + 2, :] = zrow

    # ---------- conv1: 3 fat matmuls (one per vertical tap) + bias + ReLU ----
    acc = jnp.dot(x_ref[0, 0:H, :], t1_ref[0],
                  preferred_element_type=f32, precision=hi)
    acc = acc + jnp.dot(x_ref[0, 1:H + 1, :], t1_ref[1],
                        preferred_element_type=f32, precision=hi)
    acc = acc + jnp.dot(x_ref[0, 2:H + 2, :], t1_ref[2],
                        preferred_element_type=f32, precision=hi)
    h1 = jnp.maximum(acc + b1_ref[...], 0.0)                # (H, W*Cout)
    h1pad_ref[1:H + 1, :] = h1

    # ---------- conv2: same pattern on vertically shifted row strips --------
    acc2 = jnp.dot(h1pad_ref[0:H, :], t2_ref[0],
                   preferred_element_type=f32, precision=hi)
    acc2 = acc2 + jnp.dot(h1pad_ref[1:H + 1, :], t2_ref[1],
                          preferred_element_type=f32, precision=hi)
    acc2 = acc2 + jnp.dot(h1pad_ref[2:H + 2, :], t2_ref[2],
                          preferred_element_type=f32, precision=hi)
    skip = jnp.maximum(acc2 + b2_ref[...], 0.0)             # (H, W*Cout)
    skip_ref[0] = skip.astype(skip_ref.dtype)               # lane-dense store

    # ---------- maxpool 2x2 stride 2, from the in-register value ------------
    if pool_pack == 2:
        # Pack two pool rows per stored row -> lane-dense (>=128 lanes) store.
        s4 = skip.reshape(H // 4, 4, W // 2, 2 * Cout)
        vtop = jnp.maximum(s4[:, 0], s4[:, 1])              # pool rows 2g
        vbot = jnp.maximum(s4[:, 2], s4[:, 3])              # pool rows 2g+1
        ptop = jnp.maximum(vtop[:, :, :Cout], vtop[:, :, Cout:])
        pbot = jnp.maximum(vbot[:, :, :Cout], vbot[:, :, Cout:])
        packed = jnp.concatenate(
            [ptop.reshape(H // 4, (W // 2) * Cout),
             pbot.reshape(H // 4, (W // 2) * Cout)], axis=1)
        pool_ref[0] = packed.astype(pool_ref.dtype)
    else:
        s = skip.reshape(H // 2, 2, W // 2, 2 * Cout)
        v = jnp.maximum(s[:, 0], s[:, 1])                   # vertical pairs
        p = jnp.maximum(v[:, :, :Cout], v[:, :, Cout:])     # horizontal pairs
        pool_ref[0] = p.reshape(H // 2, (W // 2) * Cout).astype(pool_ref.dtype)


def down_conv(x_nchw, w1, b1, w2, b2):
    """x_nchw: (N, Cin, H, W); w*: (3, 3, I, O) HWIO; b*: (O,).
    Returns (skip, pooled) in NCHW, matching the PyTorch module.
    (NCHW<->NHWC transposes are interface plumbing only; a model carrying
    channels-last end-to-end could feed the lane-dense layout directly.)"""
    N, Cin, H, W = x_nchw.shape
    Cout = w1.shape[-1]
    assert H % 2 == 0 and W % 2 == 0

    # NHWC, rows flattened lane-dense, zero-pad one row top/bottom (so the
    # kernel needs no pad buffer / memset for conv1).
    x = jnp.transpose(x_nchw, (0, 2, 3, 1)).astype(jnp.float32)
    x = x.reshape(N, H, W * Cin)
    x = jnp.pad(x, ((0, 0), (1, 1), (0, 0)))

    t1 = _make_row_toeplitz(w1.astype(jnp.float32), W)      # (3, W*Cin, W*Cout)
    t2 = _make_row_toeplitz(w2.astype(jnp.float32), W)      # (3, W*Cout, W*Cout)
    b1t = jnp.tile(b1.astype(jnp.float32), W).reshape(1, W * Cout)
    b2t = jnp.tile(b2.astype(jnp.float32), W).reshape(1, W * Cout)

    # Pool output packing: if the natural pool row (W//2)*Cout is narrower
    # than 128 lanes and we have an even number of pool rows, pack two pool
    # rows per stored row for unmasked lane-dense stores.
    pool_rows = H // 2
    pool_lanes = (W // 2) * Cout
    pool_pack = 2 if (pool_lanes % 128 != 0 and pool_rows % 2 == 0) else 1
    pool_out_rows = pool_rows // pool_pack
    pool_out_lanes = pool_lanes * pool_pack

    kernel = functools.partial(_downconv_kernel, H=H, W=W, Cout=Cout,
                               pool_pack=pool_pack)

    grid_spec = pltpu.PrefetchScalarGridSpec(
        num_scalar_prefetch=0,
        grid=(N,),
        in_specs=[
            pl.BlockSpec((1, H + 2, W * Cin), lambda n: (n, 0, 0)),
            pl.BlockSpec((3, W * Cin, W * Cout), lambda n: (0, 0, 0)),
            pl.BlockSpec((1, W * Cout), lambda n: (0, 0)),
            pl.BlockSpec((3, W * Cout, W * Cout), lambda n: (0, 0, 0)),
            pl.BlockSpec((1, W * Cout), lambda n: (0, 0)),
        ],
        out_specs=[
            pl.BlockSpec((1, H, W * Cout), lambda n: (n, 0, 0)),
            pl.BlockSpec((1, pool_out_rows, pool_out_lanes),
                         lambda n: (n, 0, 0)),
        ],
        scratch_shapes=[
            pltpu.VMEM((H + 2, W * Cout), jnp.float32),
        ],
    )

    # Explicit VMEM budget (v5e scoped default is small): double-buffered
    # image blocks + resident weights/biases + scratch, with 2x margin.
    fp = 4
    vmem_bytes = fp * (
        2 * ((H + 2) * W * Cin + H * W * Cout + pool_out_rows * pool_out_lanes)
        + 3 * W * Cin * W * Cout + 3 * W * Cout * W * Cout
        + 2 * W * Cout + (H + 2) * W * Cout)
    vmem_limit = int(min(120 * 1024 * 1024,
                         max(2 * vmem_bytes, 16 * 1024 * 1024)))

    skip_ld, pool_ld = pl.pallas_call(
        kernel,
        out_shape=(
            jax.ShapeDtypeStruct((N, H, W * Cout), jnp.float32),
            jax.ShapeDtypeStruct((N, pool_out_rows, pool_out_lanes),
                                 jnp.float32),
        ),
        grid_spec=grid_spec,
        compiler_params=pltpu.CompilerParams(
            dimension_semantics=("parallel",),
            vmem_limit_bytes=vmem_limit),
    )(x, t1, b1t, t2, b2t)

    # lane-dense -> NCHW (interface parity with the PyTorch module).
    # The packed pool layout is row-major compatible with (H//2, W//2, Cout).
    skip = skip_ld.reshape(N, H, W, Cout).transpose(0, 3, 1, 2)
    pooled = pool_ld.reshape(N, H // 2, W // 2, Cout).transpose(0, 3, 1, 2)
    return skip, pooled


def _reference_down_conv(x_nchw, w1, b1, w2, b2):
    """Pure-JAX reference (same semantics as the PyTorch module)."""
    x = jnp.transpose(x_nchw, (0, 2, 3, 1)).astype(jnp.float32)
    dn1 = lax.conv_dimension_numbers(x.shape, w1.shape,
                                     ('NHWC', 'HWIO', 'NHWC'))
    h = lax.conv_general_dilated(x, w1, (1, 1), ((1, 1), (1, 1)),
                                 dimension_numbers=dn1,
                                 precision=lax.Precision.HIGHEST) + b1
    h = jnp.maximum(h, 0.0)
    dn2 = lax.conv_dimension_numbers(h.shape, w2.shape,
                                     ('NHWC', 'HWIO', 'NHWC'))
    s = lax.conv_general_dilated(h, w2, (1, 1), ((1, 1), (1, 1)),
                                 dimension_numbers=dn2,
                                 precision=lax.Precision.HIGHEST) + b2
    s = jnp.maximum(s, 0.0)
    N, H, W, C = s.shape
    p = s.reshape(N, H // 2, 2, W // 2, 2, C).max(axis=(2, 4))
    return (jnp.transpose(s, (0, 3, 1, 2)),
            jnp.transpose(p, (0, 3, 1, 2)))


if __name__ == "__main__":
    N, Cin, Cout, H, W = 2, 4, 8, 16, 16

    key = jax.random.PRNGKey(0)
    kx, kw1, kb1, kw2, kb2 = jax.random.split(key, 5)
    x = jax.random.normal(kx, (N, Cin, H, W), jnp.float32)
    # Deterministic synthetic parameters (HWIO), small scale.
    w1 = jax.random.normal(kw1, (3, 3, Cin, Cout), jnp.float32) * 0.2
    b1 = jax.random.normal(kb1, (Cout,), jnp.float32) * 0.1
    w2 = jax.random.normal(kw2, (3, 3, Cout, Cout), jnp.float32) * 0.2
    b2 = jax.random.normal(kb2, (Cout,), jnp.float32) * 0.1

    down_conv_jit = jax.jit(down_conv)
    skip, pooled = down_conv_jit(x, w1, b1, w2, b2)
    jax.block_until_ready((skip, pooled))

    skip_ref, pooled_ref = _reference_down_conv(x, w1, b1, w2, b2)
    assert skip.shape == (N, Cout, H, W)
    assert pooled.shape == (N, Cout, H // 2, W // 2)
    assert jnp.allclose(skip, skip_ref, atol=1e-3, rtol=1e-3), \
        float(jnp.max(jnp.abs(skip - skip_ref)))
    assert jnp.allclose(pooled, pooled_ref, atol=1e-3, rtol=1e-3), \
        float(jnp.max(jnp.abs(pooled - pooled_ref)))

    print("KERNEL_OK")
</pallas_src>

<mosaic_0001>
module attributes {stable_mosaic.version = 11 : i64} {
  func.func @_downconv_kernel(%arg0: i32, %arg1: memref<1x18x64xf32, #tpu.memory_space<vmem>>, %arg2: memref<3x64x128xf32, #tpu.memory_space<vmem>>, %arg3: memref<1x128xf32, #tpu.memory_space<vmem>>, %arg4: memref<3x128x128xf32, #tpu.memory_space<vmem>>, %arg5: memref<1x128xf32, #tpu.memory_space<vmem>>, %arg6: memref<1x16x128xf32, #tpu.memory_space<vmem>>, %arg7: memref<1x4x128xf32, #tpu.memory_space<vmem>>, %arg8: memref<18x128xf32, #tpu.memory_space<vmem>>) attributes {dimension_semantics = [#tpu.dimension_semantics<parallel>], iteration_bounds = array<i64: 2>, scalar_prefetch = 0 : i64, scratch_operands = 1 : i64, tpu.core_type = #tpu.core_type<tc>, window_params = [{transform_indices = @transform_0, window_bounds = array<i64: 1, 18, 64>}, {pipeline_mode = #tpu.pipeline_mode<synchronous>, transform_indices = @transform_1, window_bounds = array<i64: 3, 64, 128>}, {pipeline_mode = #tpu.pipeline_mode<synchronous>, transform_indices = @transform_2, window_bounds = array<i64: 1, 128>}, {pipeline_mode = #tpu.pipeline_mode<synchronous>, transform_indices = @transform_3, window_bounds = array<i64: 3, 128, 128>}, {pipeline_mode = #tpu.pipeline_mode<synchronous>, transform_indices = @transform_4, window_bounds = array<i64: 1, 128>}, {transform_indices = @transform_5, window_bounds = array<i64: 1, 16, 128>}, {transform_indices = @transform_6, window_bounds = array<i64: 1, 4, 128>}]} {
    %c0_i32 = arith.constant 0 : i32
    %0 = arith.cmpi eq, %arg0, %c0_i32 : i32
    %1 = arith.extui %0 : i1 to i32
    %c0_i32_0 = arith.constant 0 : i32
    %2 = arith.cmpi ne, %1, %c0_i32_0 : i32
    scf.if %2 {
      %cst_50 = arith.constant 0.000000e+00 : f32
      %71 = vector.broadcast %cst_50 : f32 to vector<1x128xf32>
      %c0_51 = arith.constant 0 : index
      %c0_52 = arith.constant 0 : index
      %72 = vector.load %arg8[%c0_51, %c0_52] : memref<18x128xf32, #tpu.memory_space<vmem>>, vector<1x128xf32>
      tpu.vector_store %arg8[%c0_51, %c0_52], %71 {strides = array<i32>} : memref<18x128xf32, #tpu.memory_space<vmem>>, vector<1x128xf32>,
      %c17 = arith.constant 17 : index
      %c0_53 = arith.constant 0 : index
      %73 = vector.load %arg8[%c17, %c0_53] : memref<18x128xf32, #tpu.memory_space<vmem>>, vector<1x128xf32>
      tpu.vector_store %arg8[%c17, %c0_53], %71 {strides = array<i32>} : memref<18x128xf32, #tpu.memory_space<vmem>>, vector<1x128xf32>,
    } else {
    }
    %c0 = arith.constant 0 : index
    %c0_1 = arith.constant 0 : index
    %c0_2 = arith.constant 0 : index
    %3 = vector.load %arg1[%c0, %c0_1, %c0_2] : memref<1x18x64xf32, #tpu.memory_space<vmem>>, vector<1x16x64xf32>
    %4 = vector.shape_cast %3 : vector<1x16x64xf32> to vector<16x64xf32>
    %c0_3 = arith.constant 0 : index
    %c0_4 = arith.constant 0 : index
    %c0_5 = arith.constant 0 : index
    %5 = vector.load %arg2[%c0_3, %c0_4, %c0_5] : memref<3x64x128xf32, #tpu.memory_space<vmem>>, vector<1x64x128xf32>
    %6 = vector.shape_cast %5 : vector<1x64x128xf32> to vector<64x128xf32>
    %cst = arith.constant dense<0.000000e+00> : vector<16x128xf32>
    %7 = tpu.matmul %4, %6, %cst {dimension_numbers = #tpu.dot_dimension_numbers<[1], [0], [0], [1], [0, 0, 1, 1], [], []>, precision = #tpu.contract_precision<fp32>} : vector<16x64xf32>, vector<64x128xf32>, vector<16x128xf32> -> vector<16x128xf32>
    %c0_6 = arith.constant 0 : index
    %c1 = arith.constant 1 : index
    %c0_7 = arith.constant 0 : index
    %8 = vector.load %arg1[%c0_6, %c1, %c0_7] : memref<1x18x64xf32, #tpu.memory_space<vmem>>, vector<1x16x64xf32>
    %9 = vector.shape_cast %8 : vector<1x16x64xf32> to vector<16x64xf32>
    %c1_8 = arith.constant 1 : index
    %c0_9 = arith.constant 0 : index
    %c0_10 = arith.constant 0 : index
    %10 = vector.load %arg2[%c1_8, %c0_9, %c0_10] : memref<3x64x128xf32, #tpu.memory_space<vmem>>, vector<1x64x128xf32>
    %11 = vector.shape_cast %10 : vector<1x64x128xf32> to vector<64x128xf32>
    %cst_11 = arith.constant dense<0.000000e+00> : vector<16x128xf32>
    %12 = tpu.matmul %9, %11, %cst_11 {dimension_numbers = #tpu.dot_dimension_numbers<[1], [0], [0], [1], [0, 0, 1, 1], [], []>, precision = #tpu.contract_precision<fp32>} : vector<16x64xf32>, vector<64x128xf32>, vector<16x128xf32> -> vector<16x128xf32>
    %13 = arith.addf %7, %12 : vector<16x128xf32>
    %c0_12 = arith.constant 0 : index
    %c2 = arith.constant 2 : index
    %c0_13 = arith.constant 0 : index
    %14 = vector.load %arg1[%c0_12, %c2, %c0_13] : memref<1x18x64xf32, #tpu.memory_space<vmem>>, vector<1x16x64xf32>
    %15 = vector.shape_cast %14 : vector<1x16x64xf32> to vector<16x64xf32>
    %c2_14 = arith.constant 2 : index
    %c0_15 = arith.constant 0 : index
    %c0_16 = arith.constant 0 : index
    %16 = vector.load %arg2[%c2_14, %c0_15, %c0_16] : memref<3x64x128xf32, #tpu.memory_space<vmem>>, vector<1x64x128xf32>
    %17 = vector.shape_cast %16 : vector<1x64x128xf32> to vector<64x128xf32>
    %cst_17 = arith.constant dense<0.000000e+00> : vector<16x128xf32>
    %18 = tpu.matmul %15, %17, %cst_17 {dimension_numbers = #tpu.dot_dimension_numbers<[1], [0], [0], [1], [0, 0, 1, 1], [], []>, precision = #tpu.contract_precision<fp32>} : vector<16x64xf32>, vector<64x128xf32>, vector<16x128xf32> -> vector<16x128xf32>
    %19 = arith.addf %13, %18 : vector<16x128xf32>
    %c0_18 = arith.constant 0 : index
    %c0_19 = arith.constant 0 : index
    %20 = vector.load %arg3[%c0_18, %c0_19] : memref<1x128xf32, #tpu.memory_space<vmem>>, vector<1x128xf32>
    %21 = vector.broadcast %20 : vector<1x128xf32> to vector<16x128xf32>
    %22 = arith.addf %19, %21 : vector<16x128xf32>
    %cst_20 = arith.constant 0.000000e+00 : f32
    %23 = vector.broadcast %cst_20 : f32 to vector<16x128xf32>
    %24 = arith.maximumf %22, %23 : vector<16x128xf32>
    %c1_21 = arith.constant 1 : index
    %c0_22 = arith.constant 0 : index
    %25 = vector.load %arg8[%c1_21, %c0_22] : memref<18x128xf32, #tpu.memory_space<vmem>>, vector<16x128xf32>
    tpu.vector_store %arg8[%c1_21, %c0_22], %24 {strides = array<i32>} : memref<18x128xf32, #tpu.memory_space<vmem>>, vector<16x128xf32>,
    %c0_23 = arith.constant 0 : index
    %c0_24 = arith.constant 0 : index
    %26 = vector.load %arg8[%c0_23, %c0_24] : memref<18x128xf32, #tpu.memory_space<vmem>>, vector<16x128xf32>
    %c0_25 = arith.constant 0 : index
    %c0_26 = arith.constant 0 : index
    %c0_27 = arith.constant 0 : index
    %27 = vector.load %arg4[%c0_25, %c0_26, %c0_27] : memref<3x128x128xf32, #tpu.memory_space<vmem>>, vector<1x128x128xf32>
    %28 = vector.shape_cast %27 : vector<1x128x128xf32> to vector<128x128xf32>
    %cst_28 = arith.constant dense<0.000000e+00> : vector<16x128xf32>
    %29 = tpu.matmul %26, %28, %cst_28 {dimension_numbers = #tpu.dot_dimension_numbers<[1], [0], [0], [1], [0, 0, 1, 1], [], []>, precision = #tpu.contract_precision<fp32>} : vector<16x128xf32>, vector<128x128xf32>, vector<16x128xf32> -> vector<16x128xf32>
    %c1_29 = arith.constant 1 : index
    %c0_30 = arith.constant 0 : index
    %30 = vector.load %arg8[%c1_29, %c0_30] : memref<18x128xf32, #tpu.memory_space<vmem>>, vector<16x128xf32>
    %c1_31 = arith.constant 1 : index
    %c0_32 = arith.constant 0 : index
    %c0_33 = arith.constant 0 : index
    %31 = vector.load %arg4[%c1_31, %c0_32, %c0_33] : memref<3x128x128xf32, #tpu.memory_space<vmem>>, vector<1x128x128xf32>
    %32 = vector.shape_cast %31 : vector<1x128x128xf32> to vector<128x128xf32>
    %cst_34 = arith.constant dense<0.000000e+00> : vector<16x128xf32>
    %33 = tpu.matmul %30, %32, %cst_34 {dimension_numbers = #tpu.dot_dimension_numbers<[1], [0], [0], [1], [0, 0, 1, 1], [], []>, precision = #tpu.contract_precision<fp32>} : vector<16x128xf32>, vector<128x128xf32>, vector<16x128xf32> -> vector<16x128xf32>
    %34 = arith.addf %29, %33 : vector<16x128xf32>
    %c2_35 = arith.constant 2 : index
    %c0_36 = arith.constant 0 : index
    %35 = vector.load %arg8[%c2_35, %c0_36] : memref<18x128xf32, #tpu.memory_space<vmem>>, vector<16x128xf32>
    %c2_37 = arith.constant 2 : index
    %c0_38 = arith.constant 0 : index
    %c0_39 = arith.constant 0 : index
    %36 = vector.load %arg4[%c2_37, %c0_38, %c0_39] : memref<3x128x128xf32, #tpu.memory_space<vmem>>, vector<1x128x128xf32>
    %37 = vector.shape_cast %36 : vector<1x128x128xf32> to vector<128x128xf32>
    %cst_40 = arith.constant dense<0.000000e+00> : vector<16x128xf32>
    %38 = tpu.matmul %35, %37, %cst_40 {dimension_numbers = #tpu.dot_dimension_numbers<[1], [0], [0], [1], [0, 0, 1, 1], [], []>, precision = #tpu.contract_precision<fp32>} : vector<16x128xf32>, vector<128x128xf32>, vector<16x128xf32> -> vector<16x128xf32>
    %39 = arith.addf %34, %38 : vector<16x128xf32>
    %c0_41 = arith.constant 0 : index
    %c0_42 = arith.constant 0 : index
    %40 = vector.load %arg5[%c0_41, %c0_42] : memref<1x128xf32, #tpu.memory_space<vmem>>, vector<1x128xf32>
    %41 = vector.broadcast %40 : vector<1x128xf32> to vector<16x128xf32>
    %42 = arith.addf %39, %41 : vector<16x128xf32>
    %cst_43 = arith.constant 0.000000e+00 : f32
    %43 = vector.broadcast %cst_43 : f32 to vector<16x128xf32>
    %44 = arith.maximumf %42, %43 : vector<16x128xf32>
    %c0_44 = arith.constant 0 : index
    %c0_45 = arith.constant 0 : index
    %c0_46 = arith.constant 0 : index
    %45 = vector.load %arg6[%c0_44, %c0_45, %c0_46] : memref<1x16x128xf32, #tpu.memory_space<vmem>>, vector<1x16x128xf32>
    %46 = vector.shape_cast %45 : vector<1x16x128xf32> to vector<16x128xf32>
    %47 = vector.shape_cast %44 : vector<16x128xf32> to vector<1x16x128xf32>
    tpu.vector_store %arg6[%c0_44, %c0_45, %c0_46], %47 {strides = array<i32>} : memref<1x16x128xf32, #tpu.memory_space<vmem>>, vector<1x16x128xf32>,
    %48 = vector.shape_cast %44 : vector<16x128xf32> to vector<4x4x8x16xf32>
    %49 = vector.extract_strided_slice %48 {offsets = [0, 0, 0, 0], sizes = [4, 1, 8, 16], strides = [1, 1, 1, 1]} : vector<4x4x8x16xf32> to vector<4x1x8x16xf32>
    %50 = vector.shape_cast %49 : vector<4x1x8x16xf32> to vector<4x8x16xf32>
    %51 = vector.extract_strided_slice %48 {offsets = [0, 1, 0, 0], sizes = [4, 1, 8, 16], strides = [1, 1, 1, 1]} : vector<4x4x8x16xf32> to vector<4x1x8x16xf32>
    %52 = vector.shape_cast %51 : vector<4x1x8x16xf32> to vector<4x8x16xf32>
    %53 = arith.maximumf %50, %52 : vector<4x8x16xf32>
    %54 = vector.extract_strided_slice %48 {offsets = [0, 2, 0, 0], sizes = [4, 1, 8, 16], strides = [1, 1, 1, 1]} : vector<4x4x8x16xf32> to vector<4x1x8x16xf32>
    %55 = vector.shape_cast %54 : vector<4x1x8x16xf32> to vector<4x8x16xf32>
    %56 = vector.extract_strided_slice %48 {offsets = [0, 3, 0, 0], sizes = [4, 1, 8, 16], strides = [1, 1, 1, 1]} : vector<4x4x8x16xf32> to vector<4x1x8x16xf32>
    %57 = vector.shape_cast %56 : vector<4x1x8x16xf32> to vector<4x8x16xf32>
    %58 = arith.maximumf %55, %57 : vector<4x8x16xf32>
    %59 = vector.extract_strided_slice %53 {offsets = [0, 0, 0], sizes = [4, 8, 8], strides = [1, 1, 1]} : vector<4x8x16xf32> to vector<4x8x8xf32>
    %60 = vector.extract_strided_slice %53 {offsets = [0, 0, 8], sizes = [4, 8, 8], strides = [1, 1, 1]} : vector<4x8x16xf32> to vector<4x8x8xf32>
    %61 = arith.maximumf %59, %60 : vector<4x8x8xf32>
    %62 = vector.extract_strided_slice %58 {offsets = [0, 0, 0], sizes = [4, 8, 8], strides = [1, 1, 1]} : vector<4x8x16xf32> to vector<4x8x8xf32>
    %63 = vector.extract_strided_slice %58 {offsets = [0, 0, 8], sizes = [4, 8, 8], strides = [1, 1, 1]} : vector<4x8x16xf32> to vector<4x8x8xf32>
    %64 = arith.maximumf %62, %63 : vector<4x8x8xf32>
    %65 = vector.shape_cast %61 : vector<4x8x8xf32> to vector<4x64xf32>
    %66 = vector.shape_cast %64 : vector<4x8x8xf32> to vector<4x64xf32>
    %67 = tpu.concatenate %65, %66 in 1 : vector<4x64xf32>, vector<4x64xf32> -> vector<4x128xf32>
    %c0_47 = arith.constant 0 : index
    %c0_48 = arith.constant 0 : index
    %c0_49 = arith.constant 0 : index
    %68 = vector.load %arg7[%c0_47, %c0_48, %c0_49] : memref<1x4x128xf32, #tpu.memory_space<vmem>>, vector<1x4x128xf32>
    %69 = vector.shape_cast %68 : vector<1x4x128xf32> to vector<4x128xf32>
    %70 = vector.shape_cast %67 : vector<4x128xf32> to vector<1x4x128xf32>
    tpu.vector_store %arg7[%c0_47, %c0_48, %c0_49], %70 {strides = array<i32>} : memref<1x4x128xf32, #tpu.memory_space<vmem>>, vector<1x4x128xf32>,
    return
  }
  func.func @transform_0(%arg0: i32) -> (i32, i32, i32) {
    %c0_i32 = arith.constant 0 : i32
    %c0_i32_0 = arith.constant 0 : i32
    %c0_i32_1 = arith.constant 0 : i32
    return %arg0, %c0_i32, %c0_i32_0 : i32, i32, i32
  }
  func.func @transform_1(%arg0: i32) -> (i32, i32, i32) {
    %c0_i32 = arith.constant 0 : i32
    %c0_i32_0 = arith.constant 0 : i32
    %c0_i32_1 = arith.constant 0 : i32
    %c0_i32_2 = arith.constant 0 : i32
    return %c0_i32, %c0_i32_0, %c0_i32_1 : i32, i32, i32
  }
  func.func @transform_2(%arg0: i32) -> (i32, i32) {
    %c0_i32 = arith.constant 0 : i32
    %c0_i32_0 = arith.constant 0 : i32
    %c0_i32_1 = arith.constant 0 : i32
    return %c0_i32, %c0_i32_0 : i32, i32
  }
  func.func @transform_3(%arg0: i32) -> (i32, i32, i32) {
    %c0_i32 = arith.constant 0 : i32
    %c0_i32_0 = arith.constant 0 : i32
    %c0_i32_1 = arith.constant 0 : i32
    %c0_i32_2 = arith.constant 0 : i32
    return %c0_i32, %c0_i32_0, %c0_i32_1 : i32, i32, i32
  }
  func.func @transform_4(%arg0: i32) -> (i32, i32) {
    %c0_i32 = arith.constant 0 : i32
    %c0_i32_0 = arith.constant 0 : i32
    %c0_i32_1 = arith.constant 0 : i32
    return %c0_i32, %c0_i32_0 : i32, i32
  }
  func.func @transform_5(%arg0: i32) -> (i32, i32, i32) {
    %c0_i32 = arith.constant 0 : i32
    %c0_i32_0 = arith.constant 0 : i32
    %c0_i32_1 = arith.constant 0 : i32
    return %arg0, %c0_i32, %c0_i32_0 : i32, i32, i32
  }
  func.func @transform_6(%arg0: i32) -> (i32, i32, i32) {
    %c0_i32 = arith.constant 0 : i32
    %c0_i32_0 = arith.constant 0 : i32
    %c0_i32_1 = arith.constant 0 : i32
    return %arg0, %c0_i32, %c0_i32_0 : i32, i32, i32
  }
}

</mosaic_0001>

<llo_original>
// kernel: tile.13
$region0: #{tile.13}
  #allocation0 [shape = 's32[1]{0}', space=sflag, size = 0x4, scoped, tag = 'scoped memory for tile.13']
  %s0 = inlined_call_operand.vmem [shape: f32[8], index: 0, kind: input, shape index: {}]
  %s1 = inlined_call_operand.vmem [shape: f32[16,8], index: 1, kind: output, shape index: {}]
  // Predicated region
  $region2: #{tile.13} parent=0 // pred_check
    _
  $region3: #{tile.13} parent=0 // pred_check_branch
    %3 = sbr.rel (0) target = $region5
  $region4: #{tile.13} parent=0 // pred_region
    _
  $region5: #{tile.13} parent=0 // pred_fallthru
    _
  %v4 = vld [vmem:[%s0] ss:$0 sm:$0xff]
  %5 = vst [vmem:[%s1] sm:$0xff] %v4
  %s6 = scalar_lea.vmem %s1, 8
  %7 = vst [vmem:[%s6] sm:$0xff] %v4

// kernel: tile.14
$region0: #{tile.14}
  %s0 = inlined_call_operand.vmem [shape: f32[16,8], index: 0, kind: input, shape index: {}]
  %s1 = inlined_call_operand.vmem [shape: f32[1,128], index: 1, kind: output, shape index: {}]
  $region1: #{tile.14} parent=0
    #allocation0 [shape = 'u8[4096]{0}', space=vmem, size = 0x1000, scoped, tag = 'scoped mem for output reshape']
    %v2 = vld [vmem:[%s0] sm:$0x1]
    %vm3 = vcmask 64512
    %4 = vst.msk [vmem:[#allocation0] sm:$0x1] %vm3, %v2
    %s5 = scalar_lea.vmem %s0, 15
    %v6 = vld [vmem:[%s5] sm:$0x1]
    %7 = vrot.lane.b32.xlu0 %v6, 120
    %v8 = vpop.permute.xlu0 %7
    %vm9 = vcmask 1048512
    %10 = vst.msk [vmem:[#allocation0] sm:$0x1] %vm9, %v8
    %s11 = scalar_lea.vmem %s0, 14
    %v12 = vld [vmem:[%s11] sm:$0x1]
    %13 = vrot.lane.b32.xlu0 %v12, 112
    %v14 = vpop.permute.xlu0 %13
    %vm15 = vcmask 982912
    %16 = vst.msk [vmem:[#allocation0] sm:$0x1] %vm15, %v14
    %s17 = scalar_lea.vmem %s0, 13
    %v18 = vld [vmem:[%s17] sm:$0x1]
    %19 = vrot.lane.b32.xlu0 %v18, 104
    %v20 = vpop.permute.xlu0 %19
    %vm21 = vcmask 917312
    %22 = vst.msk [vmem:[#allocation0] sm:$0x1] %vm21, %v20
    %s23 = scalar_lea.vmem %s0, 12
    %v24 = vld [vmem:[%s23] sm:$0x1]
    %25 = vrot.lane.b32.xlu0 %v24, 96
    %v26 = vpop.permute.xlu0 %25
    %vm27 = vcmask 851712
    %28 = vst.msk [vmem:[#allocation0] sm:$0x1] %vm27, %v26
    %s29 = scalar_lea.vmem %s0, 11
    %v30 = vld [vmem:[%s29] sm:$0x1]
    %31 = vrot.lane.b32.xlu0 %v30, 88
    %v32 = vpop.permute.xlu0 %31
    %vm33 = vcmask 786112
    %34 = vst.msk [vmem:[#allocation0] sm:$0x1] %vm33, %v32
    %s35 = scalar_lea.vmem %s0, 10
    %v36 = vld [vmem:[%s35] sm:$0x1]
    %37 = vrot.lane.b32.xlu0 %v36, 80
    %v38 = vpop.permute.xlu0 %37
    %vm39 = vcmask 720512
    %40 = vst.msk [vmem:[#allocation0] sm:$0x1] %vm39, %v38
    %s41 = scalar_lea.vmem %s0, 9
    %v42 = vld [vmem:[%s41] sm:$0x1]
    %43 = vrot.lane.b32.xlu0 %v42, 72
    %v44 = vpop.permute.xlu0 %43
    %vm45 = vcmask 654912
    %46 = vst.msk [vmem:[#allocation0] sm:$0x1] %vm45, %v44
    %s47 = scalar_lea.vmem %s0, 8
    %v48 = vld [vmem:[%s47] sm:$0x1]
    %49 = vrot.lane.b32.xlu0 %v48, 64
    %v50 = vpop.permute.xlu0 %49
    %vm51 = vcmask 589312
    %52 = vst.msk [vmem:[#allocation0] sm:$0x1] %vm51, %v50
    %s53 = scalar_lea.vmem %s0, 7
    %v54 = vld [vmem:[%s53] sm:$0x1]
    %55 = vrot.lane.b32.xlu0 %v54, 56
    %v56 = vpop.permute.xlu0 %55
    %vm57 = vcmask 523712
    %58 = vst.msk [vmem:[#allocation0] sm:$0x1] %vm57, %v56
    %s59 = scalar_lea.vmem %s0, 6
    %v60 = vld [vmem:[%s59] sm:$0x1]
    %61 = vrot.lane.b32.xlu0 %v60, 48
    %v62 = vpop.permute.xlu0 %61
    %vm63 = vcmask 458112
    %64 = vst.msk [vmem:[#allocation0] sm:$0x1] %vm63, %v62
    %s65 = scalar_lea.vmem %s0, 5
    %v66 = vld [vmem:[%s65] sm:$0x1]
    %67 = vrot.lane.b32.xlu0 %v66, 40
    %v68 = vpop.permute.xlu0 %67
    %vm69 = vcmask 392512
    %70 = vst.msk [vmem:[#allocation0] sm:$0x1] %vm69, %v68
    %s71 = scalar_lea.vmem %s0, 4
    %v72 = vld [vmem:[%s71] sm:$0x1]
    %73 = vrot.lane.b32.xlu0 %v72, 32
    %v74 = vpop.permute.xlu0 %73
    %vm75 = vcmask 326912
    %76 = vst.msk [vmem:[#allocation0] sm:$0x1] %vm75, %v74
    %s77 = scalar_lea.vmem %s0, 3
    %v78 = vld [vmem:[%s77] sm:$0x1]
    %79 = vrot.lane.b32.xlu0 %v78, 24
    %v80 = vpop.permute.xlu0 %79
    %vm81 = vcmask 261312
    %82 = vst.msk [vmem:[#allocation0] sm:$0x1] %vm81, %v80
    %s83 = scalar_lea.vmem %s0, 2
    %v84 = vld [vmem:[%s83] sm:$0x1]
    %85 = vrot.lane.b32.xlu0 %v84, 16
    %v86 = vpop.permute.xlu0 %85
    %vm87 = vcmask 195712
    %88 = vst.msk [vmem:[#allocation0] sm:$0x1] %vm87, %v86
    %s89 = scalar_lea.vmem %s0, 1
    %v90 = vld [vmem:[%s89] sm:$0x1]
    %91 = vrot.lane.b32.xlu0 %v90, 8
    %v92 = vpop.permute.xlu0 %91
    %vm93 = vcmask 130112
    %94 = vst.msk [vmem:[#allocation0] sm:$0x1] %vm93, %v92
    %s96 = sshllo.u32 0, 1
    %v98 = vld [vmem:[#allocation0] sm:%s96]
    %s99 = sshllo.u32 0, 1
    %100 = vst [vmem:[%s1] sm:%s99] %v98

// kernel: down_conv.1
$region0: #{down_conv.1}
  #allocation0 [shape = 'u32[]', space=smem, size = 0x4, offset = 0x4, fixed_abs, tag = 'smem constant byte address 0x4 - core index']
  #allocation1 [shape = 'u32[144,128]{1,0:T(1,128)}', space=vmem, size = 0x12000, scoped, tag = 'internal scratch']
  #allocation2 [shape = 'f32[18,128]{1,0:T(8,128)}', space=vmem, size = 0x3000, scoped, tag = 'scratch operand']
  %s0 = inlined_call_operand.vmem [shape: f32[2,18,64], index: 0, kind: input, shape index: {}]
  %s1 = inlined_call_operand.vmem [shape: f32[3,64,128], index: 1, kind: input, shape index: {}]
  %s2 = inlined_call_operand.vmem [shape: f32[1,128], index: 2, kind: input, shape index: {}]
  %s3 = inlined_call_operand.vmem [shape: f32[3,128,128], index: 3, kind: input, shape index: {}]
  %s4 = inlined_call_operand.vmem [shape: f32[1,128], index: 4, kind: input, shape index: {}]
  %s5 = inlined_call_operand.vmem [shape: f32[2,16,128], index: 5, kind: output, shape index: {0}]
  %s6 = inlined_call_operand.vmem [shape: f32[2,4,128], index: 6, kind: output, shape index: {1}]
  %7 = xla_tuple %s5, %s6
  %s8 = sld [smem:[#allocation0]]
  $region65: #{down_conv.1} parent=0
    _
  %s10 = ssub.s32 1, %s8
  %s11 = scalar_select 0, %s10, %s8
  loop: start=0, step=1, limit=4
  $region2: #{down_conv.1} parent=0 // loop_pre_header
    _
  $region3: #{down_conv.1} parent=0 // loop_header
    %s13 = sphi 0, %s17
    %p14 = scmp.ge.s32.totalorder %s13, 4
    %s23 = sphi 0, %s25
    %s26 = sphi 0, %s23
    %s27 = sphi 0, %s26
    %s43 = sphi 0, %s27
    %s47 = sphi 0, %s47
    %s49 = sphi 0, %s47
    %s50 = sphi 0, %s49
    %s64 = sphi 0, %s50
    %s68 = sphi 0, %s68
    %s70 = sphi 0, %s68
    %s71 = sphi 0, %s70
    %s85 = sphi 0, %s71
    %s89 = sphi 0, %s89
    %s91 = sphi 0, %s89
    %s92 = sphi 0, %s91
    %s106 = sphi 0, %s92
    %s110 = sphi 0, %s110
    %s112 = sphi 0, %s110
    %s113 = sphi 0, %s112
    %s127 = sphi 0, %s113
    %s133 = sphi 0, %s135
    %s136 = sphi 0, %s133
    %s137 = sphi 0, %s136
    %s153 = sphi 0, %s137
    %s159 = sphi 0, %s161
    %s162 = sphi 0, %s159
    %s163 = sphi 0, %s162
    %s179 = sphi 0, %s163
  $region4: #{down_conv.1} parent=0 // loop_header_branch
    %16 = sbr.rel (%p14) target = $region8
  $region5: #{down_conv.1} parent=0 // loop_body
    %s18 = ssub.s32 %s13, 1
    %s19 = ssub.s32 %s13, 2
    %s20 = sadd.s32 %s13, 1
    %s21 = ssub.s32 %s13, %s20
    %p22 = scmp.eq.s32.totalorder %s21, 0
    %s24 = sadd.s32 %s23, 1
    %s25 = scalar_select %p22, %s23, %s24
    %p28 = pneg %p22
    %p29 = scmp.eq.s32.totalorder %s13, 1
    %p30 = por %p28, %p29
    %p31 = scmp.ne.s32.totalorder %s23, %s26
    %p32 = scmp.eq.s32.totalorder %s13, 0
    %p33 = por %p31, %p32
    %p34 = scmp.ne.s32.totalorder %s23, %s26
    %p35 = scmp.eq.s32.totalorder %s18, 1
    %p36 = por %p34, %p35
    %p37 = scmp.ne.s32.totalorder %s26, %s27
    %p38 = scmp.eq.s32.totalorder %s18, 0
    %p39 = por %p37, %p38
    %p40 = scmp.ne.s32.totalorder %s26, %s27
    %p41 = scmp.eq.s32.totalorder %s19, 1
    %p42 = por %p40, %p41
    %p44 = scmp.ne.s32.totalorder %s27, %s43
    %p45 = scmp.eq.s32.totalorder %s19, 0
    %p46 = por %p44, %p45
    %s48 = sadd.s32 %s47, 1
    %p51 = scmp.eq.s32.totalorder %s13, 1
    %p52 = scmp.ne.s32.totalorder %s47, %s49
    %p53 = scmp.eq.s32.totalorder %s13, 0
    %p54 = por %p52, %p53
    %p55 = scmp.ne.s32.totalorder %s47, %s49
    %p56 = scmp.eq.s32.totalorder %s18, 1
    %p57 = por %p55, %p56
    %p58 = scmp.ne.s32.totalorder %s49, %s50
    %p59 = scmp.eq.s32.totalorder %s18, 0
    %p60 = por %p58, %p59
    %p61 = scmp.ne.s32.totalorder %s49, %s50
    %p62 = scmp.eq.s32.totalorder %s19, 1
    %p63 = por %p61, %p62
    %p65 = scmp.ne.s32.totalorder %s50, %s64
    %p66 = scmp.eq.s32.totalorder %s19, 0
    %p67 = por %p65, %p66
    %s69 = sadd.s32 %s68, 1
    %p72 = scmp.eq.s32.totalorder %s13, 1
    %p73 = scmp.ne.s32.totalorder %s68, %s70
    %p74 = scmp.eq.s32.totalorder %s13, 0
    %p75 = por %p73, %p74
    %p76 = scmp.ne.s32.totalorder %s68, %s70
    %p77 = scmp.eq.s32.totalorder %s18, 1
    %p78 = por %p76, %p77
    %p79 = scmp.ne.s32.totalorder %s70, %s71
    %p80 = scmp.eq.s32.totalorder %s18, 0
    %p81 = por %p79, %p80
    %p82 = scmp.ne.s32.totalorder %s70, %s71
    %p83 = scmp.eq.s32.totalorder %s19, 1
    %p84 = por %p82, %p83
    %p86 = scmp.ne.s32.totalorder %s71, %s85
    %p87 = scmp.eq.s32.totalorder %s19, 0
    %p88 = por %p86, %p87
    %s90 = sadd.s32 %s89, 1
    %p93 = scmp.eq.s32.totalorder %s13, 1
    %p94 = scmp.ne.s32.totalorder %s89, %s91
    %p95 = scmp.eq.s32.totalorder %s13, 0
    %p96 = por %p94, %p95
    %p97 = scmp.ne.s32.totalorder %s89, %s91
    %p98 = scmp.eq.s32.totalorder %s18, 1
    %p99 = por %p97, %p98
    %p100 = scmp.ne.s32.totalorder %s91, %s92
    %p101 = scmp.eq.s32.totalorder %s18, 0
    %p102 = por %p100, %p101
    %p103 = scmp.ne.s32.totalorder %s91, %s92
    %p104 = scmp.eq.s32.totalorder %s19, 1
    %p105 = por %p103, %p104
    %p107 = scmp.ne.s32.totalorder %s92, %s106
    %p108 = scmp.eq.s32.totalorder %s19, 0
    %p109 = por %p107, %p108
    %s111 = sadd.s32 %s110, 1
    %p114 = scmp.eq.s32.totalorder %s13, 1
    %p115 = scmp.ne.s32.totalorder %s110, %s112
    %p116 = scmp.eq.s32.totalorder %s13, 0
    %p117 = por %p115, %p116
    %p118 = scmp.ne.s32.totalorder %s110, %s112
    %p119 = scmp.eq.s32.totalorder %s18, 1
    %p120 = por %p118, %p119
    %p121 = scmp.ne.s32.totalorder %s112, %s113
    %p122 = scmp.eq.s32.totalorder %s18, 0
    %p123 = por %p121, %p122
    %p124 = scmp.ne.s32.totalorder %s112, %s113
    %p125 = scmp.eq.s32.totalorder %s19, 1
    %p126 = por %p124, %p125
    %p128 = scmp.ne.s32.totalorder %s113, %s127
    %p129 = scmp.eq.s32.totalorder %s19, 0
    %p130 = por %p128, %p129
    %s131 = ssub.s32 %s13, %s20
    %p132 = scmp.eq.s32.totalorder %s131, 0
    %s134 = sadd.s32 %s133, 1
    %s135 = scalar_select %p132, %s133, %s134
    %p138 = pneg %p132
    %p139 = scmp.eq.s32.totalorder %s13, 1
    %p140 = por %p138, %p139
    %p141 = scmp.ne.s32.totalorder %s133, %s136
    %p142 = scmp.eq.s32.totalorder %s13, 0
    %p143 = por %p141, %p142
    %p144 = scmp.ne.s32.totalorder %s133, %s136
    %p145 = scmp.eq.s32.totalorder %s18, 1
    %p146 = por %p144, %p145
    %p147 = scmp.ne.s32.totalorder %s136, %s137
    %p148 = scmp.eq.s32.totalorder %s18, 0
    %p149 = por %p147, %p148
    %p150 = scmp.ne.s32.totalorder %s136, %s137
    %p151 = scmp.eq.s32.totalorder %s19, 1
    %p152 = por %p150, %p151
    %p154 = scmp.ne.s32.totalorder %s137, %s153
    %p155 = scmp.eq.s32.totalorder %s19, 0
    %p156 = por %p154, %p155
    %s157 = ssub.s32 %s13, %s20
    %p158 = scmp.eq.s32.totalorder %s157, 0
    %s160 = sadd.s32 %s159, 1
    %s161 = scalar_select %p158, %s159, %s160
    %p164 = pneg %p158
    %p165 = scmp.eq.s32.totalorder %s13, 1
    %p166 = por %p164, %p165
    %p167 = scmp.ne.s32.totalorder %s159, %s162
    %p168 = scmp.eq.s32.totalorder %s13, 0
    %p169 = por %p167, %p168
    %p170 = scmp.ne.s32.totalorder %s159, %s162
    %p171 = scmp.eq.s32.totalorder %s18, 1
    %p172 = por %p170, %p171
    %p173 = scmp.ne.s32.totalorder %s162, %s163
    %p174 = scmp.eq.s32.totalorder %s18, 0
    %p175 = por %p173, %p174
    %p176 = scmp.ne.s32.totalorder %s162, %s163
    %p177 = scmp.eq.s32.totalorder %s19, 1
    %p178 = por %p176, %p177
    %p180 = scmp.ne.s32.totalorder %s163, %s179
    %p181 = scmp.eq.s32.totalorder %s19, 0
    %p182 = por %p180, %p181
    %p183 = scmp.le.s32.totalorder 1, %s13
    %p184 = scmp.lt.s32.totalorder %s13, 3
    %p185 = pnand %p183, %p184
    %p186 = pneg %p185
    // Predicated region
    $region9: #{down_conv.1} parent=5 // pred_check
      _
    $region10: #{down_conv.1} parent=5 // pred_check_branch
      %188 = sbr.rel (%p185) target = $region12
    $region11: #{down_conv.1} parent=5 // pred_region
      %s189 = ssub.s32 %s13, 1
      // Predicated region
      $region13: #{down_conv.1} parent=11 // pred_check
        %p190 = pneg %p60
      $region14: #{down_conv.1} parent=11 // pred_check_branch
        %192 = sbr.rel (%p190) target = $region16
      $region15: #{down_conv.1} parent=11 // pred_region
        _
      $region16: #{down_conv.1} parent=11 // pred_fallthru
        _
      // Predicated region
      $region17: #{down_conv.1} parent=11 // pred_check
        %p193 = pneg %p81
      $region18: #{down_conv.1} parent=11 // pred_check_branch
        %195 = sbr.rel (%p193) target = $region20
      $region19: #{down_conv.1} parent=11 // pred_region
        _
      $region20: #{down_conv.1} parent=11 // pred_fallthru
        _
      // Predicated region
      $region21: #{down_conv.1} parent=11 // pred_check
        %p196 = pneg %p102
      $region22: #{down_conv.1} parent=11 // pred_check_branch
        %198 = sbr.rel (%p196) target = $region24
      $region23: #{down_conv.1} parent=11 // pred_region
        _
      $region24: #{down_conv.1} parent=11 // pred_fallthru
        _
      // Predicated region
      $region25: #{down_conv.1} parent=11 // pred_check
        %p199 = pneg %p123
      $region26: #{down_conv.1} parent=11 // pred_check_branch
        %201 = sbr.rel (%p199) target = $region28
      $region27: #{down_conv.1} parent=11 // pred_region
        _
      $region28: #{down_conv.1} parent=11 // pred_fallthru
        _
    $region12: #{down_conv.1} parent=5 // pred_fallthru
      _
    %p202 = scmp.lt.s32.totalorder %s13, 2
    // Predicated region
    $region29: #{down_conv.1} parent=5 // pred_check
      %p203 = pneg %p202
    $region30: #{down_conv.1} parent=5 // pred_check_branch
      %205 = sbr.rel (%p203) target = $region32
    $region31: #{down_conv.1} parent=5 // pred_region
      // Predicated region
      $region33: #{down_conv.1} parent=31 // pred_check
        %p206 = pneg %p33
      $region34: #{down_conv.1} parent=31 // pred_check_branch
        %208 = sbr.rel (%p206) target = $region36
      $region35: #{down_conv.1} parent=31 // pred_region
        %p209 = scmp.lt.s32.totalorder %s13, 1
        %s210 = scalar_select %p209, %s13, 1
        %s211 = smul.addr %s210, 3
        %s212 = smul.addr %s211, 8
        %s213 = scalar_lea.vmem %s0, %s212
      $region36: #{down_conv.1} parent=31 // pred_fallthru
        _
    $region32: #{down_conv.1} parent=5 // pred_fallthru
      _
    %p214 = scmp.le.s32.totalorder 1, %s13
    %p215 = scmp.lt.s32.totalorder %s13, 3
    %p216 = pnand %p214, %p215
    %p217 = pneg %p216
    // Predicated region
    $region37: #{down_conv.1} parent=5 // pred_check
      _
    $region38: #{down_conv.1} parent=5 // pred_check_branch
      %219 = sbr.rel (%p216) target = $region40
    $region39: #{down_conv.1} parent=5 // pred_region
      %s220 = ssub.s32 %s13, 1
      %p221 = scmp.lt.s32.totalorder %s18, 1
      %s222 = scalar_select %p221, %s18, 1
      %s223 = smul.addr %s222, 3
      %s224 = smul.addr %s223, 8
      %s225 = scalar_lea.vmem %s0, %s224
      %p226 = pneg %p39
      %p227 = pneg %p36
      %p228 = pneg %p60
      %p229 = pneg %p57
      %p230 = pneg %p81
      %p231 = pneg %p78
      %p232 = pneg %p102
      %p233 = pneg %p99
      %p234 = pneg %p123
      %p235 = pneg %p120
      %p236 = pneg %p149
      %p237 = pneg %p146
      %p238 = scmp.lt.s32.totalorder %s18, 1
      %s239 = scalar_select %p238, %s18, 1
      %s240 = smul.addr %s239, 2
      %s241 = smul.addr %s240, 8
      %s242 = scalar_lea.vmem %s5, %s241
      %p243 = pneg %p175
      %p244 = pneg %p172
      %p245 = scmp.lt.s32.totalorder %s18, 1
      %s246 = scalar_select %p245, %s18, 1
      %s247 = smul.addr %s246, 4
      %s248 = scalar_lea.vmem %s6, %s247
      %p249 = scmp.lt.s32.totalorder %s18, 1
      %s250 = scalar_select %p249, %s18, 1
      %s251 = smul.addr %s250, 3
      %s252 = smul.addr %s251, 8
      %s253 = scalar_lea.vmem %s0, %s252
      %p254 = scmp.lt.s32.totalorder %s18, 1
      %s255 = scalar_select %p254, %s18, 1
      %s256 = smul.addr %s255, 2
      %s257 = smul.addr %s256, 8
      %s258 = scalar_lea.vmem %s5, %s257
      %p259 = scmp.lt.s32.totalorder %s18, 1
      %s260 = scalar_select %p259, %s18, 1
      %s261 = smul.addr %s260, 4
      %s262 = scalar_lea.vmem %s6, %s261
      %p263 = scmp.eq.s32.totalorder %s18, 0
      // Predicated region
      $region41: #{down_conv.1} parent=39 // pred_check
        %p264 = pneg %p263
      $region42: #{down_conv.1} parent=39 // pred_check_branch
        %266 = sbr.rel (%p264) target = $region44
      $region43: #{down_conv.1} parent=39 // pred_region
        %267 = vst [vmem:[#allocation2] sm:$0x1] 0.0
        %268 = vst [vmem:[#allocation2 + $0x11] sm:$0x1] 0.0
      $region44: #{down_conv.1} parent=39 // pred_fallthru
        _
      %v269 = vld [vmem:[%s253] sm:$0xff]
      %v270 = vld [vmem:[%s253 + $0x8] sm:$0xff]
      %v271 = vld [vmem:[%s1] sm:$0xff]
      %v272 = vld [vmem:[%s1 + $0x8] sm:$0xff]
      %v273 = vld [vmem:[%s1 + $0x10] sm:$0xff]
      %v274 = vld [vmem:[%s1 + $0x18] sm:$0xff]
      %v275 = vld [vmem:[%s1 + $0x20] sm:$0xff]
      %v276 = vld [vmem:[%s1 + $0x28] sm:$0xff]
      %v277 = vld [vmem:[%s1 + $0x30] sm:$0xff]
      %v278 = vld [vmem:[%s1 + $0x38] sm:$0xff]
      %v279 = vld [vmem:[%s253 + $0x1] sm:$0xff]
      %v280 = vld [vmem:[%s253 + $0x9] sm:$0xff]
      %s281 = scalar_lea.vmem %s1, 64
      %v282 = vld [vmem:[%s281] sm:$0xff]
      %v283 = vld [vmem:[%s281 + $0x8] sm:$0xff]
      %v284 = vld [vmem:[%s281 + $0x10] sm:$0xff]
      %v285 = vld [vmem:[%s281 + $0x18] sm:$0xff]
      %v286 = vld [vmem:[%s281 + $0x20] sm:$0xff]
      %v287 = vld [vmem:[%s281 + $0x28] sm:$0xff]
      %v288 = vld [vmem:[%s281 + $0x30] sm:$0xff]
      %v289 = vld [vmem:[%s281 + $0x38] sm:$0xff]
      %vm290 = vcmask 523264
      %v292 = vsel %vm290, %v279, 0
      %v295 = vsel %vm290, %v280, 0
      %297 = vmatprep.subr.mxu0 0.0
      %v298 = vand.u32 %v282, 4294901760
      %299 = vmatpush1.msra.mxu0 %v298
      %300 = vmatprep.subr.mxu0 0.0
      %v301 = vand.u32 %v283, 4294901760
      %302 = vmatpush1.msra.mxu0 %v301
      %303 = vmatprep.subr.mxu0 0.0
      %v304 = vand.u32 %v284, 4294901760
      %305 = vmatpush1.msra.mxu0 %v304
      %306 = vmatprep.subr.mxu0 0.0
      %v307 = vand.u32 %v285, 4294901760
      %308 = vmatpush1.msra.mxu0 %v307
      %309 = vmatprep.subr.mxu0 0.0
      %v310 = vand.u32 %v286, 4294901760
      %311 = vmatpush1.msra.mxu0 %v310
      %312 = vmatprep.subr.mxu0 0.0
      %v313 = vand.u32 %v287, 4294901760
      %314 = vmatpush1.msra.mxu0 %v313
      %315 = vmatprep.subr.mxu0 0.0
      %v316 = vand.u32 %v288, 4294901760
      %317 = vmatpush1.msra.mxu0 %v316
      %318 = vmatprep.subr.mxu0 0.0
      %v319 = vand.u32 %v289, 4294901760
      %320 = vmatpush1.msra.mxu0 %v319
      %321 = vmatprep.subr.mxu0 0.0
      %322 = vmatpush1.msra.mxu0 0.0
      %323 = vmatprep.subr.mxu0 0.0
      %324 = vmatpush1.msra.mxu0 0.0
      %325 = vmatprep.subr.mxu0 0.0
      %326 = vmatpush1.msra.mxu0 0.0
      %327 = vmatprep.subr.mxu0 0.0
      %328 = vmatpush1.msra.mxu0 0.0
      %329 = vmatprep.subr.mxu0 0.0
      %330 = vmatpush1.msra.mxu0 0.0
      %331 = vmatprep.subr.mxu0 0.0
      %332 = vmatpush1.msra.mxu0 0.0
      %333 = vmatprep.subr.mxu0 0.0
      %334 = vmatpush1.msra.mxu0 0.0
      %335 = vmatprep.subr.mxu0 0.0
      %336 = vmatpush1.msra.mxu0 0.0
      %337 = vmatprep.subr.mxu0 0.0
      %338 = vmatpush1.msra.mxu0 0.0
      %339 = vmatprep.subr.mxu0 0.0
      %340 = vmatpush1.msra.mxu0 0.0
      %341 = vmatprep.subr.mxu0 0.0
      %342 = vmatpush1.msra.mxu0 0.0
      %343 = vmatprep.subr.mxu0 0.0
      %344 = vmatpush1.msra.mxu0 0.0
      %345 = vmatprep.subr.mxu0 0.0
      %346 = vmatpush1.msra.mxu0 0.0
      %347 = vmatprep.subr.mxu0 0.0
      %348 = vmatpush1.msra.mxu0 0.0
      %349 = vmatprep.subr.mxu0 0.0
      %350 = vmatpush1.msra.mxu0 0.0
      %351 = vmatprep.subr.mxu0 0.0
      %352 = vmatpush1.msra.mxu0 0.0
      %353 = vmatprep.subr.mxu0 0.0
      %354 = vmatpush1.msra.mxu0 0.0
      %355 = vmatprep.subr.mxu0 0.0
      %356 = vmatpush1.msra.mxu0 0.0
      %357 = vmatprep.subr.mxu0 0.0
      %358 = vmatpush1.msra.mxu0 0.0
      %359 = vmatprep.subr.mxu0 0.0
      %360 = vmatpush1.msra.mxu0 0.0
      %361 = vmatprep.subr.mxu0 0.0
      %362 = vmatpush1.msra.mxu0 0.0
      %363 = vmatprep.subr.mxu0 0.0
      %364 = vmatpush1.msra.mxu0 0.0
      %365 = vmatprep.subr.mxu0 0.0
      %366 = vmatpush1.msra.mxu0 0.0
      %367 = vmatprep.subr.mxu0 0.0
      %368 = vmatpush1.msra.mxu0 0.0
      %369 = vmatprep.mubr.f32.mxu0 0.0
      %v370 = vand.u32 %v292, 4294901760
      %v371 = vsub.f32 %v292, %v370
      %v372 = vand.u32 %v371, 4294901760
      %v373 = vsub.f32 %v371, %v372
      %v374 = vand.u32 %v373, 4294901760
      %375 = vmatmul.mubr.f32.gmra.mrb[0].mxu0 %v374
      %v376 = vpop.f32.mrb[0].mxu0
      %v377 = vadd.f32 0.0, %v376
      %v378 = vpop.f32.mrb[0].mxu0
      %379 = vmatprep.mubr.f32.mxu0 0.0
      %v380 = vand.u32 %v295, 4294901760
      %v381 = vsub.f32 %v295, %v380
      %v382 = vand.u32 %v381, 4294901760
      %v383 = vsub.f32 %v381, %v382
      %v384 = vand.u32 %v383, 4294901760
      %385 = vmatmul.mubr.f32.gmra.mrb[0].mxu0 %v384
      %v386 = vpop.f32.mrb[0].mxu0
      %v387 = vadd.f32 0.0, %v386
      %v388 = vpop.f32.mrb[0].mxu0
      %389 = vdwg.mxu0
      %390 = vmatprep.subr.mxu0 0.0
      %v391 = vand.u32 %v282, 4294901760
      %v392 = vsub.f32 %v282, %v391
      %v393 = vand.u32 %v392, 4294901760
      %v394 = vsub.f32 %v392, %v393
      %v395 = vand.u32 %v394, 4294901760
      %396 = vmatpush1.msra.mxu0 %v395
      %397 = vmatprep.subr.mxu0 0.0
      %v398 = vand.u32 %v283, 4294901760
      %v399 = vsub.f32 %v283, %v398
      %v400 = vand.u32 %v399, 4294901760
      %v401 = vsub.f32 %v399, %v400
      %v402 = vand.u32 %v401, 4294901760
      %403 = vmatpush1.msra.mxu0 %v402
      %404 = vmatprep.subr.mxu0 0.0
      %v405 = vand.u32 %v284, 4294901760
      %v406 = vsub.f32 %v284, %v405
      %v407 = vand.u32 %v406, 4294901760
      %v408 = vsub.f32 %v406, %v407
      %v409 = vand.u32 %v408, 4294901760
      %410 = vmatpush1.msra.mxu0 %v409
      %411 = vmatprep.subr.mxu0 0.0
      %v412 = vand.u32 %v285, 4294901760
      %v413 = vsub.f32 %v285, %v412
      %v414 = vand.u32 %v413, 4294901760
      %v415 = vsub.f32 %v413, %v414
      %v416 = vand.u32 %v415, 4294901760
      %417 = vmatpush1.msra.mxu0 %v416
      %418 = vmatprep.subr.mxu0 0.0
      %v419 = vand.u32 %v286, 4294901760
      %v420 = vsub.f32 %v286, %v419
      %v421 = vand.u32 %v420, 4294901760
      %v422 = vsub.f32 %v420, %v421
      %v423 = vand.u32 %v422, 4294901760
      %424 = vmatpush1.msra.mxu0 %v423
      %425 = vmatprep.subr.mxu0 0.0
      %v426 = vand.u32 %v287, 4294901760
      %v427 = vsub.f32 %v287, %v426
      %v428 = vand.u32 %v427, 4294901760
      %v429 = vsub.f32 %v427, %v428
      %v430 = vand.u32 %v429, 4294901760
      %431 = vmatpush1.msra.mxu0 %v430
      %432 = vmatprep.subr.mxu0 0.0
      %v433 = vand.u32 %v288, 4294901760
      %v434 = vsub.f32 %v288, %v433
      %v435 = vand.u32 %v434, 4294901760
      %v436 = vsub.f32 %v434, %v435
      %v437 = vand.u32 %v436, 4294901760
      %438 = vmatpush1.msra.mxu0 %v437
      %439 = vmatprep.subr.mxu0 0.0
      %v440 = vand.u32 %v289, 4294901760
      %v441 = vsub.f32 %v289, %v440
      %v442 = vand.u32 %v441, 4294901760
      %v443 = vsub.f32 %v441, %v442
      %v444 = vand.u32 %v443, 4294901760
      %445 = vmatpush1.msra.mxu0 %v444
      %446 = vmatprep.subr.mxu0 0.0
      %447 = vmatpush1.msra.mxu0 0.0
      %448 = vmatprep.subr.mxu0 0.0
      %449 = vmatpush1.msra.mxu0 0.0
      %450 = vmatprep.subr.mxu0 0.0
      %451 = vmatpush1.msra.mxu0 0.0
      %452 = vmatprep.subr.mxu0 0.0
      %453 = vmatpush1.msra.mxu0 0.0
      %454 = vmatprep.subr.mxu0 0.0
      %455 = vmatpush1.msra.mxu0 0.0
      %456 = vmatprep.subr.mxu0 0.0
      %457 = vmatpush1.msra.mxu0 0.0
      %458 = vmatprep.subr.mxu0 0.0
      %459 = vmatpush1.msra.mxu0 0.0
      %460 = vmatprep.subr.mxu0 0.0
      %461 = vmatpush1.msra.mxu0 0.0
      %462 = vmatprep.subr.mxu0 0.0
      %463 = vmatpush1.msra.mxu0 0.0
      %464 = vmatprep.subr.mxu0 0.0
      %465 = vmatpush1.msra.mxu0 0.0
      %466 = vmatprep.subr.mxu0 0.0
      %467 = vmatpush1.msra.mxu0 0.0
      %468 = vmatprep.subr.mxu0 0.0
      %469 = vmatpush1.msra.mxu0 0.0
      %470 = vmatprep.subr.mxu0 0.0
      %471 = vmatpush1.msra.mxu0 0.0
      %472 = vmatprep.subr.mxu0 0.0
      %473 = vmatpush1.msra.mxu0 0.0
      %474 = vmatprep.subr.mxu0 0.0
      %475 = vmatpush1.msra.mxu0 0.0
      %476 = vmatprep.subr.mxu0 0.0
      %477 = vmatpush1.msra.mxu0 0.0
      %478 = vmatprep.subr.mxu0 0.0
      %479 = vmatpush1.msra.mxu0 0.0
      %480 = vmatprep.subr.mxu0 0.0
      %481 = vmatpush1.msra.mxu0 0.0
      %482 = vmatprep.subr.mxu0 0.0
      %483 = vmatpush1.msra.mxu0 0.0
      %484 = vmatprep.subr.mxu0 0.0
      %485 = vmatpush1.msra.mxu0 0.0
      %486 = vmatprep.subr.mxu0 0.0
      %487 = vmatpush1.msra.mxu0 0.0
      %488 = vmatprep.subr.mxu0 0.0
      %489 = vmatpush1.msra.mxu0 0.0
      %490 = vmatprep.subr.mxu0 0.0
      %491 = vmatpush1.msra.mxu0 0.0
      %492 = vmatprep.subr.mxu0 0.0
      %493 = vmatpush1.msra.mxu0 0.0
      %494 = vmatprep.mubr.f32.mxu0 0.0
      %v495 = vand.u32 %v292, 4294901760
      %496 = vmatmul.mubr.f32.gmra.mrb[0].mxu0 %v495
      %v497 = vpop.f32.mrb[0].mxu0
      %v498 = vadd.f32 %v377, %v497
      %v499 = vpop.f32.mrb[0].mxu0
      %500 = vmatprep.mubr.f32.mxu0 0.0
      %v501 = vand.u32 %v295, 4294901760
      %502 = vmatmul.mubr.f32.gmra.mrb[0].mxu0 %v501
      %v503 = vpop.f32.mrb[0].mxu0
      %v504 = vadd.f32 %v387, %v503
      %v505 = vpop.f32.mrb[0].mxu0
      %506 = vdwg.mxu0
      %507 = vmatprep.subr.mxu0 0.0
      %v508 = vand.u32 %v282, 4294901760
      %v509 = vsub.f32 %v282, %v508
      %510 = vmatpush1.msra.mxu0 %v509
      %511 = vmatprep.subr.mxu0 0.0
      %v512 = vand.u32 %v283, 4294901760
      %v513 = vsub.f32 %v283, %v512
      %514 = vmatpush1.msra.mxu0 %v513
      %515 = vmatprep.subr.mxu0 0.0
      %v516 = vand.u32 %v284, 4294901760
      %v517 = vsub.f32 %v284, %v516
      %518 = vmatpush1.msra.mxu0 %v517
      %519 = vmatprep.subr.mxu0 0.0
      %v520 = vand.u32 %v285, 4294901760
      %v521 = vsub.f32 %v285, %v520
      %522 = vmatpush1.msra.mxu0 %v521
      %523 = vmatprep.subr.mxu0 0.0
      %v524 = vand.u32 %v286, 4294901760
      %v525 = vsub.f32 %v286, %v524
      %526 = vmatpush1.msra.mxu0 %v525
      %527 = vmatprep.subr.mxu0 0.0
      %v528 = vand.u32 %v287, 4294901760
      %v529 = vsub.f32 %v287, %v528
      %530 = vmatpush1.msra.mxu0 %v529
      %531 = vmatprep.subr.mxu0 0.0
      %v532 = vand.u32 %v288, 4294901760
      %v533 = vsub.f32 %v288, %v532
      %534 = vmatpush1.msra.mxu0 %v533
      %535 = vmatprep.subr.mxu0 0.0
      %v536 = vand.u32 %v289, 4294901760
      %v537 = vsub.f32 %v289, %v536
      %538 = vmatpush1.msra.mxu0 %v537
      %539 = vmatprep.subr.mxu0 0.0
      %540 = vmatpush1.msra.mxu0 0.0
      %541 = vmatprep.subr.mxu0 0.0
      %542 = vmatpush1.msra.mxu0 0.0
      %543 = vmatprep.subr.mxu0 0.0
      %544 = vmatpush1.msra.mxu0 0.0
      %545 = vmatprep.subr.mxu0 0.0
      %546 = vmatpush1.msra.mxu0 0.0
      %547 = vmatprep.subr.mxu0 0.0
      %548 = vmatpush1.msra.mxu0 0.0
      %549 = vmatprep.subr.mxu0 0.0
      %550 = vmatpush1.msra.mxu0 0.0
      %551 = vmatprep.subr.mxu0 0.0
      %552 = vmatpush1.msra.mxu0 0.0
      %553 = vmatprep.subr.mxu0 0.0
      %554 = vmatpush1.msra.mxu0 0.0
      %555 = vmatprep.subr.mxu0 0.0
      %556 = vmatpush1.msra.mxu0 0.0
      %557 = vmatprep.subr.mxu0 0.0
      %558 = vmatpush1.msra.mxu0 0.0
      %559 = vmatprep.subr.mxu0 0.0
      %560 = vmatpush1.msra.mxu0 0.0
      %561 = vmatprep.subr.mxu0 0.0
      %562 = vmatpush1.msra.mxu0 0.0
      %563 = vmatprep.subr.mxu0 0.0
      %564 = vmatpush1.msra.mxu0 0.0
      %565 = vmatprep.subr.mxu0 0.0
      %566 = vmatpush1.msra.mxu0 0.0
      %567 = vmatprep.subr.mxu0 0.0
      %568 = vmatpush1.msra.mxu0 0.0
      %569 = vmatprep.subr.mxu0 0.0
      %570 = vmatpush1.msra.mxu0 0.0
      %571 = vmatprep.subr.mxu0 0.0
      %572 = vmatpush1.msra.mxu0 0.0
      %573 = vmatprep.subr.mxu0 0.0
      %574 = vmatpush1.msra.mxu0 0.0
      %575 = vmatprep.subr.mxu0 0.0
      %576 = vmatpush1.msra.mxu0 0.0
      %577 = vmatprep.subr.mxu0 0.0
      %578 = vmatpush1.msra.mxu0 0.0
      %579 = vmatprep.subr.mxu0 0.0
      %580 = vmatpush1.msra.mxu0 0.0
      %581 = vmatprep.subr.mxu0 0.0
      %582 = vmatpush1.msra.mxu0 0.0
      %583 = vmatprep.subr.mxu0 0.0
      %584 = vmatpush1.msra.mxu0 0.0
      %585 = vmatprep.subr.mxu0 0.0
      %586 = vmatpush1.msra.mxu0 0.0
      %587 = vmatprep.mubr.f32.mxu0 0.0
      %v588 = vand.u32 %v292, 4294901760
      %v589 = vsub.f32 %v292, %v588
      %590 = vmatmul.mubr.f32.gmra.mrb[0].mxu0 %v589
      %v591 = vpop.f32.mrb[0].mxu0
      %v592 = vadd.f32 %v498, %v591
      %v593 = vpop.f32.mrb[0].mxu0
      %594 = vmatprep.mubr.f32.mxu0 0.0
      %v595 = vand.u32 %v295, 4294901760
      %v596 = vsub.f32 %v295, %v595
      %597 = vmatmul.mubr.f32.gmra.mrb[0].mxu0 %v596
      %v598 = vpop.f32.mrb[0].mxu0
      %v599 = vadd.f32 %v504, %v598
      %v600 = vpop.f32.mrb[0].mxu0
      %601 = vdwg.mxu0
      %602 = vmatprep.subr.mxu0 0.0
      %v603 = vand.u32 %v282, 4294901760
      %604 = vmatpush1.msra.mxu0 %v603
      %605 = vmatprep.subr.mxu0 0.0
      %v606 = vand.u32 %v283, 4294901760
      %607 = vmatpush1.msra.mxu0 %v606
      %608 = vmatprep.subr.mxu0 0.0
      %v609 = vand.u32 %v284, 4294901760
      %610 = vmatpush1.msra.mxu0 %v609
      %611 = vmatprep.subr.mxu0 0.0
      %v612 = vand.u32 %v285, 4294901760
      %613 = vmatpush1.msra.mxu0 %v612
      %614 = vmatprep.subr.mxu0 0.0
      %v615 = vand.u32 %v286, 4294901760
      %616 = vmatpush1.msra.mxu0 %v615
      %617 = vmatprep.subr.mxu0 0.0
      %v618 = vand.u32 %v287, 4294901760
      %619 = vmatpush1.msra.mxu0 %v618
      %620 = vmatprep.subr.mxu0 0.0
      %v621 = vand.u32 %v288, 4294901760
      %622 = vmatpush1.msra.mxu0 %v621
      %623 = vmatprep.subr.mxu0 0.0
      %v624 = vand.u32 %v289, 4294901760
      %625 = vmatpush1.msra.mxu0 %v624
      %626 = vmatprep.subr.mxu0 0.0
      %627 = vmatpush1.msra.mxu0 0.0
      %628 = vmatprep.subr.mxu0 0.0
      %629 = vmatpush1.msra.mxu0 0.0
      %630 = vmatprep.subr.mxu0 0.0
      %631 = vmatpush1.msra.mxu0 0.0
      %632 = vmatprep.subr.mxu0 0.0
      %633 = vmatpush1.msra.mxu0 0.0
      %634 = vmatprep.subr.mxu0 0.0
      %635 = vmatpush1.msra.mxu0 0.0
      %636 = vmatprep.subr.mxu0 0.0
      %637 = vmatpush1.msra.mxu0 0.0
      %638 = vmatprep.subr.mxu0 0.0
      %639 = vmatpush1.msra.mxu0 0.0
      %640 = vmatprep.subr.mxu0 0.0
      %641 = vmatpush1.msra.mxu0 0.0
      %642 = vmatprep.subr.mxu0 0.0
      %643 = vmatpush1.msra.mxu0 0.0
      %644 = vmatprep.subr.mxu0 0.0
      %645 = vmatpush1.msra.mxu0 0.0
      %646 = vmatprep.subr.mxu0 0.0
      %647 = vmatpush1.msra.mxu0 0.0
      %648 = vmatprep.subr.mxu0 0.0
      %649 = vmatpush1.msra.mxu0 0.0
      %650 = vmatprep.subr.mxu0 0.0
      %651 = vmatpush1.msra.mxu0 0.0
      %652 = vmatprep.subr.mxu0 0.0
      %653 = vmatpush1.msra.mxu0 0.0
      %654 = vmatprep.subr.mxu0 0.0
      %655 = vmatpush1.msra.mxu0 0.0
      %656 = vmatprep.subr.mxu0 0.0
      %657 = vmatpush1.msra.mxu0 0.0
      %658 = vmatprep.subr.mxu0 0.0
      %659 = vmatpush1.msra.mxu0 0.0
      %660 = vmatprep.subr.mxu0 0.0
      %661 = vmatpush1.msra.mxu0 0.0
      %662 = vmatprep.subr.mxu0 0.0
      %663 = vmatpush1.msra.mxu0 0.0
      %664 = vmatprep.subr.mxu0 0.0
      %665 = vmatpush1.msra.mxu0 0.0
      %666 = vmatprep.subr.mxu0 0.0
      %667 = vmatpush1.msra.mxu0 0.0
      %668 = vmatprep.subr.mxu0 0.0
      %669 = vmatpush1.msra.mxu0 0.0
      %670 = vmatprep.subr.mxu0 0.0
      %671 = vmatpush1.msra.mxu0 0.0
      %672 = vmatprep.subr.mxu0 0.0
      %673 = vmatpush1.msra.mxu0 0.0
      %674 = vmatprep.mubr.f32.mxu0 0.0
      %v675 = vand.u32 %v292, 4294901760
      %v676 = vsub.f32 %v292, %v675
      %v677 = vand.u32 %v676, 4294901760
      %678 = vmatmul.mubr.f32.gmra.mrb[0].mxu0 %v677
      %v679 = vpop.f32.mrb[0].mxu0
      %v680 = vadd.f32 %v592, %v679
      %v681 = vpop.f32.mrb[0].mxu0
      %682 = vmatprep.mubr.f32.mxu0 0.0
      %v683 = vand.u32 %v295, 4294901760
      %v684 = vsub.f32 %v295, %v683
      %v685 = vand.u32 %v684, 4294901760
      %686 = vmatmul.mubr.f32.gmra.mrb[0].mxu0 %v685
      %v687 = vpop.f32.mrb[0].mxu0
      %v688 = vadd.f32 %v599, %v687
      %v689 = vpop.f32.mrb[0].mxu0
      %690 = vdwg.mxu0
      %691 = vmatprep.subr.mxu0 0.0
      %v692 = vand.u32 %v282, 4294901760
      %v693 = vsub.f32 %v282, %v692
      %v694 = vand.u32 %v693, 4294901760
      %695 = vmatpush1.msra.mxu0 %v694
      %696 = vmatprep.subr.mxu0 0.0
      %v697 = vand.u32 %v283, 4294901760
      %v698 = vsub.f32 %v283, %v697
      %v699 = vand.u32 %v698, 4294901760
      %700 = vmatpush1.msra.mxu0 %v699
      %701 = vmatprep.subr.mxu0 0.0
      %v702 = vand.u32 %v284, 4294901760
      %v703 = vsub.f32 %v284, %v702
      %v704 = vand.u32 %v703, 4294901760
      %705 = vmatpush1.msra.mxu0 %v704
      %706 = vmatprep.subr.mxu0 0.0
      %v707 = vand.u32 %v285, 4294901760
      %v708 = vsub.f32 %v285, %v707
      %v709 = vand.u32 %v708, 4294901760
      %710 = vmatpush1.msra.mxu0 %v709
      %711 = vmatprep.subr.mxu0 0.0
      %v712 = vand.u32 %v286, 4294901760
      %v713 = vsub.f32 %v286, %v712
      %v714 = vand.u32 %v713, 4294901760
      %715 = vmatpush1.msra.mxu0 %v714
      %716 = vmatprep.subr.mxu0 0.0
      %v717 = vand.u32 %v287, 4294901760
      %v718 = vsub.f32 %v287, %v717
      %v719 = vand.u32 %v718, 4294901760
      %720 = vmatpush1.msra.mxu0 %v719
      %721 = vmatprep.subr.mxu0 0.0
      %v722 = vand.u32 %v288, 4294901760
      %v723 = vsub.f32 %v288, %v722
      %v724 = vand.u32 %v723, 4294901760
      %725 = vmatpush1.msra.mxu0 %v724
      %726 = vmatprep.subr.mxu0 0.0
      %v727 = vand.u32 %v289, 4294901760
      %v728 = vsub.f32 %v289, %v727
      %v729 = vand.u32 %v728, 4294901760
      %730 = vmatpush1.msra.mxu0 %v729
      %731 = vmatprep.subr.mxu0 0.0
      %732 = vmatpush1.msra.mxu0 0.0
      %733 = vmatprep.subr.mxu0 0.0
      %734 = vmatpush1.msra.mxu0 0.0
      %735 = vmatprep.subr.mxu0 0.0
      %736 = vmatpush1.msra.mxu0 0.0
      %737 = vmatprep.subr.mxu0 0.0
      %738 = vmatpush1.msra.mxu0 0.0
      %739 = vmatprep.subr.mxu0 0.0
      %740 = vmatpush1.msra.mxu0 0.0
      %741 = vmatprep.subr.mxu0 0.0
      %742 = vmatpush1.msra.mxu0 0.0
      %743 = vmatprep.subr.mxu0 0.0
      %744 = vmatpush1.msra.mxu0 0.0
      %745 = vmatprep.subr.mxu0 0.0
      %746 = vmatpush1.msra.mxu0 0.0
      %747 = vmatprep.subr.mxu0 0.0
      %748 = vmatpush1.msra.mxu0 0.0
      %749 = vmatprep.subr.mxu0 0.0
      %750 = vmatpush1.msra.mxu0 0.0
      %751 = vmatprep.subr.mxu0 0.0
      %752 = vmatpush1.msra.mxu0 0.0
      %753 = vmatprep.subr.mxu0 0.0
      %754 = vmatpush1.msra.mxu0 0.0
      %755 = vmatprep.subr.mxu0 0.0
      %756 = vmatpush1.msra.mxu0 0.0
      %757 = vmatprep.subr.mxu0 0.0
      %758 = vmatpush1.msra.mxu0 0.0
      %759 = vmatprep.subr.mxu0 0.0
      %760 = vmatpush1.msra.mxu0 0.0
      %761 = vmatprep.subr.mxu0 0.0
      %762 = vmatpush1.msra.mxu0 0.0
      %763 = vmatprep.subr.mxu0 0.0
      %764 = vmatpush1.msra.mxu0 0.0
      %765 = vmatprep.subr.mxu0 0.0
      %766 = vmatpush1.msra.mxu0 0.0
      %767 = vmatprep.subr.mxu0 0.0
      %768 = vmatpush1.msra.mxu0 0.0
      %769 = vmatprep.subr.mxu0 0.0
      %770 = vmatpush1.msra.mxu0 0.0
      %771 = vmatprep.subr.mxu0 0.0
      %772 = vmatpush1.msra.mxu0 0.0
      %773 = vmatprep.subr.mxu0 0.0
      %774 = vmatpush1.msra.mxu0 0.0
      %775 = vmatprep.subr.mxu0 0.0
      %776 = vmatpush1.msra.mxu0 0.0
      %777 = vmatprep.subr.mxu0 0.0
      %778 = vmatpush1.msra.mxu0 0.0
      %779 = vmatprep.mubr.f32.mxu0 0.0
      %v780 = vand.u32 %v292, 4294901760
      %781 = vmatmul.mubr.f32.gmra.mrb[0].mxu0 %v780
      %v782 = vpop.f32.mrb[0].mxu0
      %v783 = vadd.f32 %v680, %v782
      %v784 = vpop.f32.mrb[0].mxu0
      %785 = vmatprep.mubr.f32.mxu0 0.0
      %v786 = vand.u32 %v295, 4294901760
      %787 = vmatmul.mubr.f32.gmra.mrb[0].mxu0 %v786
      %v788 = vpop.f32.mrb[0].mxu0
      %v789 = vadd.f32 %v688, %v788
      %v790 = vpop.f32.mrb[0].mxu0
      %791 = vdwg.mxu0
      %792 = vmatprep.subr.mxu0 0.0
      %v793 = vand.u32 %v282, 4294901760
      %794 = vmatpush1.msra.mxu0 %v793
      %795 = vmatprep.subr.mxu0 0.0
      %v796 = vand.u32 %v283, 4294901760
      %797 = vmatpush1.msra.mxu0 %v796
      %798 = vmatprep.subr.mxu0 0.0
      %v799 = vand.u32 %v284, 4294901760
      %800 = vmatpush1.msra.mxu0 %v799
      %801 = vmatprep.subr.mxu0 0.0
      %v802 = vand.u32 %v285, 4294901760
      %803 = vmatpush1.msra.mxu0 %v802
      %804 = vmatprep.subr.mxu0 0.0
      %v805 = vand.u32 %v286, 4294901760
      %806 = vmatpush1.msra.mxu0 %v805
      %807 = vmatprep.subr.mxu0 0.0
      %v808 = vand.u32 %v287, 4294901760
      %809 = vmatpush1.msra.mxu0 %v808
      %810 = vmatprep.subr.mxu0 0.0
      %v811 = vand.u32 %v288, 4294901760
      %812 = vmatpush1.msra.mxu0 %v811
      %813 = vmatprep.subr.mxu0 0.0
      %v814 = vand.u32 %v289, 4294901760
      %815 = vmatpush1.msra.mxu0 %v814
      %816 = vmatprep.subr.mxu0 0.0
      %817 = vmatpush1.msra.mxu0 0.0
      %818 = vmatprep.subr.mxu0 0.0
      %819 = vmatpush1.msra.mxu0 0.0
      %820 = vmatprep.subr.mxu0 0.0
      %821 = vmatpush1.msra.mxu0 0.0
      %822 = vmatprep.subr.mxu0 0.0
      %823 = vmatpush1.msra.mxu0 0.0
      %824 = vmatprep.subr.mxu0 0.0
      %825 = vmatpush1.msra.mxu0 0.0
      %826 = vmatprep.subr.mxu0 0.0
      %827 = vmatpush1.msra.mxu0 0.0
      %828 = vmatprep.subr.mxu0 0.0
      %829 = vmatpush1.msra.mxu0 0.0
      %830 = vmatprep.subr.mxu0 0.0
      %831 = vmatpush1.msra.mxu0 0.0
      %832 = vmatprep.subr.mxu0 0.0
      %833 = vmatpush1.msra.mxu0 0.0
      %834 = vmatprep.subr.mxu0 0.0
      %835 = vmatpush1.msra.mxu0 0.0
      %836 = vmatprep.subr.mxu0 0.0
      %837 = vmatpush1.msra.mxu0 0.0
      %838 = vmatprep.subr.mxu0 0.0
      %839 = vmatpush1.msra.mxu0 0.0
      %840 = vmatprep.subr.mxu0 0.0
      %841 = vmatpush1.msra.mxu0 0.0
      %842 = vmatprep.subr.mxu0 0.0
      %843 = vmatpush1.msra.mxu0 0.0
      %844 = vmatprep.subr.mxu0 0.0
      %845 = vmatpush1.msra.mxu0 0.0
      %846 = vmatprep.subr.mxu0 0.0
      %847 = vmatpush1.msra.mxu0 0.0
      %848 = vmatprep.subr.mxu0 0.0
      %849 = vmatpush1.msra.mxu0 0.0
      %850 = vmatprep.subr.mxu0 0.0
      %851 = vmatpush1.msra.mxu0 0.0
      %852 = vmatprep.subr.mxu0 0.0
      %853 = vmatpush1.msra.mxu0 0.0
      %854 = vmatprep.subr.mxu0 0.0
      %855 = vmatpush1.msra.mxu0 0.0
      %856 = vmatprep.subr.mxu0 0.0
      %857 = vmatpush1.msra.mxu0 0.0
      %858 = vmatprep.subr.mxu0 0.0
      %859 = vmatpush1.msra.mxu0 0.0
      %860 = vmatprep.subr.mxu0 0.0
      %861 = vmatpush1.msra.mxu0 0.0
      %862 = vmatprep.subr.mxu0 0.0
      %863 = vmatpush1.msra.mxu0 0.0
      %864 = vmatprep.mubr.f32.mxu0 0.0
      %v865 = vand.u32 %v292, 4294901760
      %866 = vmatmul.mubr.f32.gmra.mrb[0].mxu0 %v865
      %v867 = vpop.f32.mrb[0].mxu0
      %v868 = vadd.f32 %v783, %v867
      %v869 = vpop.f32.mrb[0].mxu0
      %870 = vmatprep.mubr.f32.mxu0 0.0
      %v871 = vand.u32 %v295, 4294901760
      %872 = vmatmul.mubr.f32.gmra.mrb[0].mxu0 %v871
      %v873 = vpop.f32.mrb[0].mxu0
      %v874 = vadd.f32 %v789, %v873
      %v875 = vpop.f32.mrb[0].mxu0
      %876 = vdwg.mxu0
      %v878 = vsel %vm290, %v269, 0
      %v881 = vsel %vm290, %v270, 0
      %883 = vmatprep.subr.mxu0 0.0
      %v884 = vand.u32 %v271, 4294901760
      %885 = vmatpush1.msra.mxu0 %v884
      %886 = vmatprep.subr.mxu0 0.0
      %v887 = vand.u32 %v272, 4294901760
      %888 = vmatpush1.msra.mxu0 %v887
      %889 = vmatprep.subr.mxu0 0.0
      %v890 = vand.u32 %v273, 4294901760
      %891 = vmatpush1.msra.mxu0 %v890
      %892 = vmatprep.subr.mxu0 0.0
      %v893 = vand.u32 %v274, 4294901760
      %894 = vmatpush1.msra.mxu0 %v893
      %895 = vmatprep.subr.mxu0 0.0
      %v896 = vand.u32 %v275, 4294901760
      %897 = vmatpush1.msra.mxu0 %v896
      %898 = vmatprep.subr.mxu0 0.0
      %v899 = vand.u32 %v276, 4294901760
      %900 = vmatpush1.msra.mxu0 %v899
      %901 = vmatprep.subr.mxu0 0.0
      %v902 = vand.u32 %v277, 4294901760
      %903 = vmatpush1.msra.mxu0 %v902
      %904 = vmatprep.subr.mxu0 0.0
      %v905 = vand.u32 %v278, 4294901760
      %906 = vmatpush1.msra.mxu0 %v905
      %907 = vmatprep.subr.mxu0 0.0
      %908 = vmatpush1.msra.mxu0 0.0
      %909 = vmatprep.subr.mxu0 0.0
      %910 = vmatpush1.msra.mxu0 0.0
      %911 = vmatprep.subr.mxu0 0.0
      %912 = vmatpush1.msra.mxu0 0.0
      %913 = vmatprep.subr.mxu0 0.0
      %914 = vmatpush1.msra.mxu0 0.0
      %915 = vmatprep.subr.mxu0 0.0
      %916 = vmatpush1.msra.mxu0 0.0
      %917 = vmatprep.subr.mxu0 0.0
      %918 = vmatpush1.msra.mxu0 0.0
      %919 = vmatprep.subr.mxu0 0.0
      %920 = vmatpush1.msra.mxu0 0.0
      %921 = vmatprep.subr.mxu0 0.0
      %922 = vmatpush1.msra.mxu0 0.0
      %923 = vmatprep.subr.mxu0 0.0
      %924 = vmatpush1.msra.mxu0 0.0
      %925 = vmatprep.subr.mxu0 0.0
      %926 = vmatpush1.msra.mxu0 0.0
      %927 = vmatprep.subr.mxu0 0.0
      %928 = vmatpush1.msra.mxu0 0.0
      %929 = vmatprep.subr.mxu0 0.0
      %930 = vmatpush1.msra.mxu0 0.0
      %931 = vmatprep.subr.mxu0 0.0
      %932 = vmatpush1.msra.mxu0 0.0
      %933 = vmatprep.subr.mxu0 0.0
      %934 = vmatpush1.msra.mxu0 0.0
      %935 = vmatprep.subr.mxu0 0.0
      %936 = vmatpush1.msra.mxu0 0.0
      %937 = vmatprep.subr.mxu0 0.0
      %938 = vmatpush1.msra.mxu0 0.0
      %939 = vmatprep.subr.mxu0 0.0
      %940 = vmatpush1.msra.mxu0 0.0
      %941 = vmatprep.subr.mxu0 0.0
      %942 = vmatpush1.msra.mxu0 0.0
      %943 = vmatprep.subr.mxu0 0.0
      %944 = vmatpush1.msra.mxu0 0.0
      %945 = vmatprep.subr.mxu0 0.0
      %946 = vmatpush1.msra.mxu0 0.0
      %947 = vmatprep.subr.mxu0 0.0
      %948 = vmatpush1.msra.mxu0 0.0
      %949 = vmatprep.subr.mxu0 0.0
      %950 = vmatpush1.msra.mxu0 0.0
      %951 = vmatprep.subr.mxu0 0.0
      %952 = vmatpush1.msra.mxu0 0.0
      %953 = vmatprep.subr.mxu0 0.0
      %954 = vmatpush1.msra.mxu0 0.0
      %955 = vmatprep.mubr.f32.mxu0 0.0
      %v956 = vand.u32 %v878, 4294901760
      %v957 = vsub.f32 %v878, %v956
      %v958 = vand.u32 %v957, 4294901760
      %v959 = vsub.f32 %v957, %v958
      %v960 = vand.u32 %v959, 4294901760
      %961 = vmatmul.mubr.f32.gmra.mrb[0].mxu0 %v960
      %v962 = vpop.f32.mrb[0].mxu0
      %v963 = vadd.f32 %v868, %v962
      %v964 = vpop.f32.mrb[0].mxu0
      %965 = vmatprep.mubr.f32.mxu0 0.0
      %v966 = vand.u32 %v881, 4294901760
      %v967 = vsub.f32 %v881, %v966
      %v968 = vand.u32 %v967, 4294901760
      %v969 = vsub.f32 %v967, %v968
      %v970 = vand.u32 %v969, 4294901760
      %971 = vmatmul.mubr.f32.gmra.mrb[0].mxu0 %v970
      %v972 = vpop.f32.mrb[0].mxu0
      %v973 = vadd.f32 %v874, %v972
      %v974 = vpop.f32.mrb[0].mxu0
      %975 = vdwg.mxu0
      %976 = vmatprep.subr.mxu0 0.0
      %v977 = vand.u32 %v271, 4294901760
      %v978 = vsub.f32 %v271, %v977
      %v979 = vand.u32 %v978, 4294901760
      %v980 = vsub.f32 %v978, %v979
      %v981 = vand.u32 %v980, 4294901760
      %982 = vmatpush1.msra.mxu0 %v981
      %983 = vmatprep.subr.mxu0 0.0
      %v984 = vand.u32 %v272, 4294901760
      %v985 = vsub.f32 %v272, %v984
      %v986 = vand.u32 %v985, 4294901760
      %v987 = vsub.f32 %v985, %v986
      %v988 = vand.u32 %v987, 4294901760
      %989 = vmatpush1.msra.mxu0 %v988
      %990 = vmatprep.subr.mxu0 0.0
      %v991 = vand.u32 %v273, 4294901760
      %v992 = vsub.f32 %v273, %v991
      %v993 = vand.u32 %v992, 4294901760
      %v994 = vsub.f32 %v992, %v993
      %v995 = vand.u32 %v994, 4294901760
      %996 = vmatpush1.msra.mxu0 %v995
      %997 = vmatprep.subr.mxu0 0.0
      %v998 = vand.u32 %v274, 4294901760
      %v999 = vsub.f32 %v274, %v998
      %v1000 = vand.u32 %v999, 4294901760
      %v1001 = vsub.f32 %v999, %v1000
      %v1002 = vand.u32 %v1001, 4294901760
      %1003 = vmatpush1.msra.mxu0 %v1002
      %1004 = vmatprep.subr.mxu0 0.0
      %v1005 = vand.u32 %v275, 4294901760
      %v1006 = vsub.f32 %v275, %v1005
      %v1007 = vand.u32 %v1006, 4294901760
      %v1008 = vsub.f32 %v1006, %v1007
      %v1009 = vand.u32 %v1008, 4294901760
      %1010 = vmatpush1.msra.mxu0 %v1009
      %1011 = vmatprep.subr.mxu0 0.0
      %v1012 = vand.u32 %v276, 4294901760
      %v1013 = vsub.f32 %v276, %v1012
      %v1014 = vand.u32 %v1013, 4294901760
      %v1015 = vsub.f32 %v1013, %v1014
      %v1016 = vand.u32 %v1015, 4294901760
      %1017 = vmatpush1.msra.mxu0 %v1016
      %1018 = vmatprep.subr.mxu0 0.0
      %v1019 = vand.u32 %v277, 4294901760
      %v1020 = vsub.f32 %v277, %v1019
      %v1021 = vand.u32 %v1020, 4294901760
      %v1022 = vsub.f32 %v1020, %v1021
      %v1023 = vand.u32 %v1022, 4294901760
      %1024 = vmatpush1.msra.mxu0 %v1023
      %1025 = vmatprep.subr.mxu0 0.0
      %v1026 = vand.u32 %v278, 4294901760
      %v1027 = vsub.f32 %v278, %v1026
      %v1028 = vand.u32 %v1027, 4294901760
      %v1029 = vsub.f32 %v1027, %v1028
      %v1030 = vand.u32 %v1029, 4294901760
      %1031 = vmatpush1.msra.mxu0 %v1030
      %1032 = vmatprep.subr.mxu0 0.0
      %1033 = vmatpush1.msra.mxu0 0.0
      %1034 = vmatprep.subr.mxu0 0.0
      %1035 = vmatpush1.msra.mxu0 0.0
      %1036 = vmatprep.subr.mxu0 0.0
      %1037 = vmatpush1.msra.mxu0 0.0
      %1038 = vmatprep.subr.mxu0 0.0
      %1039 = vmatpush1.msra.mxu0 0.0
      %1040 = vmatprep.subr.mxu0 0.0
      %1041 = vmatpush1.msra.mxu0 0.0
      %1042 = vmatprep.subr.mxu0 0.0
      %1043 = vmatpush1.msra.mxu0 0.0
      %1044 = vmatprep.subr.mxu0 0.0
      %1045 = vmatpush1.msra.mxu0 0.0
      %1046 = vmatprep.subr.mxu0 0.0
      %1047 = vmatpush1.msra.mxu0 0.0
      %1048 = vmatprep.subr.mxu0 0.0
      %1049 = vmatpush1.msra.mxu0 0.0
      %1050 = vmatprep.subr.mxu0 0.0
      %1051 = vmatpush1.msra.mxu0 0.0
      %1052 = vmatprep.subr.mxu0 0.0
      %1053 = vmatpush1.msra.mxu0 0.0
      %1054 = vmatprep.subr.mxu0 0.0
      %1055 = vmatpush1.msra.mxu0 0.0
      %1056 = vmatprep.subr.mxu0 0.0
      %1057 = vmatpush1.msra.mxu0 0.0
      %1058 = vmatprep.subr.mxu0 0.0
      %1059 = vmatpush1.msra.mxu0 0.0
      %1060 = vmatprep.subr.mxu0 0.0
      %1061 = vmatpush1.msra.mxu0 0.0
      %1062 = vmatprep.subr.mxu0 0.0
      %1063 = vmatpush1.msra.mxu0 0.0
      %1064 = vmatprep.subr.mxu0 0.0
      %1065 = vmatpush1.msra.mxu0 0.0
      %1066 = vmatprep.subr.mxu0 0.0
      %1067 = vmatpush1.msra.mxu0 0.0
      %1068 = vmatprep.subr.mxu0 0.0
      %1069 = vmatpush1.msra.mxu0 0.0
      %1070 = vmatprep.subr.mxu0 0.0
      %1071 = vmatpush1.msra.mxu0 0.0
      %1072 = vmatprep.subr.mxu0 0.0
      %1073 = vmatpush1.msra.mxu0 0.0
      %1074 = vmatprep.subr.mxu0 0.0
      %1075 = vmatpush1.msra.mxu0 0.0
      %1076 = vmatprep.subr.mxu0 0.0
      %1077 = vmatpush1.msra.mxu0 0.0
      %1078 = vmatprep.subr.mxu0 0.0
      %1079 = vmatpush1.msra.mxu0 0.0
      %1080 = vmatprep.mubr.f32.mxu0 0.0
      %v1081 = vand.u32 %v878, 4294901760
      %1082 = vmatmul.mubr.f32.gmra.mrb[0].mxu0 %v1081
      %v1083 = vpop.f32.mrb[0].mxu0
      %v1084 = vadd.f32 %v963, %v1083
      %v1085 = vpop.f32.mrb[0].mxu0
      %1086 = vmatprep.mubr.f32.mxu0 0.0
      %v1087 = vand.u32 %v881, 4294901760
      %1088 = vmatmul.mubr.f32.gmra.mrb[0].mxu0 %v1087
      %v1089 = vpop.f32.mrb[0].mxu0
      %v1090 = vadd.f32 %v973, %v1089
      %v1091 = vpop.f32.mrb[0].mxu0
      %1092 = vdwg.mxu0
      %1093 = vmatprep.subr.mxu0 0.0
      %v1094 = vand.u32 %v271, 4294901760
      %v1095 = vsub.f32 %v271, %v1094
      %1096 = vmatpush1.msra.mxu0 %v1095
      %1097 = vmatprep.subr.mxu0 0.0
      %v1098 = vand.u32 %v272, 4294901760
      %v1099 = vsub.f32 %v272, %v1098
      %1100 = vmatpush1.msra.mxu0 %v1099
      %1101 = vmatprep.subr.mxu0 0.0
      %v1102 = vand.u32 %v273, 4294901760
      %v1103 = vsub.f32 %v273, %v1102
      %1104 = vmatpush1.msra.mxu0 %v1103
      %1105 = vmatprep.subr.mxu0 0.0
      %v1106 = vand.u32 %v274, 4294901760
      %v1107 = vsub.f32 %v274, %v1106
      %1108 = vmatpush1.msra.mxu0 %v1107
      %1109 = vmatprep.subr.mxu0 0.0
      %v1110 = vand.u32 %v275, 4294901760
      %v1111 = vsub.f32 %v275, %v1110
      %1112 = vmatpush1.msra.mxu0 %v1111
      %1113 = vmatprep.subr.mxu0 0.0
      %v1114 = vand.u32 %v276, 4294901760
      %v1115 = vsub.f32 %v276, %v1114
      %1116 = vmatpush1.msra.mxu0 %v1115
      %1117 = vmatprep.subr.mxu0 0.0
      %v1118 = vand.u32 %v277, 4294901760
      %v1119 = vsub.f32 %v277, %v1118
      %1120 = vmatpush1.msra.mxu0 %v1119
      %1121 = vmatprep.subr.mxu0 0.0
      %v1122 = vand.u32 %v278, 4294901760
      %v1123 = vsub.f32 %v278, %v1122
      %1124 = vmatpush1.msra.mxu0 %v1123
      %1125 = vmatprep.subr.mxu0 0.0
      %1126 = vmatpush1.msra.mxu0 0.0
      %1127 = vmatprep.subr.mxu0 0.0
      %1128 = vmatpush1.msra.mxu0 0.0
      %1129 = vmatprep.subr.mxu0 0.0
      %1130 = vmatpush1.msra.mxu0 0.0
      %1131 = vmatprep.subr.mxu0 0.0
      %1132 = vmatpush1.msra.mxu0 0.0
      %1133 = vmatprep.subr.mxu0 0.0
      %1134 = vmatpush1.msra.mxu0 0.0
      %1135 = vmatprep.subr.mxu0 0.0
      %1136 = vmatpush1.msra.mxu0 0.0
      %1137 = vmatprep.subr.mxu0 0.0
      %1138 = vmatpush1.msra.mxu0 0.0
      %1139 = vmatprep.subr.mxu0 0.0
      %1140 = vmatpush1.msra.mxu0 0.0
      %1141 = vmatprep.subr.mxu0 0.0
      %1142 = vmatpush1.msra.mxu0 0.0
      %1143 = vmatprep.subr.mxu0 0.0
      %1144 = vmatpush1.msra.mxu0 0.0
      %1145 = vmatprep.subr.mxu0 0.0
      %1146 = vmatpush1.msra.mxu0 0.0
      %1147 = vmatprep.subr.mxu0 0.0
      %1148 = vmatpush1.msra.mxu0 0.0
      %1149 = vmatprep.subr.mxu0 0.0
      %1150 = vmatpush1.msra.mxu0 0.0
      %1151 = vmatprep.subr.mxu0 0.0
      %1152 = vmatpush1.msra.mxu0 0.0
      %1153 = vmatprep.subr.mxu0 0.0
      %1154 = vmatpush1.msra.mxu0 0.0
      %1155 = vmatprep.subr.mxu0 0.0
      %1156 = vmatpush1.msra.mxu0 0.0
      %1157 = vmatprep.subr.mxu0 0.0
      %1158 = vmatpush1.msra.mxu0 0.0
      %1159 = vmatprep.subr.mxu0 0.0
      %1160 = vmatpush1.msra.mxu0 0.0
      %1161 = vmatprep.subr.mxu0 0.0
      %1162 = vmatpush1.msra.mxu0 0.0
      %1163 = vmatprep.subr.mxu0 0.0
      %1164 = vmatpush1.msra.mxu0 0.0
      %1165 = vmatprep.subr.mxu0 0.0
      %1166 = vmatpush1.msra.mxu0 0.0
      %1167 = vmatprep.subr.mxu0 0.0
      %1168 = vmatpush1.msra.mxu0 0.0
      %1169 = vmatprep.subr.mxu0 0.0
      %1170 = vmatpush1.msra.mxu0 0.0
      %1171 = vmatprep.subr.mxu0 0.0
      %1172 = vmatpush1.msra.mxu0 0.0
      %1173 = vmatprep.mubr.f32.mxu0 0.0
      %v1174 = vand.u32 %v878, 4294901760
      %v1175 = vsub.f32 %v878, %v1174
      %1176 = vmatmul.mubr.f32.gmra.mrb[0].mxu0 %v1175
      %v1177 = vpop.f32.mrb[0].mxu0
      %v1178 = vadd.f32 %v1084, %v1177
      %v1179 = vpop.f32.mrb[0].mxu0
      %1180 = vmatprep.mubr.f32.mxu0 0.0
      %v1181 = vand.u32 %v881, 4294901760
      %v1182 = vsub.f32 %v881, %v1181
      %1183 = vmatmul.mubr.f32.gmra.mrb[0].mxu0 %v1182
      %v1184 = vpop.f32.mrb[0].mxu0
      %v1185 = vadd.f32 %v1090, %v1184
      %v1186 = vpop.f32.mrb[0].mxu0
      %1187 = vdwg.mxu0
      %1188 = vmatprep.subr.mxu0 0.0
      %v1189 = vand.u32 %v271, 4294901760
      %1190 = vmatpush1.msra.mxu0 %v1189
      %1191 = vmatprep.subr.mxu0 0.0
      %v1192 = vand.u32 %v272, 4294901760
      %1193 = vmatpush1.msra.mxu0 %v1192
      %1194 = vmatprep.subr.mxu0 0.0
      %v1195 = vand.u32 %v273, 4294901760
      %1196 = vmatpush1.msra.mxu0 %v1195
      %1197 = vmatprep.subr.mxu0 0.0
      %v1198 = vand.u32 %v274, 4294901760
      %1199 = vmatpush1.msra.mxu0 %v1198
      %1200 = vmatprep.subr.mxu0 0.0
      %v1201 = vand.u32 %v275, 4294901760
      %1202 = vmatpush1.msra.mxu0 %v1201
      %1203 = vmatprep.subr.mxu0 0.0
      %v1204 = vand.u32 %v276, 4294901760
      %1205 = vmatpush1.msra.mxu0 %v1204
      %1206 = vmatprep.subr.mxu0 0.0
      %v1207 = vand.u32 %v277, 4294901760
      %1208 = vmatpush1.msra.mxu0 %v1207
      %1209 = vmatprep.subr.mxu0 0.0
      %v1210 = vand.u32 %v278, 4294901760
      %1211 = vmatpush1.msra.mxu0 %v1210
      %1212 = vmatprep.subr.mxu0 0.0
      %1213 = vmatpush1.msra.mxu0 0.0
      %1214 = vmatprep.subr.mxu0 0.0
      %1215 = vmatpush1.msra.mxu0 0.0
      %1216 = vmatprep.subr.mxu0 0.0
      %1217 = vmatpush1.msra.mxu0 0.0
      %1218 = vmatprep.subr.mxu0 0.0
      %1219 = vmatpush1.msra.mxu0 0.0
      %1220 = vmatprep.subr.mxu0 0.0
      %1221 = vmatpush1.msra.mxu0 0.0
      %1222 = vmatprep.subr.mxu0 0.0
      %1223 = vmatpush1.msra.mxu0 0.0
      %1224 = vmatprep.subr.mxu0 0.0
      %1225 = vmatpush1.msra.mxu0 0.0
      %1226 = vmatprep.subr.mxu0 0.0
      %1227 = vmatpush1.msra.mxu0 0.0
      %1228 = vmatprep.subr.mxu0 0.0
      %1229 = vmatpush1.msra.mxu0 0.0
      %1230 = vmatprep.subr.mxu0 0.0
      %1231 = vmatpush1.msra.mxu0 0.0
      %1232 = vmatprep.subr.mxu0 0.0
      %1233 = vmatpush1.msra.mxu0 0.0
      %1234 = vmatprep.subr.mxu0 0.0
      %1235 = vmatpush1.msra.mxu0 0.0
      %1236 = vmatprep.subr.mxu0 0.0
      %1237 = vmatpush1.msra.mxu0 0.0
      %1238 = vmatprep.subr.mxu0 0.0
      %1239 = vmatpush1.msra.mxu0 0.0
      %1240 = vmatprep.subr.mxu0 0.0
      %1241 = vmatpush1.msra.mxu0 0.0
      %1242 = vmatprep.subr.mxu0 0.0
      %1243 = vmatpush1.msra.mxu0 0.0
      %1244 = vmatprep.subr.mxu0 0.0
      %1245 = vmatpush1.msra.mxu0 0.0
      %1246 = vmatprep.subr.mxu0 0.0
      %1247 = vmatpush1.msra.mxu0 0.0
      %1248 = vmatprep.subr.mxu0 0.0
      %1249 = vmatpush1.msra.mxu0 0.0
      %1250 = vmatprep.subr.mxu0 0.0
      %1251 = vmatpush1.msra.mxu0 0.0
      %1252 = vmatprep.subr.mxu0 0.0
      %1253 = vmatpush1.msra.mxu0 0.0
      %1254 = vmatprep.subr.mxu0 0.0
      %1255 = vmatpush1.msra.mxu0 0.0
      %1256 = vmatprep.subr.mxu0 0.0
      %1257 = vmatpush1.msra.mxu0 0.0
      %1258 = vmatprep.subr.mxu0 0.0
      %1259 = vmatpush1.msra.mxu0 0.0
      %1260 = vmatprep.mubr.f32.mxu0 0.0
      %v1261 = vand.u32 %v878, 4294901760
      %v1262 = vsub.f32 %v878, %v1261
      %v1263 = vand.u32 %v1262, 4294901760
      %1264 = vmatmul.mubr.f32.gmra.mrb[0].mxu0 %v1263
      %v1265 = vpop.f32.mrb[0].mxu0
      %v1266 = vadd.f32 %v1178, %v1265
      %v1267 = vpop.f32.mrb[0].mxu0
      %1268 = vmatprep.mubr.f32.mxu0 0.0
      %v1269 = vand.u32 %v881, 4294901760
      %v1270 = vsub.f32 %v881, %v1269
      %v1271 = vand.u32 %v1270, 4294901760
      %1272 = vmatmul.mubr.f32.gmra.mrb[0].mxu0 %v1271
      %v1273 = vpop.f32.mrb[0].mxu0
      %v1274 = vadd.f32 %v1185, %v1273
      %v1275 = vpop.f32.mrb[0].mxu0
      %1276 = vdwg.mxu0
      %1277 = vmatprep.subr.mxu0 0.0
      %v1278 = vand.u32 %v271, 4294901760
      %v1279 = vsub.f32 %v271, %v1278
      %v1280 = vand.u32 %v1279, 4294901760
      %1281 = vmatpush1.msra.mxu0 %v1280
      %1282 = vmatprep.subr.mxu0 0.0
      %v1283 = vand.u32 %v272, 4294901760
      %v1284 = vsub.f32 %v272, %v1283
      %v1285 = vand.u32 %v1284, 4294901760
      %1286 = vmatpush1.msra.mxu0 %v1285
      %1287 = vmatprep.subr.mxu0 0.0
      %v1288 = vand.u32 %v273, 4294901760
      %v1289 = vsub.f32 %v273, %v1288
      %v1290 = vand.u32 %v1289, 4294901760
      %1291 = vmatpush1.msra.mxu0 %v1290
      %1292 = vmatprep.subr.mxu0 0.0
      %v1293 = vand.u32 %v274, 4294901760
      %v1294 = vsub.f32 %v274, %v1293
      %v1295 = vand.u32 %v1294, 4294901760
      %1296 = vmatpush1.msra.mxu0 %v1295
      %1297 = vmatprep.subr.mxu0 0.0
      %v1298 = vand.u32 %v275, 4294901760
      %v1299 = vsub.f32 %v275, %v1298
      %v1300 = vand.u32 %v1299, 4294901760
      %1301 = vmatpush1.msra.mxu0 %v1300
      %1302 = vmatprep.subr.mxu0 0.0
      %v1303 = vand.u32 %v276, 4294901760
      %v1304 = vsub.f32 %v276, %v1303
      %v1305 = vand.u32 %v1304, 4294901760
      %1306 = vmatpush1.msra.mxu0 %v1305
      %1307 = vmatprep.subr.mxu0 0.0
      %v1308 = vand.u32 %v277, 4294901760
      %v1309 = vsub.f32 %v277, %v1308
      %v1310 = vand.u32 %v1309, 4294901760
      %1311 = vmatpush1.msra.mxu0 %v1310
      %1312 = vmatprep.subr.mxu0 0.0
      %v1313 = vand.u32 %v278, 4294901760
      %v1314 = vsub.f32 %v278, %v1313
      %v1315 = vand.u32 %v1314, 4294901760
      %1316 = vmatpush1.msra.mxu0 %v1315
      %1317 = vmatprep.subr.mxu0 0.0
      %1318 = vmatpush1.msra.mxu0 0.0
      %1319 = vmatprep.subr.mxu0 0.0
      %1320 = vmatpush1.msra.mxu0 0.0
      %1321 = vmatprep.subr.mxu0 0.0
      %1322 = vmatpush1.msra.mxu0 0.0
      %1323 = vmatprep.subr.mxu0 0.0
      %1324 = vmatpush1.msra.mxu0 0.0
      %1325 = vmatprep.subr.mxu0 0.0
      %1326 = vmatpush1.msra.mxu0 0.0
      %1327 = vmatprep.subr.mxu0 0.0
      %1328 = vmatpush1.msra.mxu0 0.0
      %1329 = vmatprep.subr.mxu0 0.0
      %1330 = vmatpush1.msra.mxu0 0.0
      %1331 = vmatprep.subr.mxu0 0.0
      %1332 = vmatpush1.msra.mxu0 0.0
      %1333 = vmatprep.subr.mxu0 0.0
      %1334 = vmatpush1.msra.mxu0 0.0
      %1335 = vmatprep.subr.mxu0 0.0
      %1336 = vmatpush1.msra.mxu0 0.0
      %1337 = vmatprep.subr.mxu0 0.0
      %1338 = vmatpush1.msra.mxu0 0.0
      %1339 = vmatprep.subr.mxu0 0.0
      %1340 = vmatpush1.msra.mxu0 0.0
      %1341 = vmatprep.subr.mxu0 0.0
      %1342 = vmatpush1.msra.mxu0 0.0
      %1343 = vmatprep.subr.mxu0 0.0
      %1344 = vmatpush1.msra.mxu0 0.0
      %1345 = vmatprep.subr.mxu0 0.0
      %1346 = vmatpush1.msra.mxu0 0.0
      %1347 = vmatprep.subr.mxu0 0.0
      %1348 = vmatpush1.msra.mxu0 0.0
      %1349 = vmatprep.subr.mxu0 0.0
      %1350 = vmatpush1.msra.mxu0 0.0
      %1351 = vmatprep.subr.mxu0 0.0
      %1352 = vmatpush1.msra.mxu0 0.0
      %1353 = vmatprep.subr.mxu0 0.0
      %1354 = vmatpush1.msra.mxu0 0.0
      %1355 = vmatprep.subr.mxu0 0.0
      %1356 = vmatpush1.msra.mxu0 0.0
      %1357 = vmatprep.subr.mxu0 0.0
      %1358 = vmatpush1.msra.mxu0 0.0
      %1359 = vmatprep.subr.mxu0 0.0
      %1360 = vmatpush1.msra.mxu0 0.0
      %1361 = vmatprep.subr.mxu0 0.0
      %1362 = vmatpush1.msra.mxu0 0.0
      %1363 = vmatprep.subr.mxu0 0.0
      %1364 = vmatpush1.msra.mxu0 0.0
      %1365 = vmatprep.mubr.f32.mxu0 0.0
      %v1366 = vand.u32 %v878, 4294901760
      %1367 = vmatmul.mubr.f32.gmra.mrb[0].mxu0 %v1366
      %v1368 = vpop.f32.mrb[0].mxu0
      %v1369 = vadd.f32 %v1266, %v1368
      %v1370 = vpop.f32.mrb[0].mxu0
      %1371 = vmatprep.mubr.f32.mxu0 0.0
      %v1372 = vand.u32 %v881, 4294901760
      %1373 = vmatmul.mubr.f32.gmra.mrb[0].mxu0 %v1372
      %v1374 = vpop.f32.mrb[0].mxu0
      %v1375 = vadd.f32 %v1274, %v1374
      %v1376 = vpop.f32.mrb[0].mxu0
      %1377 = vdwg.mxu0
      %1378 = vmatprep.subr.mxu0 0.0
      %v1379 = vand.u32 %v271, 4294901760
      %1380 = vmatpush1.msra.mxu0 %v1379
      %1381 = vmatprep.subr.mxu0 0.0
      %v1382 = vand.u32 %v272, 4294901760
      %1383 = vmatpush1.msra.mxu0 %v1382
      %1384 = vmatprep.subr.mxu0 0.0
      %v1385 = vand.u32 %v273, 4294901760
      %1386 = vmatpush1.msra.mxu0 %v1385
      %1387 = vmatprep.subr.mxu0 0.0
      %v1388 = vand.u32 %v274, 4294901760
      %1389 = vmatpush1.msra.mxu0 %v1388
      %1390 = vmatprep.subr.mxu0 0.0
      %v1391 = vand.u32 %v275, 4294901760
      %1392 = vmatpush1.msra.mxu0 %v1391
      %1393 = vmatprep.subr.mxu0 0.0
      %v1394 = vand.u32 %v276, 4294901760
      %1395 = vmatpush1.msra.mxu0 %v1394
      %1396 = vmatprep.subr.mxu0 0.0
      %v1397 = vand.u32 %v277, 4294901760
      %1398 = vmatpush1.msra.mxu0 %v1397
      %1399 = vmatprep.subr.mxu0 0.0
      %v1400 = vand.u32 %v278, 4294901760
      %1401 = vmatpush1.msra.mxu0 %v1400
      %1402 = vmatprep.subr.mxu0 0.0
      %1403 = vmatpush1.msra.mxu0 0.0
      %1404 = vmatprep.subr.mxu0 0.0
      %1405 = vmatpush1.msra.mxu0 0.0
      %1406 = vmatprep.subr.mxu0 0.0
      %1407 = vmatpush1.msra.mxu0 0.0
      %1408 = vmatprep.subr.mxu0 0.0
      %1409 = vmatpush1.msra.mxu0 0.0
      %1410 = vmatprep.subr.mxu0 0.0
      %1411 = vmatpush1.msra.mxu0 0.0
      %1412 = vmatprep.subr.mxu0 0.0
      %1413 = vmatpush1.msra.mxu0 0.0
      %1414 = vmatprep.subr.mxu0 0.0
      %1415 = vmatpush1.msra.mxu0 0.0
      %1416 = vmatprep.subr.mxu0 0.0
      %1417 = vmatpush1.msra.mxu0 0.0
      %1418 = vmatprep.subr.mxu0 0.0
      %1419 = vmatpush1.msra.mxu0 0.0
      %1420 = vmatprep.subr.mxu0 0.0
      %1421 = vmatpush1.msra.mxu0 0.0
      %1422 = vmatprep.subr.mxu0 0.0
      %1423 = vmatpush1.msra.mxu0 0.0
      %1424 = vmatprep.subr.mxu0 0.0
      %1425 = vmatpush1.msra.mxu0 0.0
      %1426 = vmatprep.subr.mxu0 0.0
      %1427 = vmatpush1.msra.mxu0 0.0
      %1428 = vmatprep.subr.mxu0 0.0
      %1429 = vmatpush1.msra.mxu0 0.0
      %1430 = vmatprep.subr.mxu0 0.0
      %1431 = vmatpush1.msra.mxu0 0.0
      %1432 = vmatprep.subr.mxu0 0.0
      %1433 = vmatpush1.msra.mxu0 0.0
      %1434 = vmatprep.subr.mxu0 0.0
      %1435 = vmatpush1.msra.mxu0 0.0
      %1436 = vmatprep.subr.mxu0 0.0
      %1437 = vmatpush1.msra.mxu0 0.0
      %1438 = vmatprep.subr.mxu0 0.0
      %1439 = vmatpush1.msra.mxu0 0.0
      %1440 = vmatprep.subr.mxu0 0.0
      %1441 = vmatpush1.msra.mxu0 0.0
      %1442 = vmatprep.subr.mxu0 0.0
      %1443 = vmatpush1.msra.mxu0 0.0
      %1444 = vmatprep.subr.mxu0 0.0
      %1445 = vmatpush1.msra.mxu0 0.0
      %1446 = vmatprep.subr.mxu0 0.0
      %1447 = vmatpush1.msra.mxu0 0.0
      %1448 = vmatprep.subr.mxu0 0.0
      %1449 = vmatpush1.msra.mxu0 0.0
      %1450 = vmatprep.mubr.f32.mxu0 0.0
      %v1451 = vand.u32 %v878, 4294901760
      %1452 = vmatmul.mubr.f32.gmra.mrb[0].mxu0 %v1451
      %v1453 = vpop.f32.mrb[0].mxu0
      %v1454 = vadd.f32 %v1369, %v1453
      %v1455 = vpop.f32.mrb[0].mxu0
      %1456 = vmatprep.mubr.f32.mxu0 0.0
      %v1457 = vand.u32 %v881, 4294901760
      %1458 = vmatmul.mubr.f32.gmra.mrb[0].mxu0 %v1457
      %v1459 = vpop.f32.mrb[0].mxu0
      %v1460 = vadd.f32 %v1375, %v1459
      %v1461 = vpop.f32.mrb[0].mxu0
      %1462 = vdwg.mxu0
      %v1463 = vld [vmem:[%s253 + $0x2] sm:$0xff]
      %v1464 = vld [vmem:[%s253 + $0xa] sm:$0xff]
      %s1465 = scalar_lea.vmem %s1, 128
      %v1466 = vld [vmem:[%s1465] sm:$0xff]
      %v1467 = vld [vmem:[%s1465 + $0x8] sm:$0xff]
      %v1468 = vld [vmem:[%s1465 + $0x10] sm:$0xff]
      %v1469 = vld [vmem:[%s1465 + $0x18] sm:$0xff]
      %v1470 = vld [vmem:[%s1465 + $0x20] sm:$0xff]
      %v1471 = vld [vmem:[%s1465 + $0x28] sm:$0xff]
      %v1472 = vld [vmem:[%s1465 + $0x30] sm:$0xff]
      %v1473 = vld [vmem:[%s1465 + $0x38] sm:$0xff]
      %v1475 = vsel %vm290, %v1463, 0
      %v1478 = vsel %vm290, %v1464, 0
      %1480 = vmatprep.subr.mxu0 0.0
      %v1481 = vand.u32 %v1466, 4294901760
      %1482 = vmatpush1.msra.mxu0 %v1481
      %1483 = vmatprep.subr.mxu0 0.0
      %v1484 = vand.u32 %v1467, 4294901760
      %1485 = vmatpush1.msra.mxu0 %v1484
      %1486 = vmatprep.subr.mxu0 0.0
      %v1487 = vand.u32 %v1468, 4294901760
      %1488 = vmatpush1.msra.mxu0 %v1487
      %1489 = vmatprep.subr.mxu0 0.0
      %v1490 = vand.u32 %v1469, 4294901760
      %1491 = vmatpush1.msra.mxu0 %v1490
      %1492 = vmatprep.subr.mxu0 0.0
      %v1493 = vand.u32 %v1470, 4294901760
      %1494 = vmatpush1.msra.mxu0 %v1493
      %1495 = vmatprep.subr.mxu0 0.0
      %v1496 = vand.u32 %v1471, 4294901760
      %1497 = vmatpush1.msra.mxu0 %v1496
      %1498 = vmatprep.subr.mxu0 0.0
      %v1499 = vand.u32 %v1472, 4294901760
      %1500 = vmatpush1.msra.mxu0 %v1499
      %1501 = vmatprep.subr.mxu0 0.0
      %v1502 = vand.u32 %v1473, 4294901760
      %1503 = vmatpush1.msra.mxu0 %v1502
      %1504 = vmatprep.subr.mxu0 0.0
      %1505 = vmatpush1.msra.mxu0 0.0
      %1506 = vmatprep.subr.mxu0 0.0
      %1507 = vmatpush1.msra.mxu0 0.0
      %1508 = vmatprep.subr.mxu0 0.0
      %1509 = vmatpush1.msra.mxu0 0.0
      %1510 = vmatprep.subr.mxu0 0.0
      %1511 = vmatpush1.msra.mxu0 0.0
      %1512 = vmatprep.subr.mxu0 0.0
      %1513 = vmatpush1.msra.mxu0 0.0
      %1514 = vmatprep.subr.mxu0 0.0
      %1515 = vmatpush1.msra.mxu0 0.0
      %1516 = vmatprep.subr.mxu0 0.0
      %1517 = vmatpush1.msra.mxu0 0.0
      %1518 = vmatprep.subr.mxu0 0.0
      %1519 = vmatpush1.msra.mxu0 0.0
      %1520 = vmatprep.subr.mxu0 0.0
      %1521 = vmatpush1.msra.mxu0 0.0
      %1522 = vmatprep.subr.mxu0 0.0
      %1523 = vmatpush1.msra.mxu0 0.0
      %1524 = vmatprep.subr.mxu0 0.0
      %1525 = vmatpush1.msra.mxu0 0.0
      %1526 = vmatprep.subr.mxu0 0.0
      %1527 = vmatpush1.msra.mxu0 0.0
      %1528 = vmatprep.subr.mxu0 0.0
      %1529 = vmatpush1.msra.mxu0 0.0
      %1530 = vmatprep.subr.mxu0 0.0
      %1531 = vmatpush1.msra.mxu0 0.0
      %1532 = vmatprep.subr.mxu0 0.0
      %1533 = vmatpush1.msra.mxu0 0.0
      %1534 = vmatprep.subr.mxu0 0.0
      %1535 = vmatpush1.msra.mxu0 0.0
      %1536 = vmatprep.subr.mxu0 0.0
      %1537 = vmatpush1.msra.mxu0 0.0
      %1538 = vmatprep.subr.mxu0 0.0
      %1539 = vmatpush1.msra.mxu0 0.0
      %1540 = vmatprep.subr.mxu0 0.0
      %1541 = vmatpush1.msra.mxu0 0.0
      %1542 = vmatprep.subr.mxu0 0.0
      %1543 = vmatpush1.msra.mxu0 0.0
      %1544 = vmatprep.subr.mxu0 0.0
      %1545 = vmatpush1.msra.mxu0 0.0
      %1546 = vmatprep.subr.mxu0 0.0
      %1547 = vmatpush1.msra.mxu0 0.0
      %1548 = vmatprep.subr.mxu0 0.0
      %1549 = vmatpush1.msra.mxu0 0.0
      %1550 = vmatprep.subr.mxu0 0.0
      %1551 = vmatpush1.msra.mxu0 0.0
      %1552 = vmatprep.mubr.f32.mxu0 0.0
      %v1553 = vand.u32 %v1475, 4294901760
      %v1554 = vsub.f32 %v1475, %v1553
      %v1555 = vand.u32 %v1554, 4294901760
      %v1556 = vsub.f32 %v1554, %v1555
      %v1557 = vand.u32 %v1556, 4294901760
      %1558 = vmatmul.mubr.f32.gmra.mrb[0].mxu0 %v1557
      %v1559 = vpop.f32.mrb[0].mxu0
      %v1560 = vadd.f32 0.0, %v1559
      %v1561 = vpop.f32.mrb[0].mxu0
      %1562 = vmatprep.mubr.f32.mxu0 0.0
      %v1563 = vand.u32 %v1478, 4294901760
      %v1564 = vsub.f32 %v1478, %v1563
      %v1565 = vand.u32 %v1564, 4294901760
      %v1566 = vsub.f32 %v1564, %v1565
      %v1567 = vand.u32 %v1566, 4294901760
      %1568 = vmatmul.mubr.f32.gmra.mrb[0].mxu0 %v1567
      %v1569 = vpop.f32.mrb[0].mxu0
      %v1570 = vadd.f32 0.0, %v1569
      %v1571 = vpop.f32.mrb[0].mxu0
      %1572 = vdwg.mxu0
      %1573 = vmatprep.subr.mxu0 0.0
      %v1574 = vand.u32 %v1466, 4294901760
      %v1575 = vsub.f32 %v1466, %v1574
      %v1576 = vand.u32 %v1575, 4294901760
      %v1577 = vsub.f32 %v1575, %v1576
      %v1578 = vand.u32 %v1577, 4294901760
      %1579 = vmatpush1.msra.mxu0 %v1578
      %1580 = vmatprep.subr.mxu0 0.0
      %v1581 = vand.u32 %v1467, 4294901760
      %v1582 = vsub.f32 %v1467, %v1581
      %v1583 = vand.u32 %v1582, 4294901760
      %v1584 = vsub.f32 %v1582, %v1583
      %v1585 = vand.u32 %v1584, 4294901760
      %1586 = vmatpush1.msra.mxu0 %v1585
      %1587 = vmatprep.subr.mxu0 0.0
      %v1588 = vand.u32 %v1468, 4294901760
      %v1589 = vsub.f32 %v1468, %v1588
      %v1590 = vand.u32 %v1589, 4294901760
      %v1591 = vsub.f32 %v1589, %v1590
      %v1592 = vand.u32 %v1591, 4294901760
      %1593 = vmatpush1.msra.mxu0 %v1592
      %1594 = vmatprep.subr.mxu0 0.0
      %v1595 = vand.u32 %v1469, 4294901760
      %v1596 = vsub.f32 %v1469, %v1595
      %v1597 = vand.u32 %v1596, 4294901760
      %v1598 = vsub.f32 %v1596, %v1597
      %v1599 = vand.u32 %v1598, 4294901760
      %1600 = vmatpush1.msra.mxu0 %v1599
      %1601 = vmatprep.subr.mxu0 0.0
      %v1602 = vand.u32 %v1470, 4294901760
      %v1603 = vsub.f32 %v1470, %v1602
      %v1604 = vand.u32 %v1603, 4294901760
      %v1605 = vsub.f32 %v1603, %v1604
      %v1606 = vand.u32 %v1605, 4294901760
      %1607 = vmatpush1.msra.mxu0 %v1606
      %1608 = vmatprep.subr.mxu0 0.0
      %v1609 = vand.u32 %v1471, 4294901760
      %v1610 = vsub.f32 %v1471, %v1609
      %v1611 = vand.u32 %v1610, 4294901760
      %v1612 = vsub.f32 %v1610, %v1611
      %v1613 = vand.u32 %v1612, 4294901760
      %1614 = vmatpush1.msra.mxu0 %v1613
      %1615 = vmatprep.subr.mxu0 0.0
      %v1616 = vand.u32 %v1472, 4294901760
      %v1617 = vsub.f32 %v1472, %v1616
      %v1618 = vand.u32 %v1617, 4294901760
      %v1619 = vsub.f32 %v1617, %v1618
      %v1620 = vand.u32 %v1619, 4294901760
      %1621 = vmatpush1.msra.mxu0 %v1620
      %1622 = vmatprep.subr.mxu0 0.0
      %v1623 = vand.u32 %v1473, 4294901760
      %v1624 = vsub.f32 %v1473, %v1623
      %v1625 = vand.u32 %v1624, 4294901760
      %v1626 = vsub.f32 %v1624, %v1625
      %v1627 = vand.u32 %v1626, 4294901760
      %1628 = vmatpush1.msra.mxu0 %v1627
      %1629 = vmatprep.subr.mxu0 0.0
      %1630 = vmatpush1.msra.mxu0 0.0
      %1631 = vmatprep.subr.mxu0 0.0
      %1632 = vmatpush1.msra.mxu0 0.0
      %1633 = vmatprep.subr.mxu0 0.0
      %1634 = vmatpush1.msra.mxu0 0.0
      %1635 = vmatprep.subr.mxu0 0.0
      %1636 = vmatpush1.msra.mxu0 0.0
      %1637 = vmatprep.subr.mxu0 0.0
      %1638 = vmatpush1.msra.mxu0 0.0
      %1639 = vmatprep.subr.mxu0 0.0
      %1640 = vmatpush1.msra.mxu0 0.0
      %1641 = vmatprep.subr.mxu0 0.0
      %1642 = vmatpush1.msra.mxu0 0.0
      %1643 = vmatprep.subr.mxu0 0.0
      %1644 = vmatpush1.msra.mxu0 0.0
      %1645 = vmatprep.subr.mxu0 0.0
      %1646 = vmatpush1.msra.mxu0 0.0
      %1647 = vmatprep.subr.mxu0 0.0
      %1648 = vmatpush1.msra.mxu0 0.0
      %1649 = vmatprep.subr.mxu0 0.0
      %1650 = vmatpush1.msra.mxu0 0.0
      %1651 = vmatprep.subr.mxu0 0.0
      %1652 = vmatpush1.msra.mxu0 0.0
      %1653 = vmatprep.subr.mxu0 0.0
      %1654 = vmatpush1.msra.mxu0 0.0
      %1655 = vmatprep.subr.mxu0 0.0
      %1656 = vmatpush1.msra.mxu0 0.0
      %1657 = vmatprep.subr.mxu0 0.0
      %1658 = vmatpush1.msra.mxu0 0.0
      %1659 = vmatprep.subr.mxu0 0.0
      %1660 = vmatpush1.msra.mxu0 0.0
      %1661 = vmatprep.subr.mxu0 0.0
      %1662 = vmatpush1.msra.mxu0 0.0
      %1663 = vmatprep.subr.mxu0 0.0
      %1664 = vmatpush1.msra.mxu0 0.0
      %1665 = vmatprep.subr.mxu0 0.0
      %1666 = vmatpush1.msra.mxu0 0.0
      %1667 = vmatprep.subr.mxu0 0.0
      %1668 = vmatpush1.msra.mxu0 0.0
      %1669 = vmatprep.subr.mxu0 0.0
      %1670 = vmatpush1.msra.mxu0 0.0
      %1671 = vmatprep.subr.mxu0 0.0
      %1672 = vmatpush1.msra.mxu0 0.0
      %1673 = vmatprep.subr.mxu0 0.0
      %1674 = vmatpush1.msra.mxu0 0.0
      %1675 = vmatprep.subr.mxu0 0.0
      %1676 = vmatpush1.msra.mxu0 0.0
      %1677 = vmatprep.mubr.f32.mxu0 0.0
      %v1678 = vand.u32 %v1475, 4294901760
      %1679 = vmatmul.mubr.f32.gmra.mrb[0].mxu0 %v1678
      %v1680 = vpop.f32.mrb[0].mxu0
      %v1681 = vadd.f32 %v1560, %v1680
      %v1682 = vpop.f32.mrb[0].mxu0
      %1683 = vmatprep.mubr.f32.mxu0 0.0
      %v1684 = vand.u32 %v1478, 4294901760
      %1685 = vmatmul.mubr.f32.gmra.mrb[0].mxu0 %v1684
      %v1686 = vpop.f32.mrb[0].mxu0
      %v1687 = vadd.f32 %v1570, %v1686
      %v1688 = vpop.f32.mrb[0].mxu0
      %1689 = vdwg.mxu0
      %1690 = vmatprep.subr.mxu0 0.0
      %v1691 = vand.u32 %v1466, 4294901760
      %v1692 = vsub.f32 %v1466, %v1691
      %1693 = vmatpush1.msra.mxu0 %v1692
      %1694 = vmatprep.subr.mxu0 0.0
      %v1695 = vand.u32 %v1467, 4294901760
      %v1696 = vsub.f32 %v1467, %v1695
      %1697 = vmatpush1.msra.mxu0 %v1696
      %1698 = vmatprep.subr.mxu0 0.0
      %v1699 = vand.u32 %v1468, 4294901760
      %v1700 = vsub.f32 %v1468, %v1699
      %1701 = vmatpush1.msra.mxu0 %v1700
      %1702 = vmatprep.subr.mxu0 0.0
      %v1703 = vand.u32 %v1469, 4294901760
      %v1704 = vsub.f32 %v1469, %v1703
      %1705 = vmatpush1.msra.mxu0 %v1704
      %1706 = vmatprep.subr.mxu0 0.0
      %v1707 = vand.u32 %v1470, 4294901760
      %v1708 = vsub.f32 %v1470, %v1707
      %1709 = vmatpush1.msra.mxu0 %v1708
      %1710 = vmatprep.subr.mxu0 0.0
      %v1711 = vand.u32 %v1471, 4294901760
      %v1712 = vsub.f32 %v1471, %v1711
      %1713 = vmatpush1.msra.mxu0 %v1712
      %1714 = vmatprep.subr.mxu0 0.0
      %v1715 = vand.u32 %v1472, 4294901760
      %v1716 = vsub.f32 %v1472, %v1715
      %1717 = vmatpush1.msra.mxu0 %v1716
      %1718 = vmatprep.subr.mxu0 0.0
      %v1719 = vand.u32 %v1473, 4294901760
      %v1720 = vsub.f32 %v1473, %v1719
      %1721 = vmatpush1.msra.mxu0 %v1720
      %1722 = vmatprep.subr.mxu0 0.0
      %1723 = vmatpush1.msra.mxu0 0.0
      %1724 = vmatprep.subr.mxu0 0.0
      %1725 = vmatpush1.msra.mxu0 0.0
      %1726 = vmatprep.subr.mxu0 0.0
      %1727 = vmatpush1.msra.mxu0 0.0
      %1728 = vmatprep.subr.mxu0 0.0
      %1729 = vmatpush1.msra.mxu0 0.0
      %1730 = vmatprep.subr.mxu0 0.0
      %1731 = vmatpush1.msra.mxu0 0.0
      %1732 = vmatprep.subr.mxu0 0.0
      %1733 = vmatpush1.msra.mxu0 0.0
      %1734 = vmatprep.subr.mxu0 0.0
      %1735 = vmatpush1.msra.mxu0 0.0
      %1736 = vmatprep.subr.mxu0 0.0
      %1737 = vmatpush1.msra.mxu0 0.0
      %1738 = vmatprep.subr.mxu0 0.0
      %1739 = vmatpush1.msra.mxu0 0.0
      %1740 = vmatprep.subr.mxu0 0.0
      %1741 = vmatpush1.msra.mxu0 0.0
      %1742 = vmatprep.subr.mxu0 0.0
      %1743 = vmatpush1.msra.mxu0 0.0
      %1744 = vmatprep.subr.mxu0 0.0
      %1745 = vmatpush1.msra.mxu0 0.0
      %1746 = vmatprep.subr.mxu0 0.0
      %1747 = vmatpush1.msra.mxu0 0.0
      %1748 = vmatprep.subr.mxu0 0.0
      %1749 = vmatpush1.msra.mxu0 0.0
      %1750 = vmatprep.subr.mxu0 0.0
      %1751 = vmatpush1.msra.mxu0 0.0
      %1752 = vmatprep.subr.mxu0 0.0
      %1753 = vmatpush1.msra.mxu0 0.0
      %1754 = vmatprep.subr.mxu0 0.0
      %1755 = vmatpush1.msra.mxu0 0.0
      %1756 = vmatprep.subr.mxu0 0.0
      %1757 = vmatpush1.msra.mxu0 0.0
      %1758 = vmatprep.subr.mxu0 0.0
      %1759 = vmatpush1.msra.mxu0 0.0
      %1760 = vmatprep.subr.mxu0 0.0
      %1761 = vmatpush1.msra.mxu0 0.0
      %1762 = vmatprep.subr.mxu0 0.0
      %1763 = vmatpush1.msra.mxu0 0.0
      %1764 = vmatprep.subr.mxu0 0.0
      %1765 = vmatpush1.msra.mxu0 0.0
      %1766 = vmatprep.subr.mxu0 0.0
      %1767 = vmatpush1.msra.mxu0 0.0
      %1768 = vmatprep.subr.mxu0 0.0
      %1769 = vmatpush1.msra.mxu0 0.0
      %1770 = vmatprep.mubr.f32.mxu0 0.0
      %v1771 = vand.u32 %v1475, 4294901760
      %v1772 = vsub.f32 %v1475, %v1771
      %1773 = vmatmul.mubr.f32.gmra.mrb[0].mxu0 %v1772
      %v1774 = vpop.f32.mrb[0].mxu0
      %v1775 = vadd.f32 %v1681, %v1774
      %v1776 = vpop.f32.mrb[0].mxu0
      %1777 = vmatprep.mubr.f32.mxu0 0.0
      %v1778 = vand.u32 %v1478, 4294901760
      %v1779 = vsub.f32 %v1478, %v1778
      %1780 = vmatmul.mubr.f32.gmra.mrb[0].mxu0 %v1779
      %v1781 = vpop.f32.mrb[0].mxu0
      %v1782 = vadd.f32 %v1687, %v1781
      %v1783 = vpop.f32.mrb[0].mxu0
      %1784 = vdwg.mxu0
      %1785 = vmatprep.subr.mxu0 0.0
      %v1786 = vand.u32 %v1466, 4294901760
      %1787 = vmatpush1.msra.mxu0 %v1786
      %1788 = vmatprep.subr.mxu0 0.0
      %v1789 = vand.u32 %v1467, 4294901760
      %1790 = vmatpush1.msra.mxu0 %v1789
      %1791 = vmatprep.subr.mxu0 0.0
      %v1792 = vand.u32 %v1468, 4294901760
      %1793 = vmatpush1.msra.mxu0 %v1792
      %1794 = vmatprep.subr.mxu0 0.0
      %v1795 = vand.u32 %v1469, 4294901760
      %1796 = vmatpush1.msra.mxu0 %v1795
      %1797 = vmatprep.subr.mxu0 0.0
      %v1798 = vand.u32 %v1470, 4294901760
      %1799 = vmatpush1.msra.mxu0 %v1798
      %1800 = vmatprep.subr.mxu0 0.0
      %v1801 = vand.u32 %v1471, 4294901760
      %1802 = vmatpush1.msra.mxu0 %v1801
      %1803 = vmatprep.subr.mxu0 0.0
      %v1804 = vand.u32 %v1472, 4294901760
      %1805 = vmatpush1.msra.mxu0 %v1804
      %1806 = vmatprep.subr.mxu0 0.0
      %v1807 = vand.u32 %v1473, 4294901760
      %1808 = vmatpush1.msra.mxu0 %v1807
      %1809 = vmatprep.subr.mxu0 0.0
      %1810 = vmatpush1.msra.mxu0 0.0
      %1811 = vmatprep.subr.mxu0 0.0
      %1812 = vmatpush1.msra.mxu0 0.0
      %1813 = vmatprep.subr.mxu0 0.0
      %1814 = vmatpush1.msra.mxu0 0.0
      %1815 = vmatprep.subr.mxu0 0.0
      %1816 = vmatpush1.msra.mxu0 0.0
      %1817 = vmatprep.subr.mxu0 0.0
      %1818 = vmatpush1.msra.mxu0 0.0
      %1819 = vmatprep.subr.mxu0 0.0
      %1820 = vmatpush1.msra.mxu0 0.0
      %1821 = vmatprep.subr.mxu0 0.0
      %1822 = vmatpush1.msra.mxu0 0.0
      %1823 = vmatprep.subr.mxu0 0.0
      %1824 = vmatpush1.msra.mxu0 0.0
      %1825 = vmatprep.subr.mxu0 0.0
      %1826 = vmatpush1.msra.mxu0 0.0
      %1827 = vmatprep.subr.mxu0 0.0
      %1828 = vmatpush1.msra.mxu0 0.0
      %1829 = vmatprep.subr.mxu0 0.0
      %1830 = vmatpush1.msra.mxu0 0.0
      %1831 = vmatprep.subr.mxu0 0.0
      %1832 = vmatpush1.msra.mxu0 0.0
      %1833 = vmatprep.subr.mxu0 0.0
      %1834 = vmatpush1.msra.mxu0 0.0
      %1835 = vmatprep.subr.mxu0 0.0
      %1836 = vmatpush1.msra.mxu0 0.0
      %1837 = vmatprep.subr.mxu0 0.0
      %1838 = vmatpush1.msra.mxu0 0.0
      %1839 = vmatprep.subr.mxu0 0.0
      %1840 = vmatpush1.msra.mxu0 0.0
      %1841 = vmatprep.subr.mxu0 0.0
      %1842 = vmatpush1.msra.mxu0 0.0
      %1843 = vmatprep.subr.mxu0 0.0
      %1844 = vmatpush1.msra.mxu0 0.0
      %1845 = vmatprep.subr.mxu0 0.0
      %1846 = vmatpush1.msra.mxu0 0.0
      %1847 = vmatprep.subr.mxu0 0.0
      %1848 = vmatpush1.msra.mxu0 0.0
      %1849 = vmatprep.subr.mxu0 0.0
      %1850 = vmatpush1.msra.mxu0 0.0
      %1851 = vmatprep.subr.mxu0 0.0
      %1852 = vmatpush1.msra.mxu0 0.0
      %1853 = vmatprep.subr.mxu0 0.0
      %1854 = vmatpush1.msra.mxu0 0.0
      %1855 = vmatprep.subr.mxu0 0.0
      %1856 = vmatpush1.msra.mxu0 0.0
      %1857 = vmatprep.mubr.f32.mxu0 0.0
      %v1858 = vand.u32 %v1475, 4294901760
      %v1859 = vsub.f32 %v1475, %v1858
      %v1860 = vand.u32 %v1859, 4294901760
      %1861 = vmatmul.mubr.f32.gmra.mrb[0].mxu0 %v1860
      %v1862 = vpop.f32.mrb[0].mxu0
      %v1863 = vadd.f32 %v1775, %v1862
      %v1864 = vpop.f32.mrb[0].mxu0
      %1865 = vmatprep.mubr.f32.mxu0 0.0
      %v1866 = vand.u32 %v1478, 4294901760
      %v1867 = vsub.f32 %v1478, %v1866
      %v1868 = vand.u32 %v1867, 4294901760
      %1869 = vmatmul.mubr.f32.gmra.mrb[0].mxu0 %v1868
      %v1870 = vpop.f32.mrb[0].mxu0
      %v1871 = vadd.f32 %v1782, %v1870
      %v1872 = vpop.f32.mrb[0].mxu0
      %1873 = vdwg.mxu0
      %1874 = vmatprep.subr.mxu0 0.0
      %v1875 = vand.u32 %v1466, 4294901760
      %v1876 = vsub.f32 %v1466, %v1875
      %v1877 = vand.u32 %v1876, 4294901760
      %1878 = vmatpush1.msra.mxu0 %v1877
      %1879 = vmatprep.subr.mxu0 0.0
      %v1880 = vand.u32 %v1467, 4294901760
      %v1881 = vsub.f32 %v1467, %v1880
      %v1882 = vand.u32 %v1881, 4294901760
      %1883 = vmatpush1.msra.mxu0 %v1882
      %1884 = vmatprep.subr.mxu0 0.0
      %v1885 = vand.u32 %v1468, 4294901760
      %v1886 = vsub.f32 %v1468, %v1885
      %v1887 = vand.u32 %v1886, 4294901760
      %1888 = vmatpush1.msra.mxu0 %v1887
      %1889 = vmatprep.subr.mxu0 0.0
      %v1890 = vand.u32 %v1469, 4294901760
      %v1891 = vsub.f32 %v1469, %v1890
      %v1892 = vand.u32 %v1891, 4294901760
      %1893 = vmatpush1.msra.mxu0 %v1892
      %1894 = vmatprep.subr.mxu0 0.0
      %v1895 = vand.u32 %v1470, 4294901760
      %v1896 = vsub.f32 %v1470, %v1895
      %v1897 = vand.u32 %v1896, 4294901760
      %1898 = vmatpush1.msra.mxu0 %v1897
      %1899 = vmatprep.subr.mxu0 0.0
      %v1900 = vand.u32 %v1471, 4294901760
      %v1901 = vsub.f32 %v1471, %v1900
      %v1902 = vand.u32 %v1901, 4294901760
      %1903 = vmatpush1.msra.mxu0 %v1902
      %1904 = vmatprep.subr.mxu0 0.0
      %v1905 = vand.u32 %v1472, 4294901760
      %v1906 = vsub.f32 %v1472, %v1905
      %v1907 = vand.u32 %v1906, 4294901760
      %1908 = vmatpush1.msra.mxu0 %v1907
      %1909 = vmatprep.subr.mxu0 0.0
      %v1910 = vand.u32 %v1473, 4294901760
      %v1911 = vsub.f32 %v1473, %v1910
      %v1912 = vand.u32 %v1911, 4294901760
      %1913 = vmatpush1.msra.mxu0 %v1912
      %1914 = vmatprep.subr.mxu0 0.0
      %1915 = vmatpush1.msra.mxu0 0.0
      %1916 = vmatprep.subr.mxu0 0.0
      %1917 = vmatpush1.msra.mxu0 0.0
      %1918 = vmatprep.subr.mxu0 0.0
      %1919 = vmatpush1.msra.mxu0 0.0
      %1920 = vmatprep.subr.mxu0 0.0
      %1921 = vmatpush1.msra.mxu0 0.0
      %1922 = vmatprep.subr.mxu0 0.0
      %1923 = vmatpush1.msra.mxu0 0.0
      %1924 = vmatprep.subr.mxu0 0.0
      %1925 = vmatpush1.msra.mxu0 0.0
      %1926 = vmatprep.subr.mxu0 0.0
      %1927 = vmatpush1.msra.mxu0 0.0
      %1928 = vmatprep.subr.mxu0 0.0
      %1929 = vmatpush1.msra.mxu0 0.0
      %1930 = vmatprep.subr.mxu0 0.0
      %1931 = vmatpush1.msra.mxu0 0.0
      %1932 = vmatprep.subr.mxu0 0.0
      %1933 = vmatpush1.msra.mxu0 0.0
      %1934 = vmatprep.subr.mxu0 0.0
      %1935 = vmatpush1.msra.mxu0 0.0
      %1936 = vmatprep.subr.mxu0 0.0
      %1937 = vmatpush1.msra.mxu0 0.0
      %1938 = vmatprep.subr.mxu0 0.0
      %1939 = vmatpush1.msra.mxu0 0.0
      %1940 = vmatprep.subr.mxu0 0.0
      %1941 = vmatpush1.msra.mxu0 0.0
      %1942 = vmatprep.subr.mxu0 0.0
      %1943 = vmatpush1.msra.mxu0 0.0
      %1944 = vmatprep.subr.mxu0 0.0
      %1945 = vmatpush1.msra.mxu0 0.0
      %1946 = vmatprep.subr.mxu0 0.0
      %1947 = vmatpush1.msra.mxu0 0.0
      %1948 = vmatprep.subr.mxu0 0.0
      %1949 = vmatpush1.msra.mxu0 0.0
      %1950 = vmatprep.subr.mxu0 0.0
      %1951 = vmatpush1.msra.mxu0 0.0
      %1952 = vmatprep.subr.mxu0 0.0
      %1953 = vmatpush1.msra.mxu0 0.0
      %1954 = vmatprep.subr.mxu0 0.0
      %1955 = vmatpush1.msra.mxu0 0.0
      %1956 = vmatprep.subr.mxu0 0.0
      %1957 = vmatpush1.msra.mxu0 0.0
      %1958 = vmatprep.subr.mxu0 0.0
      %1959 = vmatpush1.msra.mxu0 0.0
      %1960 = vmatprep.subr.mxu0 0.0
      %1961 = vmatpush1.msra.mxu0 0.0
      %1962 = vmatprep.mubr.f32.mxu0 0.0
      %v1963 = vand.u32 %v1475, 4294901760
      %1964 = vmatmul.mubr.f32.gmra.mrb[0].mxu0 %v1963
      %v1965 = vpop.f32.mrb[0].mxu0
      %v1966 = vadd.f32 %v1863, %v1965
      %v1967 = vpop.f32.mrb[0].mxu0
      %1968 = vmatprep.mubr.f32.mxu0 0.0
      %v1969 = vand.u32 %v1478, 4294901760
      %1970 = vmatmul.mubr.f32.gmra.mrb[0].mxu0 %v1969
      %v1971 = vpop.f32.mrb[0].mxu0
      %v1972 = vadd.f32 %v1871, %v1971
      %v1973 = vpop.f32.mrb[0].mxu0
      %1974 = vdwg.mxu0
      %1975 = vmatprep.subr.mxu0 0.0
      %v1976 = vand.u32 %v1466, 4294901760
      %1977 = vmatpush1.msra.mxu0 %v1976
      %1978 = vmatprep.subr.mxu0 0.0
      %v1979 = vand.u32 %v1467, 4294901760
      %1980 = vmatpush1.msra.mxu0 %v1979
      %1981 = vmatprep.subr.mxu0 0.0
      %v1982 = vand.u32 %v1468, 4294901760
      %1983 = vmatpush1.msra.mxu0 %v1982
      %1984 = vmatprep.subr.mxu0 0.0
      %v1985 = vand.u32 %v1469, 4294901760
      %1986 = vmatpush1.msra.mxu0 %v1985
      %1987 = vmatprep.subr.mxu0 0.0
      %v1988 = vand.u32 %v1470, 4294901760
      %1989 = vmatpush1.msra.mxu0 %v1988
      %1990 = vmatprep.subr.mxu0 0.0
      %v1991 = vand.u32 %v1471, 4294901760
      %1992 = vmatpush1.msra.mxu0 %v1991
      %1993 = vmatprep.subr.mxu0 0.0
      %v1994 = vand.u32 %v1472, 4294901760
      %1995 = vmatpush1.msra.mxu0 %v1994
      %1996 = vmatprep.subr.mxu0 0.0
      %v1997 = vand.u32 %v1473, 4294901760
      %1998 = vmatpush1.msra.mxu0 %v1997
      %1999 = vmatprep.subr.mxu0 0.0
      %2000 = vmatpush1.msra.mxu0 0.0
      %2001 = vmatprep.subr.mxu0 0.0
      %2002 = vmatpush1.msra.mxu0 0.0
      %2003 = vmatprep.subr.mxu0 0.0
      %2004 = vmatpush1.msra.mxu0 0.0
      %2005 = vmatprep.subr.mxu0 0.0
      %2006 = vmatpush1.msra.mxu0 0.0
      %2007 = vmatprep.subr.mxu0 0.0
      %2008 = vmatpush1.msra.mxu0 0.0
      %2009 = vmatprep.subr.mxu0 0.0
      %2010 = vmatpush1.msra.mxu0 0.0
      %2011 = vmatprep.subr.mxu0 0.0
      %2012 = vmatpush1.msra.mxu0 0.0
      %2013 = vmatprep.subr.mxu0 0.0
      %2014 = vmatpush1.msra.mxu0 0.0
      %2015 = vmatprep.subr.mxu0 0.0
      %2016 = vmatpush1.msra.mxu0 0.0
      %2017 = vmatprep.subr.mxu0 0.0
      %2018 = vmatpush1.msra.mxu0 0.0
      %2019 = vmatprep.subr.mxu0 0.0
      %2020 = vmatpush1.msra.mxu0 0.0
      %2021 = vmatprep.subr.mxu0 0.0
      %2022 = vmatpush1.msra.mxu0 0.0
      %2023 = vmatprep.subr.mxu0 0.0
      %2024 = vmatpush1.msra.mxu0 0.0
      %2025 = vmatprep.subr.mxu0 0.0
      %2026 = vmatpush1.msra.mxu0 0.0
      %2027 = vmatprep.subr.mxu0 0.0
      %2028 = vmatpush1.msra.mxu0 0.0
      %2029 = vmatprep.subr.mxu0 0.0
      %2030 = vmatpush1.msra.mxu0 0.0
      %2031 = vmatprep.subr.mxu0 0.0
      %2032 = vmatpush1.msra.mxu0 0.0
      %2033 = vmatprep.subr.mxu0 0.0
      %2034 = vmatpush1.msra.mxu0 0.0
      %2035 = vmatprep.subr.mxu0 0.0
      %2036 = vmatpush1.msra.mxu0 0.0
      %2037 = vmatprep.subr.mxu0 0.0
      %2038 = vmatpush1.msra.mxu0 0.0
      %2039 = vmatprep.subr.mxu0 0.0
      %2040 = vmatpush1.msra.mxu0 0.0
      %2041 = vmatprep.subr.mxu0 0.0
      %2042 = vmatpush1.msra.mxu0 0.0
      %2043 = vmatprep.subr.mxu0 0.0
      %2044 = vmatpush1.msra.mxu0 0.0
      %2045 = vmatprep.subr.mxu0 0.0
      %2046 = vmatpush1.msra.mxu0 0.0
      %2047 = vmatprep.mubr.f32.mxu0 0.0
      %v2048 = vand.u32 %v1475, 4294901760
      %2049 = vmatmul.mubr.f32.gmra.mrb[0].mxu0 %v2048
      %v2050 = vpop.f32.mrb[0].mxu0
      %v2051 = vadd.f32 %v1966, %v2050
      %v2052 = vpop.f32.mrb[0].mxu0
      %2053 = vmatprep.mubr.f32.mxu0 0.0
      %v2054 = vand.u32 %v1478, 4294901760
      %2055 = vmatmul.mubr.f32.gmra.mrb[0].mxu0 %v2054
      %v2056 = vpop.f32.mrb[0].mxu0
      %v2057 = vadd.f32 %v1972, %v2056
      %v2058 = vpop.f32.mrb[0].mxu0
      %2059 = vdwg.mxu0
      %v2060 = vadd.f32 %v1454, %v2051
      %v2061 = vadd.f32 %v1460, %v2057
      %v2062 = vld [vmem:[%s2] sm:$0x1]
      %v2064 = vlaneseq
      %v2065 = vshrl.u32 %v2064, 7
      %v2066 = vsub.s32 0, %v2065
      %v2067 = vrot.slane %v2062, %v2066
      %v2069 = vadd.f32 %v2060, %v2067
      %v2070 = vadd.f32 %v2061, %v2067
      %v2071 = vmax.f32 %v2069, 0.0
      %v2072 = vmax.f32 %v2070, 0.0
      %2073 = vst [vmem:[#allocation2 + $0x1] sm:$0xff] %v2071
      %2074 = vst [vmem:[#allocation2 + $0x9] sm:$0xff] %v2072
      %v2075 = vld [vmem:[#allocation2] sm:$0xff]
      %v2076 = vld [vmem:[#allocation2 + $0x8] sm:$0xff]
      %v2077 = vld [vmem:[%s3] sm:$0xff]
      %v2078 = vld [vmem:[%s3 + $0x8] sm:$0xff]
      %v2079 = vld [vmem:[%s3 + $0x10] sm:$0xff]
      %v2080 = vld [vmem:[%s3 + $0x18] sm:$0xff]
      %v2081 = vld [vmem:[%s3 + $0x20] sm:$0xff]
      %v2082 = vld [vmem:[%s3 + $0x28] sm:$0xff]
      %v2083 = vld [vmem:[%s3 + $0x30] sm:$0xff]
      %v2084 = vld [vmem:[%s3 + $0x38] sm:$0xff]
      %v2085 = vld [vmem:[%s3 + $0x40] sm:$0xff]
      %v2086 = vld [vmem:[%s3 + $0x48] sm:$0xff]
      %v2087 = vld [vmem:[%s3 + $0x50] sm:$0xff]
      %v2088 = vld [vmem:[%s3 + $0x58] sm:$0xff]
      %v2089 = vld [vmem:[%s3 + $0x60] sm:$0xff]
      %v2090 = vld [vmem:[%s3 + $0x68] sm:$0xff]
      %v2091 = vld [vmem:[%s3 + $0x70] sm:$0xff]
      %v2092 = vld [vmem:[%s3 + $0x78] sm:$0xff]
      %v2093 = vld [vmem:[#allocation2 + $0x1] sm:$0xff]
      %v2094 = vld [vmem:[#allocation2 + $0x9] sm:$0xff]
      %s2095 = scalar_lea.vmem %s3, 128
      %v2096 = vld [vmem:[%s2095] sm:$0xff]
      %v2097 = vld [vmem:[%s2095 + $0x8] sm:$0xff]
      %v2098 = vld [vmem:[%s2095 + $0x10] sm:$0xff]
      %v2099 = vld [vmem:[%s2095 + $0x18] sm:$0xff]
      %v2100 = vld [vmem:[%s2095 + $0x20] sm:$0xff]
      %v2101 = vld [vmem:[%s2095 + $0x28] sm:$0xff]
      %v2102 = vld [vmem:[%s2095 + $0x30] sm:$0xff]
      %v2103 = vld [vmem:[%s2095 + $0x38] sm:$0xff]
      %v2104 = vld [vmem:[%s2095 + $0x40] sm:$0xff]
      %v2105 = vld [vmem:[%s2095 + $0x48] sm:$0xff]
      %v2106 = vld [vmem:[%s2095 + $0x50] sm:$0xff]
      %v2107 = vld [vmem:[%s2095 + $0x58] sm:$0xff]
      %v2108 = vld [vmem:[%s2095 + $0x60] sm:$0xff]
      %v2109 = vld [vmem:[%s2095 + $0x68] sm:$0xff]
      %v2110 = vld [vmem:[%s2095 + $0x70] sm:$0xff]
      %v2111 = vld [vmem:[%s2095 + $0x78] sm:$0xff]
      %2112 = vmatprep.subr.mxu0 0.0
      %v2113 = vand.u32 %v2096, 4294901760
      %2114 = vmatpush1.msra.mxu0 %v2113
      %2115 = vmatprep.subr.mxu0 0.0
      %v2116 = vand.u32 %v2097, 4294901760
      %2117 = vmatpush1.msra.mxu0 %v2116
      %2118 = vmatprep.subr.mxu0 0.0
      %v2119 = vand.u32 %v2098, 4294901760
      %2120 = vmatpush1.msra.mxu0 %v2119
      %2121 = vmatprep.subr.mxu0 0.0
      %v2122 = vand.u32 %v2099, 4294901760
      %2123 = vmatpush1.msra.mxu0 %v2122
      %2124 = vmatprep.subr.mxu0 0.0
      %v2125 = vand.u32 %v2100, 4294901760
      %2126 = vmatpush1.msra.mxu0 %v2125
      %2127 = vmatprep.subr.mxu0 0.0
      %v2128 = vand.u32 %v2101, 4294901760
      %2129 = vmatpush1.msra.mxu0 %v2128
      %2130 = vmatprep.subr.mxu0 0.0
      %v2131 = vand.u32 %v2102, 4294901760
      %2132 = vmatpush1.msra.mxu0 %v2131
      %2133 = vmatprep.subr.mxu0 0.0
      %v2134 = vand.u32 %v2103, 4294901760
      %2135 = vmatpush1.msra.mxu0 %v2134
      %2136 = vmatprep.subr.mxu0 0.0
      %v2137 = vand.u32 %v2104, 4294901760
      %2138 = vmatpush1.msra.mxu0 %v2137
      %2139 = vmatprep.subr.mxu0 0.0
      %v2140 = vand.u32 %v2105, 4294901760
      %2141 = vmatpush1.msra.mxu0 %v2140
      %2142 = vmatprep.subr.mxu0 0.0
      %v2143 = vand.u32 %v2106, 4294901760
      %2144 = vmatpush1.msra.mxu0 %v2143
      %2145 = vmatprep.subr.mxu0 0.0
      %v2146 = vand.u32 %v2107, 4294901760
      %2147 = vmatpush1.msra.mxu0 %v2146
      %2148 = vmatprep.subr.mxu0 0.0
      %v2149 = vand.u32 %v2108, 4294901760
      %2150 = vmatpush1.msra.mxu0 %v2149
      %2151 = vmatprep.subr.mxu0 0.0
      %v2152 = vand.u32 %v2109, 4294901760
      %2153 = vmatpush1.msra.mxu0 %v2152
      %2154 = vmatprep.subr.mxu0 0.0
      %v2155 = vand.u32 %v2110, 4294901760
      %2156 = vmatpush1.msra.mxu0 %v2155
      %2157 = vmatprep.subr.mxu0 0.0
      %v2158 = vand.u32 %v2111, 4294901760
      %2159 = vmatpush1.msra.mxu0 %v2158
      %2160 = vmatprep.subr.mxu0 0.0
      %2161 = vmatpush1.msra.mxu0 0.0
      %2162 = vmatprep.subr.mxu0 0.0
      %2163 = vmatpush1.msra.mxu0 0.0
      %2164 = vmatprep.subr.mxu0 0.0
      %2165 = vmatpush1.msra.mxu0 0.0
      %2166 = vmatprep.subr.mxu0 0.0
      %2167 = vmatpush1.msra.mxu0 0.0
      %2168 = vmatprep.subr.mxu0 0.0
      %2169 = vmatpush1.msra.mxu0 0.0
      %2170 = vmatprep.subr.mxu0 0.0
      %2171 = vmatpush1.msra.mxu0 0.0
      %2172 = vmatprep.subr.mxu0 0.0
      %2173 = vmatpush1.msra.mxu0 0.0
      %2174 = vmatprep.subr.mxu0 0.0
      %2175 = vmatpush1.msra.mxu0 0.0
      %2176 = vmatprep.subr.mxu0 0.0
      %2177 = vmatpush1.msra.mxu0 0.0
      %2178 = vmatprep.subr.mxu0 0.0
      %2179 = vmatpush1.msra.mxu0 0.0
      %2180 = vmatprep.subr.mxu0 0.0
      %2181 = vmatpush1.msra.mxu0 0.0
      %2182 = vmatprep.subr.mxu0 0.0
      %2183 = vmatpush1.msra.mxu0 0.0
      %2184 = vmatprep.subr.mxu0 0.0
      %2185 = vmatpush1.msra.mxu0 0.0
      %2186 = vmatprep.subr.mxu0 0.0
      %2187 = vmatpush1.msra.mxu0 0.0
      %2188 = vmatprep.subr.mxu0 0.0
      %2189 = vmatpush1.msra.mxu0 0.0
      %2190 = vmatprep.subr.mxu0 0.0
      %2191 = vmatpush1.msra.mxu0 0.0
      %2192 = vmatprep.mubr.f32.mxu0 0.0
      %v2193 = vand.u32 %v2093, 4294901760
      %v2194 = vsub.f32 %v2093, %v2193
      %v2195 = vand.u32 %v2194, 4294901760
      %v2196 = vsub.f32 %v2194, %v2195
      %v2197 = vand.u32 %v2196, 4294901760
      %2198 = vmatmul.mubr.f32.gmra.mrb[0].mxu0 %v2197
      %v2199 = vpop.f32.mrb[0].mxu0
      %v2200 = vadd.f32 0.0, %v2199
      %v2201 = vpop.f32.mrb[0].mxu0
      %2202 = vmatprep.mubr.f32.mxu0 0.0
      %v2203 = vand.u32 %v2094, 4294901760
      %v2204 = vsub.f32 %v2094, %v2203
      %v2205 = vand.u32 %v2204, 4294901760
      %v2206 = vsub.f32 %v2204, %v2205
      %v2207 = vand.u32 %v2206, 4294901760
      %2208 = vmatmul.mubr.f32.gmra.mrb[0].mxu0 %v2207
      %v2209 = vpop.f32.mrb[0].mxu0
      %v2210 = vadd.f32 0.0, %v2209
      %v2211 = vpop.f32.mrb[0].mxu0
      %2212 = vdwg.mxu0
      %2213 = vmatprep.subr.mxu0 0.0
      %v2214 = vand.u32 %v2096, 4294901760
      %v2215 = vsub.f32 %v2096, %v2214
      %v2216 = vand.u32 %v2215, 4294901760
      %v2217 = vsub.f32 %v2215, %v2216
      %v2218 = vand.u32 %v2217, 4294901760
      %2219 = vmatpush1.msra.mxu0 %v2218
      %2220 = vmatprep.subr.mxu0 0.0
      %v2221 = vand.u32 %v2097, 4294901760
      %v2222 = vsub.f32 %v2097, %v2221
      %v2223 = vand.u32 %v2222, 4294901760
      %v2224 = vsub.f32 %v2222, %v2223
      %v2225 = vand.u32 %v2224, 4294901760
      %2226 = vmatpush1.msra.mxu0 %v2225
      %2227 = vmatprep.subr.mxu0 0.0
      %v2228 = vand.u32 %v2098, 4294901760
      %v2229 = vsub.f32 %v2098, %v2228
      %v2230 = vand.u32 %v2229, 4294901760
      %v2231 = vsub.f32 %v2229, %v2230
      %v2232 = vand.u32 %v2231, 4294901760
      %2233 = vmatpush1.msra.mxu0 %v2232
      %2234 = vmatprep.subr.mxu0 0.0
      %v2235 = vand.u32 %v2099, 4294901760
      %v2236 = vsub.f32 %v2099, %v2235
      %v2237 = vand.u32 %v2236, 4294901760
      %v2238 = vsub.f32 %v2236, %v2237
      %v2239 = vand.u32 %v2238, 4294901760
      %2240 = vmatpush1.msra.mxu0 %v2239
      %2241 = vmatprep.subr.mxu0 0.0
      %v2242 = vand.u32 %v2100, 4294901760
      %v2243 = vsub.f32 %v2100, %v2242
      %v2244 = vand.u32 %v2243, 4294901760
      %v2245 = vsub.f32 %v2243, %v2244
      %v2246 = vand.u32 %v2245, 4294901760
      %2247 = vmatpush1.msra.mxu0 %v2246
      %2248 = vmatprep.subr.mxu0 0.0
      %v2249 = vand.u32 %v2101, 4294901760
      %v2250 = vsub.f32 %v2101, %v2249
      %v2251 = vand.u32 %v2250, 4294901760
      %v2252 = vsub.f32 %v2250, %v2251
      %v2253 = vand.u32 %v2252, 4294901760
      %2254 = vmatpush1.msra.mxu0 %v2253
      %2255 = vmatprep.subr.mxu0 0.0
      %v2256 = vand.u32 %v2102, 4294901760
      %v2257 = vsub.f32 %v2102, %v2256
      %v2258 = vand.u32 %v2257, 4294901760
      %v2259 = vsub.f32 %v2257, %v2258
      %v2260 = vand.u32 %v2259, 4294901760
      %2261 = vmatpush1.msra.mxu0 %v2260
      %2262 = vmatprep.subr.mxu0 0.0
      %v2263 = vand.u32 %v2103, 4294901760
      %v2264 = vsub.f32 %v2103, %v2263
      %v2265 = vand.u32 %v2264, 4294901760
      %v2266 = vsub.f32 %v2264, %v2265
      %v2267 = vand.u32 %v2266, 4294901760
      %2268 = vmatpush1.msra.mxu0 %v2267
      %2269 = vmatprep.subr.mxu0 0.0
      %v2270 = vand.u32 %v2104, 4294901760
      %v2271 = vsub.f32 %v2104, %v2270
      %v2272 = vand.u32 %v2271, 4294901760
      %v2273 = vsub.f32 %v2271, %v2272
      %v2274 = vand.u32 %v2273, 4294901760
      %2275 = vmatpush1.msra.mxu0 %v2274
      %2276 = vmatprep.subr.mxu0 0.0
      %v2277 = vand.u32 %v2105, 4294901760
      %v2278 = vsub.f32 %v2105, %v2277
      %v2279 = vand.u32 %v2278, 4294901760
      %v2280 = vsub.f32 %v2278, %v2279
      %v2281 = vand.u32 %v2280, 4294901760
      %2282 = vmatpush1.msra.mxu0 %v2281
      %2283 = vmatprep.subr.mxu0 0.0
      %v2284 = vand.u32 %v2106, 4294901760
      %v2285 = vsub.f32 %v2106, %v2284
      %v2286 = vand.u32 %v2285, 4294901760
      %v2287 = vsub.f32 %v2285, %v2286
      %v2288 = vand.u32 %v2287, 4294901760
      %2289 = vmatpush1.msra.mxu0 %v2288
      %2290 = vmatprep.subr.mxu0 0.0
      %v2291 = vand.u32 %v2107, 4294901760
      %v2292 = vsub.f32 %v2107, %v2291
      %v2293 = vand.u32 %v2292, 4294901760
      %v2294 = vsub.f32 %v2292, %v2293
      %v2295 = vand.u32 %v2294, 4294901760
      %2296 = vmatpush1.msra.mxu0 %v2295
      %2297 = vmatprep.subr.mxu0 0.0
      %v2298 = vand.u32 %v2108, 4294901760
      %v2299 = vsub.f32 %v2108, %v2298
      %v2300 = vand.u32 %v2299, 4294901760
      %v2301 = vsub.f32 %v2299, %v2300
      %v2302 = vand.u32 %v2301, 4294901760
      %2303 = vmatpush1.msra.mxu0 %v2302
      %2304 = vmatprep.subr.mxu0 0.0
      %v2305 = vand.u32 %v2109, 4294901760
      %v2306 = vsub.f32 %v2109, %v2305
      %v2307 = vand.u32 %v2306, 4294901760
      %v2308 = vsub.f32 %v2306, %v2307
      %v2309 = vand.u32 %v2308, 4294901760
      %2310 = vmatpush1.msra.mxu0 %v2309
      %2311 = vmatprep.subr.mxu0 0.0
      %v2312 = vand.u32 %v2110, 4294901760
      %v2313 = vsub.f32 %v2110, %v2312
      %v2314 = vand.u32 %v2313, 4294901760
      %v2315 = vsub.f32 %v2313, %v2314
      %v2316 = vand.u32 %v2315, 4294901760
      %2317 = vmatpush1.msra.mxu0 %v2316
      %2318 = vmatprep.subr.mxu0 0.0
      %v2319 = vand.u32 %v2111, 4294901760
      %v2320 = vsub.f32 %v2111, %v2319
      %v2321 = vand.u32 %v2320, 4294901760
      %v2322 = vsub.f32 %v2320, %v2321
      %v2323 = vand.u32 %v2322, 4294901760
      %2324 = vmatpush1.msra.mxu0 %v2323
      %2325 = vmatprep.subr.mxu0 0.0
      %2326 = vmatpush1.msra.mxu0 0.0
      %2327 = vmatprep.subr.mxu0 0.0
      %2328 = vmatpush1.msra.mxu0 0.0
      %2329 = vmatprep.subr.mxu0 0.0
      %2330 = vmatpush1.msra.mxu0 0.0
      %2331 = vmatprep.subr.mxu0 0.0
      %2332 = vmatpush1.msra.mxu0 0.0
      %2333 = vmatprep.subr.mxu0 0.0
      %2334 = vmatpush1.msra.mxu0 0.0
      %2335 = vmatprep.subr.mxu0 0.0
      %2336 = vmatpush1.msra.mxu0 0.0
      %2337 = vmatprep.subr.mxu0 0.0
      %2338 = vmatpush1.msra.mxu0 0.0
      %2339 = vmatprep.subr.mxu0 0.0
      %2340 = vmatpush1.msra.mxu0 0.0
      %2341 = vmatprep.subr.mxu0 0.0
      %2342 = vmatpush1.msra.mxu0 0.0
      %2343 = vmatprep.subr.mxu0 0.0
      %2344 = vmatpush1.msra.mxu0 0.0
      %2345 = vmatprep.subr.mxu0 0.0
      %2346 = vmatpush1.msra.mxu0 0.0
      %2347 = vmatprep.subr.mxu0 0.0
      %2348 = vmatpush1.msra.mxu0 0.0
      %2349 = vmatprep.subr.mxu0 0.0
      %2350 = vmatpush1.msra.mxu0 0.0
      %2351 = vmatprep.subr.mxu0 0.0
      %2352 = vmatpush1.msra.mxu0 0.0
      %2353 = vmatprep.subr.mxu0 0.0
      %2354 = vmatpush1.msra.mxu0 0.0
      %2355 = vmatprep.subr.mxu0 0.0
      %2356 = vmatpush1.msra.mxu0 0.0
      %2357 = vmatprep.mubr.f32.mxu0 0.0
      %v2358 = vand.u32 %v2093, 4294901760
      %2359 = vmatmul.mubr.f32.gmra.mrb[0].mxu0 %v2358
      %v2360 = vpop.f32.mrb[0].mxu0
      %v2361 = vadd.f32 %v2200, %v2360
      %v2362 = vpop.f32.mrb[0].mxu0
      %2363 = vmatprep.mubr.f32.mxu0 0.0
      %v2364 = vand.u32 %v2094, 4294901760
      %2365 = vmatmul.mubr.f32.gmra.mrb[0].mxu0 %v2364
      %v2366 = vpop.f32.mrb[0].mxu0
      %v2367 = vadd.f32 %v2210, %v2366
      %v2368 = vpop.f32.mrb[0].mxu0
      %2369 = vdwg.mxu0
      %2370 = vmatprep.subr.mxu0 0.0
      %v2371 = vand.u32 %v2096, 4294901760
      %v2372 = vsub.f32 %v2096, %v2371
      %2373 = vmatpush1.msra.mxu0 %v2372
      %2374 = vmatprep.subr.mxu0 0.0
      %v2375 = vand.u32 %v2097, 4294901760
      %v2376 = vsub.f32 %v2097, %v2375
      %2377 = vmatpush1.msra.mxu0 %v2376
      %2378 = vmatprep.subr.mxu0 0.0
      %v2379 = vand.u32 %v2098, 4294901760
      %v2380 = vsub.f32 %v2098, %v2379
      %2381 = vmatpush1.msra.mxu0 %v2380
      %2382 = vmatprep.subr.mxu0 0.0
      %v2383 = vand.u32 %v2099, 4294901760
      %v2384 = vsub.f32 %v2099, %v2383
      %2385 = vmatpush1.msra.mxu0 %v2384
      %2386 = vmatprep.subr.mxu0 0.0
      %v2387 = vand.u32 %v2100, 4294901760
      %v2388 = vsub.f32 %v2100, %v2387
      %2389 = vmatpush1.msra.mxu0 %v2388
      %2390 = vmatprep.subr.mxu0 0.0
      %v2391 = vand.u32 %v2101, 4294901760
      %v2392 = vsub.f32 %v2101, %v2391
      %2393 = vmatpush1.msra.mxu0 %v2392
      %2394 = vmatprep.subr.mxu0 0.0
      %v2395 = vand.u32 %v2102, 4294901760
      %v2396 = vsub.f32 %v2102, %v2395
      %2397 = vmatpush1.msra.mxu0 %v2396
      %2398 = vmatprep.subr.mxu0 0.0
      %v2399 = vand.u32 %v2103, 4294901760
      %v2400 = vsub.f32 %v2103, %v2399
      %2401 = vmatpush1.msra.mxu0 %v2400
      %2402 = vmatprep.subr.mxu0 0.0
      %v2403 = vand.u32 %v2104, 4294901760
      %v2404 = vsub.f32 %v2104, %v2403
      %2405 = vmatpush1.msra.mxu0 %v2404
      %2406 = vmatprep.subr.mxu0 0.0
      %v2407 = vand.u32 %v2105, 4294901760
      %v2408 = vsub.f32 %v2105, %v2407
      %2409 = vmatpush1.msra.mxu0 %v2408
      %2410 = vmatprep.subr.mxu0 0.0
      %v2411 = vand.u32 %v2106, 4294901760
      %v2412 = vsub.f32 %v2106, %v2411
      %2413 = vmatpush1.msra.mxu0 %v2412
      %2414 = vmatprep.subr.mxu0 0.0
      %v2415 = vand.u32 %v2107, 4294901760
      %v2416 = vsub.f32 %v2107, %v2415
      %2417 = vmatpush1.msra.mxu0 %v2416
      %2418 = vmatprep.subr.mxu0 0.0
      %v2419 = vand.u32 %v2108, 4294901760
      %v2420 = vsub.f32 %v2108, %v2419
      %2421 = vmatpush1.msra.mxu0 %v2420
      %2422 = vmatprep.subr.mxu0 0.0
      %v2423 = vand.u32 %v2109, 4294901760
      %v2424 = vsub.f32 %v2109, %v2423
      %2425 = vmatpush1.msra.mxu0 %v2424
      %2426 = vmatprep.subr.mxu0 0.0
      %v2427 = vand.u32 %v2110, 4294901760
      %v2428 = vsub.f32 %v2110, %v2427
      %2429 = vmatpush1.msra.mxu0 %v2428
      %2430 = vmatprep.subr.mxu0 0.0
      %v2431 = vand.u32 %v2111, 4294901760
      %v2432 = vsub.f32 %v2111, %v2431
      %2433 = vmatpush1.msra.mxu0 %v2432
      %2434 = vmatprep.subr.mxu0 0.0
      %2435 = vmatpush1.msra.mxu0 0.0
      %2436 = vmatprep.subr.mxu0 0.0
      %2437 = vmatpush1.msra.mxu0 0.0
      %2438 = vmatprep.subr.mxu0 0.0
      %2439 = vmatpush1.msra.mxu0 0.0
      %2440 = vmatprep.subr.mxu0 0.0
      %2441 = vmatpush1.msra.mxu0 0.0
      %2442 = vmatprep.subr.mxu0 0.0
      %2443 = vmatpush1.msra.mxu0 0.0
      %2444 = vmatprep.subr.mxu0 0.0
      %2445 = vmatpush1.msra.mxu0 0.0
      %2446 = vmatprep.subr.mxu0 0.0
      %2447 = vmatpush1.msra.mxu0 0.0
      %2448 = vmatprep.subr.mxu0 0.0
      %2449 = vmatpush1.msra.mxu0 0.0
      %2450 = vmatprep.subr.mxu0 0.0
      %2451 = vmatpush1.msra.mxu0 0.0
      %2452 = vmatprep.subr.mxu0 0.0
      %2453 = vmatpush1.msra.mxu0 0.0
      %2454 = vmatprep.subr.mxu0 0.0
      %2455 = vmatpush1.msra.mxu0 0.0
      %2456 = vmatprep.subr.mxu0 0.0
      %2457 = vmatpush1.msra.mxu0 0.0
      %2458 = vmatprep.subr.mxu0 0.0
      %2459 = vmatpush1.msra.mxu0 0.0
      %2460 = vmatprep.subr.mxu0 0.0
      %2461 = vmatpush1.msra.mxu0 0.0
      %2462 = vmatprep.subr.mxu0 0.0
      %2463 = vmatpush1.msra.mxu0 0.0
      %2464 = vmatprep.subr.mxu0 0.0
      %2465 = vmatpush1.msra.mxu0 0.0
      %2466 = vmatprep.mubr.f32.mxu0 0.0
      %v2467 = vand.u32 %v2093, 4294901760
      %v2468 = vsub.f32 %v2093, %v2467
      %2469 = vmatmul.mubr.f32.gmra.mrb[0].mxu0 %v2468
      %v2470 = vpop.f32.mrb[0].mxu0
      %v2471 = vadd.f32 %v2361, %v2470
      %v2472 = vpop.f32.mrb[0].mxu0
      %2473 = vmatprep.mubr.f32.mxu0 0.0
      %v2474 = vand.u32 %v2094, 4294901760
      %v2475 = vsub.f32 %v2094, %v2474
      %2476 = vmatmul.mubr.f32.gmra.mrb[0].mxu0 %v2475
      %v2477 = vpop.f32.mrb[0].mxu0
      %v2478 = vadd.f32 %v2367, %v2477
      %v2479 = vpop.f32.mrb[0].mxu0
      %2480 = vdwg.mxu0
      %2481 = vmatprep.subr.mxu0 0.0
      %v2482 = vand.u32 %v2096, 4294901760
      %2483 = vmatpush1.msra.mxu0 %v2482
      %2484 = vmatprep.subr.mxu0 0.0
      %v2485 = vand.u32 %v2097, 4294901760
      %2486 = vmatpush1.msra.mxu0 %v2485
      %2487 = vmatprep.subr.mxu0 0.0
      %v2488 = vand.u32 %v2098, 4294901760
      %2489 = vmatpush1.msra.mxu0 %v2488
      %2490 = vmatprep.subr.mxu0 0.0
      %v2491 = vand.u32 %v2099, 4294901760
      %2492 = vmatpush1.msra.mxu0 %v2491
      %2493 = vmatprep.subr.mxu0 0.0
      %v2494 = vand.u32 %v2100, 4294901760
      %2495 = vmatpush1.msra.mxu0 %v2494
      %2496 = vmatprep.subr.mxu0 0.0
      %v2497 = vand.u32 %v2101, 4294901760
      %2498 = vmatpush1.msra.mxu0 %v2497
      %2499 = vmatprep.subr.mxu0 0.0
      %v2500 = vand.u32 %v2102, 4294901760
      %2501 = vmatpush1.msra.mxu0 %v2500
      %2502 = vmatprep.subr.mxu0 0.0
      %v2503 = vand.u32 %v2103, 4294901760
      %2504 = vmatpush1.msra.mxu0 %v2503
      %2505 = vmatprep.subr.mxu0 0.0
      %v2506 = vand.u32 %v2104, 4294901760
      %2507 = vmatpush1.msra.mxu0 %v2506
      %2508 = vmatprep.subr.mxu0 0.0
      %v2509 = vand.u32 %v2105, 4294901760
      %2510 = vmatpush1.msra.mxu0 %v2509
      %2511 = vmatprep.subr.mxu0 0.0
      %v2512 = vand.u32 %v2106, 4294901760
      %2513 = vmatpush1.msra.mxu0 %v2512
      %2514 = vmatprep.subr.mxu0 0.0
      %v2515 = vand.u32 %v2107, 4294901760
      %2516 = vmatpush1.msra.mxu0 %v2515
      %2517 = vmatprep.subr.mxu0 0.0
      %v2518 = vand.u32 %v2108, 4294901760
      %2519 = vmatpush1.msra.mxu0 %v2518
      %2520 = vmatprep.subr.mxu0 0.0
      %v2521 = vand.u32 %v2109, 4294901760
      %2522 = vmatpush1.msra.mxu0 %v2521
      %2523 = vmatprep.subr.mxu0 0.0
      %v2524 = vand.u32 %v2110, 4294901760
      %2525 = vmatpush1.msra.mxu0 %v2524
      %2526 = vmatprep.subr.mxu0 0.0
      %v2527 = vand.u32 %v2111, 4294901760
      %2528 = vmatpush1.msra.mxu0 %v2527
      %2529 = vmatprep.subr.mxu0 0.0
      %2530 = vmatpush1.msra.mxu0 0.0
      %2531 = vmatprep.subr.mxu0 0.0
      %2532 = vmatpush1.msra.mxu0 0.0
      %2533 = vmatprep.subr.mxu0 0.0
      %2534 = vmatpush1.msra.mxu0 0.0
      %2535 = vmatprep.subr.mxu0 0.0
      %2536 = vmatpush1.msra.mxu0 0.0
      %2537 = vmatprep.subr.mxu0 0.0
      %2538 = vmatpush1.msra.mxu0 0.0
      %2539 = vmatprep.subr.mxu0 0.0
      %2540 = vmatpush1.msra.mxu0 0.0
      %2541 = vmatprep.subr.mxu0 0.0
      %2542 = vmatpush1.msra.mxu0 0.0
      %2543 = vmatprep.subr.mxu0 0.0
      %2544 = vmatpush1.msra.mxu0 0.0
      %2545 = vmatprep.subr.mxu0 0.0
      %2546 = vmatpush1.msra.mxu0 0.0
      %2547 = vmatprep.subr.mxu0 0.0
      %2548 = vmatpush1.msra.mxu0 0.0
      %2549 = vmatprep.subr.mxu0 0.0
      %2550 = vmatpush1.msra.mxu0 0.0
      %2551 = vmatprep.subr.mxu0 0.0
      %2552 = vmatpush1.msra.mxu0 0.0
      %2553 = vmatprep.subr.mxu0 0.0
      %2554 = vmatpush1.msra.mxu0 0.0
      %2555 = vmatprep.subr.mxu0 0.0
      %2556 = vmatpush1.msra.mxu0 0.0
      %2557 = vmatprep.subr.mxu0 0.0
      %2558 = vmatpush1.msra.mxu0 0.0
      %2559 = vmatprep.subr.mxu0 0.0
      %2560 = vmatpush1.msra.mxu0 0.0
      %2561 = vmatprep.mubr.f32.mxu0 0.0
      %v2562 = vand.u32 %v2093, 4294901760
      %v2563 = vsub.f32 %v2093, %v2562
      %v2564 = vand.u32 %v2563, 4294901760
      %2565 = vmatmul.mubr.f32.gmra.mrb[0].mxu0 %v2564
      %v2566 = vpop.f32.mrb[0].mxu0
      %v2567 = vadd.f32 %v2471, %v2566
      %v2568 = vpop.f32.mrb[0].mxu0
      %2569 = vmatprep.mubr.f32.mxu0 0.0
      %v2570 = vand.u32 %v2094, 4294901760
      %v2571 = vsub.f32 %v2094, %v2570
      %v2572 = vand.u32 %v2571, 4294901760
      %2573 = vmatmul.mubr.f32.gmra.mrb[0].mxu0 %v2572
      %v2574 = vpop.f32.mrb[0].mxu0
      %v2575 = vadd.f32 %v2478, %v2574
      %v2576 = vpop.f32.mrb[0].mxu0
      %2577 = vdwg.mxu0
      %2578 = vmatprep.subr.mxu0 0.0
      %v2579 = vand.u32 %v2096, 4294901760
      %v2580 = vsub.f32 %v2096, %v2579
      %v2581 = vand.u32 %v2580, 4294901760
      %2582 = vmatpush1.msra.mxu0 %v2581
      %2583 = vmatprep.subr.mxu0 0.0
      %v2584 = vand.u32 %v2097, 4294901760
      %v2585 = vsub.f32 %v2097, %v2584
      %v2586 = vand.u32 %v2585, 4294901760
      %2587 = vmatpush1.msra.mxu0 %v2586
      %2588 = vmatprep.subr.mxu0 0.0
      %v2589 = vand.u32 %v2098, 4294901760
      %v2590 = vsub.f32 %v2098, %v2589
      %v2591 = vand.u32 %v2590, 4294901760
      %2592 = vmatpush1.msra.mxu0 %v2591
      %2593 = vmatprep.subr.mxu0 0.0
      %v2594 = vand.u32 %v2099, 4294901760
      %v2595 = vsub.f32 %v2099, %v2594
      %v2596 = vand.u32 %v2595, 4294901760
      %2597 = vmatpush1.msra.mxu0 %v2596
      %2598 = vmatprep.subr.mxu0 0.0
      %v2599 = vand.u32 %v2100, 4294901760
      %v2600 = vsub.f32 %v2100, %v2599
      %v2601 = vand.u32 %v2600, 4294901760
      %2602 = vmatpush1.msra.mxu0 %v2601
      %2603 = vmatprep.subr.mxu0 0.0
      %v2604 = vand.u32 %v2101, 4294901760
      %v2605 = vsub.f32 %v2101, %v2604
      %v2606 = vand.u32 %v2605, 4294901760
      %2607 = vmatpush1.msra.mxu0 %v2606
      %2608 = vmatprep.subr.mxu0 0.0
      %v2609 = vand.u32 %v2102, 4294901760
      %v2610 = vsub.f32 %v2102, %v2609
      %v2611 = vand.u32 %v2610, 4294901760
      %2612 = vmatpush1.msra.mxu0 %v2611
      %2613 = vmatprep.subr.mxu0 0.0
      %v2614 = vand.u32 %v2103, 4294901760
      %v2615 = vsub.f32 %v2103, %v2614
      %v2616 = vand.u32 %v2615, 4294901760
      %2617 = vmatpush1.msra.mxu0 %v2616
      %2618 = vmatprep.subr.mxu0 0.0
      %v2619 = vand.u32 %v2104, 4294901760
      %v2620 = vsub.f32 %v2104, %v2619
      %v2621 = vand.u32 %v2620, 4294901760
      %2622 = vmatpush1.msra.mxu0 %v2621
      %2623 = vmatprep.subr.mxu0 0.0
      %v2624 = vand.u32 %v2105, 4294901760
      %v2625 = vsub.f32 %v2105, %v2624
      %v2626 = vand.u32 %v2625, 4294901760
      %2627 = vmatpush1.msra.mxu0 %v2626
      %2628 = vmatprep.subr.mxu0 0.0
      %v2629 = vand.u32 %v2106, 4294901760
      %v2630 = vsub.f32 %v2106, %v2629
      %v2631 = vand.u32 %v2630, 4294901760
      %2632 = vmatpush1.msra.mxu0 %v2631
      %2633 = vmatprep.subr.mxu0 0.0
      %v2634 = vand.u32 %v2107, 4294901760
      %v2635 = vsub.f32 %v2107, %v2634
      %v2636 = vand.u32 %v2635, 4294901760
      %2637 = vmatpush1.msra.mxu0 %v2636
      %2638 = vmatprep.subr.mxu0 0.0
      %v2639 = vand.u32 %v2108, 4294901760
      %v2640 = vsub.f32 %v2108, %v2639
      %v2641 = vand.u32 %v2640, 4294901760
      %2642 = vmatpush1.msra.mxu0 %v2641
      %2643 = vmatprep.subr.mxu0 0.0
      %v2644 = vand.u32 %v2109, 4294901760
      %v2645 = vsub.f32 %v2109, %v2644
      %v2646 = vand.u32 %v2645, 4294901760
      %2647 = vmatpush1.msra.mxu0 %v2646
      %2648 = vmatprep.subr.mxu0 0.0
      %v2649 = vand.u32 %v2110, 4294901760
      %v2650 = vsub.f32 %v2110, %v2649
      %v2651 = vand.u32 %v2650, 4294901760
      %2652 = vmatpush1.msra.mxu0 %v2651
      %2653 = vmatprep.subr.mxu0 0.0
      %v2654 = vand.u32 %v2111, 4294901760
      %v2655 = vsub.f32 %v2111, %v2654
      %v2656 = vand.u32 %v2655, 4294901760
      %2657 = vmatpush1.msra.mxu0 %v2656
      %2658 = vmatprep.subr.mxu0 0.0
      %2659 = vmatpush1.msra.mxu0 0.0
      %2660 = vmatprep.subr.mxu0 0.0
      %2661 = vmatpush1.msra.mxu0 0.0
      %2662 = vmatprep.subr.mxu0 0.0
      %2663 = vmatpush1.msra.mxu0 0.0
      %2664 = vmatprep.subr.mxu0 0.0
      %2665 = vmatpush1.msra.mxu0 0.0
      %2666 = vmatprep.subr.mxu0 0.0
      %2667 = vmatpush1.msra.mxu0 0.0
      %2668 = vmatprep.subr.mxu0 0.0
      %2669 = vmatpush1.msra.mxu0 0.0
      %2670 = vmatprep.subr.mxu0 0.0
      %2671 = vmatpush1.msra.mxu0 0.0
      %2672 = vmatprep.subr.mxu0 0.0
      %2673 = vmatpush1.msra.mxu0 0.0
      %2674 = vmatprep.subr.mxu0 0.0
      %2675 = vmatpush1.msra.mxu0 0.0
      %2676 = vmatprep.subr.mxu0 0.0
      %2677 = vmatpush1.msra.mxu0 0.0
      %2678 = vmatprep.subr.mxu0 0.0
      %2679 = vmatpush1.msra.mxu0 0.0
      %2680 = vmatprep.subr.mxu0 0.0
      %2681 = vmatpush1.msra.mxu0 0.0
      %2682 = vmatprep.subr.mxu0 0.0
      %2683 = vmatpush1.msra.mxu0 0.0
      %2684 = vmatprep.subr.mxu0 0.0
      %2685 = vmatpush1.msra.mxu0 0.0
      %2686 = vmatprep.subr.mxu0 0.0
      %2687 = vmatpush1.msra.mxu0 0.0
      %2688 = vmatprep.subr.mxu0 0.0
      %2689 = vmatpush1.msra.mxu0 0.0
      %2690 = vmatprep.mubr.f32.mxu0 0.0
      %v2691 = vand.u32 %v2093, 4294901760
      %2692 = vmatmul.mubr.f32.gmra.mrb[0].mxu0 %v2691
      %v2693 = vpop.f32.mrb[0].mxu0
      %v2694 = vadd.f32 %v2567, %v2693
      %v2695 = vpop.f32.mrb[0].mxu0
      %2696 = vmatprep.mubr.f32.mxu0 0.0
      %v2697 = vand.u32 %v2094, 4294901760
      %2698 = vmatmul.mubr.f32.gmra.mrb[0].mxu0 %v2697
      %v2699 = vpop.f32.mrb[0].mxu0
      %v2700 = vadd.f32 %v2575, %v2699
      %v2701 = vpop.f32.mrb[0].mxu0
      %2702 = vdwg.mxu0
      %2703 = vmatprep.subr.mxu0 0.0
      %v2704 = vand.u32 %v2096, 4294901760
      %2705 = vmatpush1.msra.mxu0 %v2704
      %2706 = vmatprep.subr.mxu0 0.0
      %v2707 = vand.u32 %v2097, 4294901760
      %2708 = vmatpush1.msra.mxu0 %v2707
      %2709 = vmatprep.subr.mxu0 0.0
      %v2710 = vand.u32 %v2098, 4294901760
      %2711 = vmatpush1.msra.mxu0 %v2710
      %2712 = vmatprep.subr.mxu0 0.0
      %v2713 = vand.u32 %v2099, 4294901760
      %2714 = vmatpush1.msra.mxu0 %v2713
      %2715 = vmatprep.subr.mxu0 0.0
      %v2716 = vand.u32 %v2100, 4294901760
      %2717 = vmatpush1.msra.mxu0 %v2716
      %2718 = vmatprep.subr.mxu0 0.0
      %v2719 = vand.u32 %v2101, 4294901760
      %2720 = vmatpush1.msra.mxu0 %v2719
      %2721 = vmatprep.subr.mxu0 0.0
      %v2722 = vand.u32 %v2102, 4294901760
      %2723 = vmatpush1.msra.mxu0 %v2722
      %2724 = vmatprep.subr.mxu0 0.0
      %v2725 = vand.u32 %v2103, 4294901760
      %2726 = vmatpush1.msra.mxu0 %v2725
      %2727 = vmatprep.subr.mxu0 0.0
      %v2728 = vand.u32 %v2104, 4294901760
      %2729 = vmatpush1.msra.mxu0 %v2728
      %2730 = vmatprep.subr.mxu0 0.0
      %v2731 = vand.u32 %v2105, 4294901760
      %2732 = vmatpush1.msra.mxu0 %v2731
      %2733 = vmatprep.subr.mxu0 0.0
      %v2734 = vand.u32 %v2106, 4294901760
      %2735 = vmatpush1.msra.mxu0 %v2734
      %2736 = vmatprep.subr.mxu0 0.0
      %v2737 = vand.u32 %v2107, 4294901760
      %2738 = vmatpush1.msra.mxu0 %v2737
      %2739 = vmatprep.subr.mxu0 0.0
      %v2740 = vand.u32 %v2108, 4294901760
      %2741 = vmatpush1.msra.mxu0 %v2740
      %2742 = vmatprep.subr.mxu0 0.0
      %v2743 = vand.u32 %v2109, 4294901760
      %2744 = vmatpush1.msra.mxu0 %v2743
      %2745 = vmatprep.subr.mxu0 0.0
      %v2746 = vand.u32 %v2110, 4294901760
      %2747 = vmatpush1.msra.mxu0 %v2746
      %2748 = vmatprep.subr.mxu0 0.0
      %v2749 = vand.u32 %v2111, 4294901760
      %2750 = vmatpush1.msra.mxu0 %v2749
      %2751 = vmatprep.subr.mxu0 0.0
      %2752 = vmatpush1.msra.mxu0 0.0
      %2753 = vmatprep.subr.mxu0 0.0
      %2754 = vmatpush1.msra.mxu0 0.0
      %2755 = vmatprep.subr.mxu0 0.0
      %2756 = vmatpush1.msra.mxu0 0.0
      %2757 = vmatprep.subr.mxu0 0.0
      %2758 = vmatpush1.msra.mxu0 0.0
      %2759 = vmatprep.subr.mxu0 0.0
      %2760 = vmatpush1.msra.mxu0 0.0
      %2761 = vmatprep.subr.mxu0 0.0
      %2762 = vmatpush1.msra.mxu0 0.0
      %2763 = vmatprep.subr.mxu0 0.0
      %2764 = vmatpush1.msra.mxu0 0.0
      %2765 = vmatprep.subr.mxu0 0.0
      %2766 = vmatpush1.msra.mxu0 0.0
      %2767 = vmatprep.subr.mxu0 0.0
      %2768 = vmatpush1.msra.mxu0 0.0
      %2769 = vmatprep.subr.mxu0 0.0
      %2770 = vmatpush1.msra.mxu0 0.0
      %2771 = vmatprep.subr.mxu0 0.0
      %2772 = vmatpush1.msra.mxu0 0.0
      %2773 = vmatprep.subr.mxu0 0.0
      %2774 = vmatpush1.msra.mxu0 0.0
      %2775 = vmatprep.subr.mxu0 0.0
      %2776 = vmatpush1.msra.mxu0 0.0
      %2777 = vmatprep.subr.mxu0 0.0
      %2778 = vmatpush1.msra.mxu0 0.0
      %2779 = vmatprep.subr.mxu0 0.0
      %2780 = vmatpush1.msra.mxu0 0.0
      %2781 = vmatprep.subr.mxu0 0.0
      %2782 = vmatpush1.msra.mxu0 0.0
      %2783 = vmatprep.mubr.f32.mxu0 0.0
      %v2784 = vand.u32 %v2093, 4294901760
      %2785 = vmatmul.mubr.f32.gmra.mrb[0].mxu0 %v2784
      %v2786 = vpop.f32.mrb[0].mxu0
      %v2787 = vadd.f32 %v2694, %v2786
      %v2788 = vpop.f32.mrb[0].mxu0
      %2789 = vmatprep.mubr.f32.mxu0 0.0
      %v2790 = vand.u32 %v2094, 4294901760
      %2791 = vmatmul.mubr.f32.gmra.mrb[0].mxu0 %v2790
      %v2792 = vpop.f32.mrb[0].mxu0
      %v2793 = vadd.f32 %v2700, %v2792
      %v2794 = vpop.f32.mrb[0].mxu0
      %2795 = vdwg.mxu0
      %2796 = vmatprep.subr.mxu0 0.0
      %v2797 = vand.u32 %v2077, 4294901760
      %2798 = vmatpush1.msra.mxu0 %v2797
      %2799 = vmatprep.subr.mxu0 0.0
      %v2800 = vand.u32 %v2078, 4294901760
      %2801 = vmatpush1.msra.mxu0 %v2800
      %2802 = vmatprep.subr.mxu0 0.0
      %v2803 = vand.u32 %v2079, 4294901760
      %2804 = vmatpush1.msra.mxu0 %v2803
      %2805 = vmatprep.subr.mxu0 0.0
      %v2806 = vand.u32 %v2080, 4294901760
      %2807 = vmatpush1.msra.mxu0 %v2806
      %2808 = vmatprep.subr.mxu0 0.0
      %v2809 = vand.u32 %v2081, 4294901760
      %2810 = vmatpush1.msra.mxu0 %v2809
      %2811 = vmatprep.subr.mxu0 0.0
      %v2812 = vand.u32 %v2082, 4294901760
      %2813 = vmatpush1.msra.mxu0 %v2812
      %2814 = vmatprep.subr.mxu0 0.0
      %v2815 = vand.u32 %v2083, 4294901760
      %2816 = vmatpush1.msra.mxu0 %v2815
      %2817 = vmatprep.subr.mxu0 0.0
      %v2818 = vand.u32 %v2084, 4294901760
      %2819 = vmatpush1.msra.mxu0 %v2818
      %2820 = vmatprep.subr.mxu0 0.0
      %v2821 = vand.u32 %v2085, 4294901760
      %2822 = vmatpush1.msra.mxu0 %v2821
      %2823 = vmatprep.subr.mxu0 0.0
      %v2824 = vand.u32 %v2086, 4294901760
      %2825 = vmatpush1.msra.mxu0 %v2824
      %2826 = vmatprep.subr.mxu0 0.0
      %v2827 = vand.u32 %v2087, 4294901760
      %2828 = vmatpush1.msra.mxu0 %v2827
      %2829 = vmatprep.subr.mxu0 0.0
      %v2830 = vand.u32 %v2088, 4294901760
      %2831 = vmatpush1.msra.mxu0 %v2830
      %2832 = vmatprep.subr.mxu0 0.0
      %v2833 = vand.u32 %v2089, 4294901760
      %2834 = vmatpush1.msra.mxu0 %v2833
      %2835 = vmatprep.subr.mxu0 0.0
      %v2836 = vand.u32 %v2090, 4294901760
      %2837 = vmatpush1.msra.mxu0 %v2836
      %2838 = vmatprep.subr.mxu0 0.0
      %v2839 = vand.u32 %v2091, 4294901760
      %2840 = vmatpush1.msra.mxu0 %v2839
      %2841 = vmatprep.subr.mxu0 0.0
      %v2842 = vand.u32 %v2092, 4294901760
      %2843 = vmatpush1.msra.mxu0 %v2842
      %2844 = vmatprep.subr.mxu0 0.0
      %2845 = vmatpush1.msra.mxu0 0.0
      %2846 = vmatprep.subr.mxu0 0.0
      %2847 = vmatpush1.msra.mxu0 0.0
      %2848 = vmatprep.subr.mxu0 0.0
      %2849 = vmatpush1.msra.mxu0 0.0
      %2850 = vmatprep.subr.mxu0 0.0
      %2851 = vmatpush1.msra.mxu0 0.0
      %2852 = vmatprep.subr.mxu0 0.0
      %2853 = vmatpush1.msra.mxu0 0.0
      %2854 = vmatprep.subr.mxu0 0.0
      %2855 = vmatpush1.msra.mxu0 0.0
      %2856 = vmatprep.subr.mxu0 0.0
      %2857 = vmatpush1.msra.mxu0 0.0
      %2858 = vmatprep.subr.mxu0 0.0
      %2859 = vmatpush1.msra.mxu0 0.0
      %2860 = vmatprep.subr.mxu0 0.0
      %2861 = vmatpush1.msra.mxu0 0.0
      %2862 = vmatprep.subr.mxu0 0.0
      %2863 = vmatpush1.msra.mxu0 0.0
      %2864 = vmatprep.subr.mxu0 0.0
      %2865 = vmatpush1.msra.mxu0 0.0
      %2866 = vmatprep.subr.mxu0 0.0
      %2867 = vmatpush1.msra.mxu0 0.0
      %2868 = vmatprep.subr.mxu0 0.0
      %2869 = vmatpush1.msra.mxu0 0.0
      %2870 = vmatprep.subr.mxu0 0.0
      %2871 = vmatpush1.msra.mxu0 0.0
      %2872 = vmatprep.subr.mxu0 0.0
      %2873 = vmatpush1.msra.mxu0 0.0
      %2874 = vmatprep.subr.mxu0 0.0
      %2875 = vmatpush1.msra.mxu0 0.0
      %2876 = vmatprep.mubr.f32.mxu0 0.0
      %v2877 = vand.u32 %v2075, 4294901760
      %v2878 = vsub.f32 %v2075, %v2877
      %v2879 = vand.u32 %v2878, 4294901760
      %v2880 = vsub.f32 %v2878, %v2879
      %v2881 = vand.u32 %v2880, 4294901760
      %2882 = vmatmul.mubr.f32.gmra.mrb[0].mxu0 %v2881
      %v2883 = vpop.f32.mrb[0].mxu0
      %v2884 = vadd.f32 %v2787, %v2883
      %v2885 = vpop.f32.mrb[0].mxu0
      %2886 = vmatprep.mubr.f32.mxu0 0.0
      %v2887 = vand.u32 %v2076, 4294901760
      %v2888 = vsub.f32 %v2076, %v2887
      %v2889 = vand.u32 %v2888, 4294901760
      %v2890 = vsub.f32 %v2888, %v2889
      %v2891 = vand.u32 %v2890, 4294901760
      %2892 = vmatmul.mubr.f32.gmra.mrb[0].mxu0 %v2891
      %v2893 = vpop.f32.mrb[0].mxu0
      %v2894 = vadd.f32 %v2793, %v2893
      %v2895 = vpop.f32.mrb[0].mxu0
      %2896 = vdwg.mxu0
      %2897 = vmatprep.subr.mxu0 0.0
      %v2898 = vand.u32 %v2077, 4294901760
      %v2899 = vsub.f32 %v2077, %v2898
      %v2900 = vand.u32 %v2899, 4294901760
      %v2901 = vsub.f32 %v2899, %v2900
      %v2902 = vand.u32 %v2901, 4294901760
      %2903 = vmatpush1.msra.mxu0 %v2902
      %2904 = vmatprep.subr.mxu0 0.0
      %v2905 = vand.u32 %v2078, 4294901760
      %v2906 = vsub.f32 %v2078, %v2905
      %v2907 = vand.u32 %v2906, 4294901760
      %v2908 = vsub.f32 %v2906, %v2907
      %v2909 = vand.u32 %v2908, 4294901760
      %2910 = vmatpush1.msra.mxu0 %v2909
      %2911 = vmatprep.subr.mxu0 0.0
      %v2912 = vand.u32 %v2079, 4294901760
      %v2913 = vsub.f32 %v2079, %v2912
      %v2914 = vand.u32 %v2913, 4294901760
      %v2915 = vsub.f32 %v2913, %v2914
      %v2916 = vand.u32 %v2915, 4294901760
      %2917 = vmatpush1.msra.mxu0 %v2916
      %2918 = vmatprep.subr.mxu0 0.0
      %v2919 = vand.u32 %v2080, 4294901760
      %v2920 = vsub.f32 %v2080, %v2919
      %v2921 = vand.u32 %v2920, 4294901760
      %v2922 = vsub.f32 %v2920, %v2921
      %v2923 = vand.u32 %v2922, 4294901760
      %2924 = vmatpush1.msra.mxu0 %v2923
      %2925 = vmatprep.subr.mxu0 0.0
      %v2926 = vand.u32 %v2081, 4294901760
      %v2927 = vsub.f32 %v2081, %v2926
      %v2928 = vand.u32 %v2927, 4294901760
      %v2929 = vsub.f32 %v2927, %v2928
      %v2930 = vand.u32 %v2929, 4294901760
      %2931 = vmatpush1.msra.mxu0 %v2930
      %2932 = vmatprep.subr.mxu0 0.0
      %v2933 = vand.u32 %v2082, 4294901760
      %v2934 = vsub.f32 %v2082, %v2933
      %v2935 = vand.u32 %v2934, 4294901760
      %v2936 = vsub.f32 %v2934, %v2935
      %v2937 = vand.u32 %v2936, 4294901760
      %2938 = vmatpush1.msra.mxu0 %v2937
      %2939 = vmatprep.subr.mxu0 0.0
      %v2940 = vand.u32 %v2083, 4294901760
      %v2941 = vsub.f32 %v2083, %v2940
      %v2942 = vand.u32 %v2941, 4294901760
      %v2943 = vsub.f32 %v2941, %v2942
      %v2944 = vand.u32 %v2943, 4294901760
      %2945 = vmatpush1.msra.mxu0 %v2944
      %2946 = vmatprep.subr.mxu0 0.0
      %v2947 = vand.u32 %v2084, 4294901760
      %v2948 = vsub.f32 %v2084, %v2947
      %v2949 = vand.u32 %v2948, 4294901760
      %v2950 = vsub.f32 %v2948, %v2949
      %v2951 = vand.u32 %v2950, 4294901760
      %2952 = vmatpush1.msra.mxu0 %v2951
      %2953 = vmatprep.subr.mxu0 0.0
      %v2954 = vand.u32 %v2085, 4294901760
      %v2955 = vsub.f32 %v2085, %v2954
      %v2956 = vand.u32 %v2955, 4294901760
      %v2957 = vsub.f32 %v2955, %v2956
      %v2958 = vand.u32 %v2957, 4294901760
      %2959 = vmatpush1.msra.mxu0 %v2958
      %2960 = vmatprep.subr.mxu0 0.0
      %v2961 = vand.u32 %v2086, 4294901760
      %v2962 = vsub.f32 %v2086, %v2961
      %v2963 = vand.u32 %v2962, 4294901760
      %v2964 = vsub.f32 %v2962, %v2963
      %v2965 = vand.u32 %v2964, 4294901760
      %2966 = vmatpush1.msra.mxu0 %v2965
      %2967 = vmatprep.subr.mxu0 0.0
      %v2968 = vand.u32 %v2087, 4294901760
      %v2969 = vsub.f32 %v2087, %v2968
      %v2970 = vand.u32 %v2969, 4294901760
      %v2971 = vsub.f32 %v2969, %v2970
      %v2972 = vand.u32 %v2971, 4294901760
      %2973 = vmatpush1.msra.mxu0 %v2972
      %2974 = vmatprep.subr.mxu0 0.0
      %v2975 = vand.u32 %v2088, 4294901760
      %v2976 = vsub.f32 %v2088, %v2975
      %v2977 = vand.u32 %v2976, 4294901760
      %v2978 = vsub.f32 %v2976, %v2977
      %v2979 = vand.u32 %v2978, 4294901760
      %2980 = vmatpush1.msra.mxu0 %v2979
      %2981 = vmatprep.subr.mxu0 0.0
      %v2982 = vand.u32 %v2089, 4294901760
      %v2983 = vsub.f32 %v2089, %v2982
      %v2984 = vand.u32 %v2983, 4294901760
      %v2985 = vsub.f32 %v2983, %v2984
      %v2986 = vand.u32 %v2985, 4294901760
      %2987 = vmatpush1.msra.mxu0 %v2986
      %2988 = vmatprep.subr.mxu0 0.0
      %v2989 = vand.u32 %v2090, 4294901760
      %v2990 = vsub.f32 %v2090, %v2989
      %v2991 = vand.u32 %v2990, 4294901760
      %v2992 = vsub.f32 %v2990, %v2991
      %v2993 = vand.u32 %v2992, 4294901760
      %2994 = vmatpush1.msra.mxu0 %v2993
      %2995 = vmatprep.subr.mxu0 0.0
      %v2996 = vand.u32 %v2091, 4294901760
      %v2997 = vsub.f32 %v2091, %v2996
      %v2998 = vand.u32 %v2997, 4294901760
      %v2999 = vsub.f32 %v2997, %v2998
      %v3000 = vand.u32 %v2999, 4294901760
      %3001 = vmatpush1.msra.mxu0 %v3000
      %3002 = vmatprep.subr.mxu0 0.0
      %v3003 = vand.u32 %v2092, 4294901760
      %v3004 = vsub.f32 %v2092, %v3003
      %v3005 = vand.u32 %v3004, 4294901760
      %v3006 = vsub.f32 %v3004, %v3005
      %v3007 = vand.u32 %v3006, 4294901760
      %3008 = vmatpush1.msra.mxu0 %v3007
      %3009 = vmatprep.subr.mxu0 0.0
      %3010 = vmatpush1.msra.mxu0 0.0
      %3011 = vmatprep.subr.mxu0 0.0
      %3012 = vmatpush1.msra.mxu0 0.0
      %3013 = vmatprep.subr.mxu0 0.0
      %3014 = vmatpush1.msra.mxu0 0.0
      %3015 = vmatprep.subr.mxu0 0.0
      %3016 = vmatpush1.msra.mxu0 0.0
      %3017 = vmatprep.subr.mxu0 0.0
      %3018 = vmatpush1.msra.mxu0 0.0
      %3019 = vmatprep.subr.mxu0 0.0
      %3020 = vmatpush1.msra.mxu0 0.0
      %3021 = vmatprep.subr.mxu0 0.0
      %3022 = vmatpush1.msra.mxu0 0.0
      %3023 = vmatprep.subr.mxu0 0.0
      %3024 = vmatpush1.msra.mxu0 0.0
      %3025 = vmatprep.subr.mxu0 0.0
      %3026 = vmatpush1.msra.mxu0 0.0
      %3027 = vmatprep.subr.mxu0 0.0
      %3028 = vmatpush1.msra.mxu0 0.0
      %3029 = vmatprep.subr.mxu0 0.0
      %3030 = vmatpush1.msra.mxu0 0.0
      %3031 = vmatprep.subr.mxu0 0.0
      %3032 = vmatpush1.msra.mxu0 0.0
      %3033 = vmatprep.subr.mxu0 0.0
      %3034 = vmatpush1.msra.mxu0 0.0
      %3035 = vmatprep.subr.mxu0 0.0
      %3036 = vmatpush1.msra.mxu0 0.0
      %3037 = vmatprep.subr.mxu0 0.0
      %3038 = vmatpush1.msra.mxu0 0.0
      %3039 = vmatprep.subr.mxu0 0.0
      %3040 = vmatpush1.msra.mxu0 0.0
      %3041 = vmatprep.mubr.f32.mxu0 0.0
      %v3042 = vand.u32 %v2075, 4294901760
      %3043 = vmatmul.mubr.f32.gmra.mrb[0].mxu0 %v3042
      %v3044 = vpop.f32.mrb[0].mxu0
      %v3045 = vadd.f32 %v2884, %v3044
      %v3046 = vpop.f32.mrb[0].mxu0
      %3047 = vmatprep.mubr.f32.mxu0 0.0
      %v3048 = vand.u32 %v2076, 4294901760
      %3049 = vmatmul.mubr.f32.gmra.mrb[0].mxu0 %v3048
      %v3050 = vpop.f32.mrb[0].mxu0
      %v3051 = vadd.f32 %v2894, %v3050
      %v3052 = vpop.f32.mrb[0].mxu0
      %3053 = vdwg.mxu0
      %3054 = vmatprep.subr.mxu0 0.0
      %v3055 = vand.u32 %v2077, 4294901760
      %v3056 = vsub.f32 %v2077, %v3055
      %3057 = vmatpush1.msra.mxu0 %v3056
      %3058 = vmatprep.subr.mxu0 0.0
      %v3059 = vand.u32 %v2078, 4294901760
      %v3060 = vsub.f32 %v2078, %v3059
      %3061 = vmatpush1.msra.mxu0 %v3060
      %3062 = vmatprep.subr.mxu0 0.0
      %v3063 = vand.u32 %v2079, 4294901760
      %v3064 = vsub.f32 %v2079, %v3063
      %3065 = vmatpush1.msra.mxu0 %v3064
      %3066 = vmatprep.subr.mxu0 0.0
      %v3067 = vand.u32 %v2080, 4294901760
      %v3068 = vsub.f32 %v2080, %v3067
      %3069 = vmatpush1.msra.mxu0 %v3068
      %3070 = vmatprep.subr.mxu0 0.0
      %v3071 = vand.u32 %v2081, 4294901760
      %v3072 = vsub.f32 %v2081, %v3071
      %3073 = vmatpush1.msra.mxu0 %v3072
      %3074 = vmatprep.subr.mxu0 0.0
      %v3075 = vand.u32 %v2082, 4294901760
      %v3076 = vsub.f32 %v2082, %v3075
      %3077 = vmatpush1.msra.mxu0 %v3076
      %3078 = vmatprep.subr.mxu0 0.0
      %v3079 = vand.u32 %v2083, 4294901760
      %v3080 = vsub.f32 %v2083, %v3079
      %3081 = vmatpush1.msra.mxu0 %v3080
      %3082 = vmatprep.subr.mxu0 0.0
      %v3083 = vand.u32 %v2084, 4294901760
      %v3084 = vsub.f32 %v2084, %v3083
      %3085 = vmatpush1.msra.mxu0 %v3084
      %3086 = vmatprep.subr.mxu0 0.0
      %v3087 = vand.u32 %v2085, 4294901760
      %v3088 = vsub.f32 %v2085, %v3087
      %3089 = vmatpush1.msra.mxu0 %v3088
      %3090 = vmatprep.subr.mxu0 0.0
      %v3091 = vand.u32 %v2086, 4294901760
      %v3092 = vsub.f32 %v2086, %v3091
      %3093 = vmatpush1.msra.mxu0 %v3092
      %3094 = vmatprep.subr.mxu0 0.0
      %v3095 = vand.u32 %v2087, 4294901760
      %v3096 = vsub.f32 %v2087, %v3095
      %3097 = vmatpush1.msra.mxu0 %v3096
      %3098 = vmatprep.subr.mxu0 0.0
      %v3099 = vand.u32 %v2088, 4294901760
      %v3100 = vsub.f32 %v2088, %v3099
      %3101 = vmatpush1.msra.mxu0 %v3100
      %3102 = vmatprep.subr.mxu0 0.0
      %v3103 = vand.u32 %v2089, 4294901760
      %v3104 = vsub.f32 %v2089, %v3103
      %3105 = vmatpush1.msra.mxu0 %v3104
      %3106 = vmatprep.subr.mxu0 0.0
      %v3107 = vand.u32 %v2090, 4294901760
      %v3108 = vsub.f32 %v2090, %v3107
      %3109 = vmatpush1.msra.mxu0 %v3108
      %3110 = vmatprep.subr.mxu0 0.0
      %v3111 = vand.u32 %v2091, 4294901760
      %v3112 = vsub.f32 %v2091, %v3111
      %3113 = vmatpush1.msra.mxu0 %v3112
      %3114 = vmatprep.subr.mxu0 0.0
      %v3115 = vand.u32 %v2092, 4294901760
      %v3116 = vsub.f32 %v2092, %v3115
      %3117 = vmatpush1.msra.mxu0 %v3116
      %3118 = vmatprep.subr.mxu0 0.0
      %3119 = vmatpush1.msra.mxu0 0.0
      %3120 = vmatprep.subr.mxu0 0.0
      %3121 = vmatpush1.msra.mxu0 0.0
      %3122 = vmatprep.subr.mxu0 0.0
      %3123 = vmatpush1.msra.mxu0 0.0
      %3124 = vmatprep.subr.mxu0 0.0
      %3125 = vmatpush1.msra.mxu0 0.0
      %3126 = vmatprep.subr.mxu0 0.0
      %3127 = vmatpush1.msra.mxu0 0.0
      %3128 = vmatprep.subr.mxu0 0.0
      %3129 = vmatpush1.msra.mxu0 0.0
      %3130 = vmatprep.subr.mxu0 0.0
      %3131 = vmatpush1.msra.mxu0 0.0
      %3132 = vmatprep.subr.mxu0 0.0
      %3133 = vmatpush1.msra.mxu0 0.0
      %3134 = vmatprep.subr.mxu0 0.0
      %3135 = vmatpush1.msra.mxu0 0.0
      %3136 = vmatprep.subr.mxu0 0.0
      %3137 = vmatpush1.msra.mxu0 0.0
      %3138 = vmatprep.subr.mxu0 0.0
      %3139 = vmatpush1.msra.mxu0 0.0
      %3140 = vmatprep.subr.mxu0 0.0
      %3141 = vmatpush1.msra.mxu0 0.0
      %3142 = vmatprep.subr.mxu0 0.0
      %3143 = vmatpush1.msra.mxu0 0.0
      %3144 = vmatprep.subr.mxu0 0.0
      %3145 = vmatpush1.msra.mxu0 0.0
      %3146 = vmatprep.subr.mxu0 0.0
      %3147 = vmatpush1.msra.mxu0 0.0
      %3148 = vmatprep.subr.mxu0 0.0
      %3149 = vmatpush1.msra.mxu0 0.0
      %3150 = vmatprep.mubr.f32.mxu0 0.0
      %v3151 = vand.u32 %v2075, 4294901760
      %v3152 = vsub.f32 %v2075, %v3151
      %3153 = vmatmul.mubr.f32.gmra.mrb[0].mxu0 %v3152
      %v3154 = vpop.f32.mrb[0].mxu0
      %v3155 = vadd.f32 %v3045, %v3154
      %v3156 = vpop.f32.mrb[0].mxu0
      %3157 = vmatprep.mubr.f32.mxu0 0.0
      %v3158 = vand.u32 %v2076, 4294901760
      %v3159 = vsub.f32 %v2076, %v3158
      %3160 = vmatmul.mubr.f32.gmra.mrb[0].mxu0 %v3159
      %v3161 = vpop.f32.mrb[0].mxu0
      %v3162 = vadd.f32 %v3051, %v3161
      %v3163 = vpop.f32.mrb[0].mxu0
      %3164 = vdwg.mxu0
      %3165 = vmatprep.subr.mxu0 0.0
      %v3166 = vand.u32 %v2077, 4294901760
      %3167 = vmatpush1.msra.mxu0 %v3166
      %3168 = vmatprep.subr.mxu0 0.0
      %v3169 = vand.u32 %v2078, 4294901760
      %3170 = vmatpush1.msra.mxu0 %v3169
      %3171 = vmatprep.subr.mxu0 0.0
      %v3172 = vand.u32 %v2079, 4294901760
      %3173 = vmatpush1.msra.mxu0 %v3172
      %3174 = vmatprep.subr.mxu0 0.0
      %v3175 = vand.u32 %v2080, 4294901760
      %3176 = vmatpush1.msra.mxu0 %v3175
      %3177 = vmatprep.subr.mxu0 0.0
      %v3178 = vand.u32 %v2081, 4294901760
      %3179 = vmatpush1.msra.mxu0 %v3178
      %3180 = vmatprep.subr.mxu0 0.0
      %v3181 = vand.u32 %v2082, 4294901760
      %3182 = vmatpush1.msra.mxu0 %v3181
      %3183 = vmatprep.subr.mxu0 0.0
      %v3184 = vand.u32 %v2083, 4294901760
      %3185 = vmatpush1.msra.mxu0 %v3184
      %3186 = vmatprep.subr.mxu0 0.0
      %v3187 = vand.u32 %v2084, 4294901760
      %3188 = vmatpush1.msra.mxu0 %v3187
      %3189 = vmatprep.subr.mxu0 0.0
      %v3190 = vand.u32 %v2085, 4294901760
      %3191 = vmatpush1.msra.mxu0 %v3190
      %3192 = vmatprep.subr.mxu0 0.0
      %v3193 = vand.u32 %v2086, 4294901760
      %3194 = vmatpush1.msra.mxu0 %v3193
      %3195 = vmatprep.subr.mxu0 0.0
      %v3196 = vand.u32 %v2087, 4294901760
      %3197 = vmatpush1.msra.mxu0 %v3196
      %3198 = vmatprep.subr.mxu0 0.0
      %v3199 = vand.u32 %v2088, 4294901760
      %3200 = vmatpush1.msra.mxu0 %v3199
      %3201 = vmatprep.subr.mxu0 0.0
      %v3202 = vand.u32 %v2089, 4294901760
      %3203 = vmatpush1.msra.mxu0 %v3202
      %3204 = vmatprep.subr.mxu0 0.0
      %v3205 = vand.u32 %v2090, 4294901760
      %3206 = vmatpush1.msra.mxu0 %v3205
      %3207 = vmatprep.subr.mxu0 0.0
      %v3208 = vand.u32 %v2091, 4294901760
      %3209 = vmatpush1.msra.mxu0 %v3208
      %3210 = vmatprep.subr.mxu0 0.0
      %v3211 = vand.u32 %v2092, 4294901760
      %3212 = vmatpush1.msra.mxu0 %v3211
      %3213 = vmatprep.subr.mxu0 0.0
      %3214 = vmatpush1.msra.mxu0 0.0
      %3215 = vmatprep.subr.mxu0 0.0
      %3216 = vmatpush1.msra.mxu0 0.0
      %3217 = vmatprep.subr.mxu0 0.0
      %3218 = vmatpush1.msra.mxu0 0.0
      %3219 = vmatprep.subr.mxu0 0.0
      %3220 = vmatpush1.msra.mxu0 0.0
      %3221 = vmatprep.subr.mxu0 0.0
      %3222 = vmatpush1.msra.mxu0 0.0
      %3223 = vmatprep.subr.mxu0 0.0
      %3224 = vmatpush1.msra.mxu0 0.0
      %3225 = vmatprep.subr.mxu0 0.0
      %3226 = vmatpush1.msra.mxu0 0.0
      %3227 = vmatprep.subr.mxu0 0.0
      %3228 = vmatpush1.msra.mxu0 0.0
      %3229 = vmatprep.subr.mxu0 0.0
      %3230 = vmatpush1.msra.mxu0 0.0
      %3231 = vmatprep.subr.mxu0 0.0
      %3232 = vmatpush1.msra.mxu0 0.0
      %3233 = vmatprep.subr.mxu0 0.0
      %3234 = vmatpush1.msra.mxu0 0.0
      %3235 = vmatprep.subr.mxu0 0.0
      %3236 = vmatpush1.msra.mxu0 0.0
      %3237 = vmatprep.subr.mxu0 0.0
      %3238 = vmatpush1.msra.mxu0 0.0
      %3239 = vmatprep.subr.mxu0 0.0
      %3240 = vmatpush1.msra.mxu0 0.0
      %3241 = vmatprep.subr.mxu0 0.0
      %3242 = vmatpush1.msra.mxu0 0.0
      %3243 = vmatprep.subr.mxu0 0.0
      %3244 = vmatpush1.msra.mxu0 0.0
      %3245 = vmatprep.mubr.f32.mxu0 0.0
      %v3246 = vand.u32 %v2075, 4294901760
      %v3247 = vsub.f32 %v2075, %v3246
      %v3248 = vand.u32 %v3247, 4294901760
      %3249 = vmatmul.mubr.f32.gmra.mrb[0].mxu0 %v3248
      %v3250 = vpop.f32.mrb[0].mxu0
      %v3251 = vadd.f32 %v3155, %v3250
      %v3252 = vpop.f32.mrb[0].mxu0
      %3253 = vmatprep.mubr.f32.mxu0 0.0
      %v3254 = vand.u32 %v2076, 4294901760
      %v3255 = vsub.f32 %v2076, %v3254
      %v3256 = vand.u32 %v3255, 4294901760
      %3257 = vmatmul.mubr.f32.gmra.mrb[0].mxu0 %v3256
      %v3258 = vpop.f32.mrb[0].mxu0
      %v3259 = vadd.f32 %v3162, %v3258
      %v3260 = vpop.f32.mrb[0].mxu0
      %3261 = vdwg.mxu0
      %3262 = vmatprep.subr.mxu0 0.0
      %v3263 = vand.u32 %v2077, 4294901760
      %v3264 = vsub.f32 %v2077, %v3263
      %v3265 = vand.u32 %v3264, 4294901760
      %3266 = vmatpush1.msra.mxu0 %v3265
      %3267 = vmatprep.subr.mxu0 0.0
      %v3268 = vand.u32 %v2078, 4294901760
      %v3269 = vsub.f32 %v2078, %v3268
      %v3270 = vand.u32 %v3269, 4294901760
      %3271 = vmatpush1.msra.mxu0 %v3270
      %3272 = vmatprep.subr.mxu0 0.0
      %v3273 = vand.u32 %v2079, 4294901760
      %v3274 = vsub.f32 %v2079, %v3273
      %v3275 = vand.u32 %v3274, 4294901760
      %3276 = vmatpush1.msra.mxu0 %v3275
      %3277 = vmatprep.subr.mxu0 0.0
      %v3278 = vand.u32 %v2080, 4294901760
      %v3279 = vsub.f32 %v2080, %v3278
      %v3280 = vand.u32 %v3279, 4294901760
      %3281 = vmatpush1.msra.mxu0 %v3280
      %3282 = vmatprep.subr.mxu0 0.0
      %v3283 = vand.u32 %v2081, 4294901760
      %v3284 = vsub.f32 %v2081, %v3283
      %v3285 = vand.u32 %v3284, 4294901760
      %3286 = vmatpush1.msra.mxu0 %v3285
      %3287 = vmatprep.subr.mxu0 0.0
      %v3288 = vand.u32 %v2082, 4294901760
      %v3289 = vsub.f32 %v2082, %v3288
      %v3290 = vand.u32 %v3289, 4294901760
      %3291 = vmatpush1.msra.mxu0 %v3290
      %3292 = vmatprep.subr.mxu0 0.0
      %v3293 = vand.u32 %v2083, 4294901760
      %v3294 = vsub.f32 %v2083, %v3293
      %v3295 = vand.u32 %v3294, 4294901760
      %3296 = vmatpush1.msra.mxu0 %v3295
      %3297 = vmatprep.subr.mxu0 0.0
      %v3298 = vand.u32 %v2084, 4294901760
      %v3299 = vsub.f32 %v2084, %v3298
      %v3300 = vand.u32 %v3299, 4294901760
      %3301 = vmatpush1.msra.mxu0 %v3300
      %3302 = vmatprep.subr.mxu0 0.0
      %v3303 = vand.u32 %v2085, 4294901760
      %v3304 = vsub.f32 %v2085, %v3303
      %v3305 = vand.u32 %v3304, 4294901760
      %3306 = vmatpush1.msra.mxu0 %v3305
      %3307 = vmatprep.subr.mxu0 0.0
      %v3308 = vand.u32 %v2086, 4294901760
      %v3309 = vsub.f32 %v2086, %v3308
      %v3310 = vand.u32 %v3309, 4294901760
      %3311 = vmatpush1.msra.mxu0 %v3310
      %3312 = vmatprep.subr.mxu0 0.0
      %v3313 = vand.u32 %v2087, 4294901760
      %v3314 = vsub.f32 %v2087, %v3313
      %v3315 = vand.u32 %v3314, 4294901760
      %3316 = vmatpush1.msra.mxu0 %v3315
      %3317 = vmatprep.subr.mxu0 0.0
      %v3318 = vand.u32 %v2088, 4294901760
      %v3319 = vsub.f32 %v2088, %v3318
      %v3320 = vand.u32 %v3319, 4294901760
      %3321 = vmatpush1.msra.mxu0 %v3320
      %3322 = vmatprep.subr.mxu0 0.0
      %v3323 = vand.u32 %v2089, 4294901760
      %v3324 = vsub.f32 %v2089, %v3323
      %v3325 = vand.u32 %v3324, 4294901760
      %3326 = vmatpush1.msra.mxu0 %v3325
      %3327 = vmatprep.subr.mxu0 0.0
      %v3328 = vand.u32 %v2090, 4294901760
      %v3329 = vsub.f32 %v2090, %v3328
      %v3330 = vand.u32 %v3329, 4294901760
      %3331 = vmatpush1.msra.mxu0 %v3330
      %3332 = vmatprep.subr.mxu0 0.0
      %v3333 = vand.u32 %v2091, 4294901760
      %v3334 = vsub.f32 %v2091, %v3333
      %v3335 = vand.u32 %v3334, 4294901760
      %3336 = vmatpush1.msra.mxu0 %v3335
      %3337 = vmatprep.subr.mxu0 0.0
      %v3338 = vand.u32 %v2092, 4294901760
      %v3339 = vsub.f32 %v2092, %v3338
      %v3340 = vand.u32 %v3339, 4294901760
      %3341 = vmatpush1.msra.mxu0 %v3340
      %3342 = vmatprep.subr.mxu0 0.0
      %3343 = vmatpush1.msra.mxu0 0.0
      %3344 = vmatprep.subr.mxu0 0.0
      %3345 = vmatpush1.msra.mxu0 0.0
      %3346 = vmatprep.subr.mxu0 0.0
      %3347 = vmatpush1.msra.mxu0 0.0
      %3348 = vmatprep.subr.mxu0 0.0
      %3349 = vmatpush1.msra.mxu0 0.0
      %3350 = vmatprep.subr.mxu0 0.0
      %3351 = vmatpush1.msra.mxu0 0.0
      %3352 = vmatprep.subr.mxu0 0.0
      %3353 = vmatpush1.msra.mxu0 0.0
      %3354 = vmatprep.subr.mxu0 0.0
      %3355 = vmatpush1.msra.mxu0 0.0
      %3356 = vmatprep.subr.mxu0 0.0
      %3357 = vmatpush1.msra.mxu0 0.0
      %3358 = vmatprep.subr.mxu0 0.0
      %3359 = vmatpush1.msra.mxu0 0.0
      %3360 = vmatprep.subr.mxu0 0.0
      %3361 = vmatpush1.msra.mxu0 0.0
      %3362 = vmatprep.subr.mxu0 0.0
      %3363 = vmatpush1.msra.mxu0 0.0
      %3364 = vmatprep.subr.mxu0 0.0
      %3365 = vmatpush1.msra.mxu0 0.0
      %3366 = vmatprep.subr.mxu0 0.0
      %3367 = vmatpush1.msra.mxu0 0.0
      %3368 = vmatprep.subr.mxu0 0.0
      %3369 = vmatpush1.msra.mxu0 0.0
      %3370 = vmatprep.subr.mxu0 0.0
      %3371 = vmatpush1.msra.mxu0 0.0
      %3372 = vmatprep.subr.mxu0 0.0
      %3373 = vmatpush1.msra.mxu0 0.0
      %3374 = vmatprep.mubr.f32.mxu0 0.0
      %v3375 = vand.u32 %v2075, 4294901760
      %3376 = vmatmul.mubr.f32.gmra.mrb[0].mxu0 %v3375
      %v3377 = vpop.f32.mrb[0].mxu0
      %v3378 = vadd.f32 %v3251, %v3377
      %v3379 = vpop.f32.mrb[0].mxu0
      %3380 = vmatprep.mubr.f32.mxu0 0.0
      %v3381 = vand.u32 %v2076, 4294901760
      %3382 = vmatmul.mubr.f32.gmra.mrb[0].mxu0 %v3381
      %v3383 = vpop.f32.mrb[0].mxu0
      %v3384 = vadd.f32 %v3259, %v3383
      %v3385 = vpop.f32.mrb[0].mxu0
      %3386 = vdwg.mxu0
      %3387 = vmatprep.subr.mxu0 0.0
      %v3388 = vand.u32 %v2077, 4294901760
      %3389 = vmatpush1.msra.mxu0 %v3388
      %3390 = vmatprep.subr.mxu0 0.0
      %v3391 = vand.u32 %v2078, 4294901760
      %3392 = vmatpush1.msra.mxu0 %v3391
      %3393 = vmatprep.subr.mxu0 0.0
      %v3394 = vand.u32 %v2079, 4294901760
      %3395 = vmatpush1.msra.mxu0 %v3394
      %3396 = vmatprep.subr.mxu0 0.0
      %v3397 = vand.u32 %v2080, 4294901760
      %3398 = vmatpush1.msra.mxu0 %v3397
      %3399 = vmatprep.subr.mxu0 0.0
      %v3400 = vand.u32 %v2081, 4294901760
      %3401 = vmatpush1.msra.mxu0 %v3400
      %3402 = vmatprep.subr.mxu0 0.0
      %v3403 = vand.u32 %v2082, 4294901760
      %3404 = vmatpush1.msra.mxu0 %v3403
      %3405 = vmatprep.subr.mxu0 0.0
      %v3406 = vand.u32 %v2083, 4294901760
      %3407 = vmatpush1.msra.mxu0 %v3406
      %3408 = vmatprep.subr.mxu0 0.0
      %v3409 = vand.u32 %v2084, 4294901760
      %3410 = vmatpush1.msra.mxu0 %v3409
      %3411 = vmatprep.subr.mxu0 0.0
      %v3412 = vand.u32 %v2085, 4294901760
      %3413 = vmatpush1.msra.mxu0 %v3412
      %3414 = vmatprep.subr.mxu0 0.0
      %v3415 = vand.u32 %v2086, 4294901760
      %3416 = vmatpush1.msra.mxu0 %v3415
      %3417 = vmatprep.subr.mxu0 0.0
      %v3418 = vand.u32 %v2087, 4294901760
      %3419 = vmatpush1.msra.mxu0 %v3418
      %3420 = vmatprep.subr.mxu0 0.0
      %v3421 = vand.u32 %v2088, 4294901760
      %3422 = vmatpush1.msra.mxu0 %v3421
      %3423 = vmatprep.subr.mxu0 0.0
      %v3424 = vand.u32 %v2089, 4294901760
      %3425 = vmatpush1.msra.mxu0 %v3424
      %3426 = vmatprep.subr.mxu0 0.0
      %v3427 = vand.u32 %v2090, 4294901760
      %3428 = vmatpush1.msra.mxu0 %v3427
      %3429 = vmatprep.subr.mxu0 0.0
      %v3430 = vand.u32 %v2091, 4294901760
      %3431 = vmatpush1.msra.mxu0 %v3430
      %3432 = vmatprep.subr.mxu0 0.0
      %v3433 = vand.u32 %v2092, 4294901760
      %3434 = vmatpush1.msra.mxu0 %v3433
      %3435 = vmatprep.subr.mxu0 0.0
      %3436 = vmatpush1.msra.mxu0 0.0
      %3437 = vmatprep.subr.mxu0 0.0
      %3438 = vmatpush1.msra.mxu0 0.0
      %3439 = vmatprep.subr.mxu0 0.0
      %3440 = vmatpush1.msra.mxu0 0.0
      %3441 = vmatprep.subr.mxu0 0.0
      %3442 = vmatpush1.msra.mxu0 0.0
      %3443 = vmatprep.subr.mxu0 0.0
      %3444 = vmatpush1.msra.mxu0 0.0
      %3445 = vmatprep.subr.mxu0 0.0
      %3446 = vmatpush1.msra.mxu0 0.0
      %3447 = vmatprep.subr.mxu0 0.0
      %3448 = vmatpush1.msra.mxu0 0.0
      %3449 = vmatprep.subr.mxu0 0.0
      %3450 = vmatpush1.msra.mxu0 0.0
      %3451 = vmatprep.subr.mxu0 0.0
      %3452 = vmatpush1.msra.mxu0 0.0
      %3453 = vmatprep.subr.mxu0 0.0
      %3454 = vmatpush1.msra.mxu0 0.0
      %3455 = vmatprep.subr.mxu0 0.0
      %3456 = vmatpush1.msra.mxu0 0.0
      %3457 = vmatprep.subr.mxu0 0.0
      %3458 = vmatpush1.msra.mxu0 0.0
      %3459 = vmatprep.subr.mxu0 0.0
      %3460 = vmatpush1.msra.mxu0 0.0
      %3461 = vmatprep.subr.mxu0 0.0
      %3462 = vmatpush1.msra.mxu0 0.0
      %3463 = vmatprep.subr.mxu0 0.0
      %3464 = vmatpush1.msra.mxu0 0.0
      %3465 = vmatprep.subr.mxu0 0.0
      %3466 = vmatpush1.msra.mxu0 0.0
      %3467 = vmatprep.mubr.f32.mxu0 0.0
      %v3468 = vand.u32 %v2075, 4294901760
      %3469 = vmatmul.mubr.f32.gmra.mrb[0].mxu0 %v3468
      %v3470 = vpop.f32.mrb[0].mxu0
      %v3471 = vadd.f32 %v3378, %v3470
      %v3472 = vpop.f32.mrb[0].mxu0
      %3473 = vmatprep.mubr.f32.mxu0 0.0
      %v3474 = vand.u32 %v2076, 4294901760
      %3475 = vmatmul.mubr.f32.gmra.mrb[0].mxu0 %v3474
      %v3476 = vpop.f32.mrb[0].mxu0
      %v3477 = vadd.f32 %v3384, %v3476
      %v3478 = vpop.f32.mrb[0].mxu0
      %3479 = vdwg.mxu0
      %v3480 = vld [vmem:[#allocation2 + $0x2] sm:$0xff]
      %v3481 = vld [vmem:[#allocation2 + $0xa] sm:$0xff]
      %s3482 = scalar_lea.vmem %s3, 256
      %v3483 = vld [vmem:[%s3482] sm:$0xff]
      %v3484 = vld [vmem:[%s3482 + $0x8] sm:$0xff]
      %v3485 = vld [vmem:[%s3482 + $0x10] sm:$0xff]
      %v3486 = vld [vmem:[%s3482 + $0x18] sm:$0xff]
      %v3487 = vld [vmem:[%s3482 + $0x20] sm:$0xff]
      %v3488 = vld [vmem:[%s3482 + $0x28] sm:$0xff]
      %v3489 = vld [vmem:[%s3482 + $0x30] sm:$0xff]
      %v3490 = vld [vmem:[%s3482 + $0x38] sm:$0xff]
      %v3491 = vld [vmem:[%s3482 + $0x40] sm:$0xff]
      %v3492 = vld [vmem:[%s3482 + $0x48] sm:$0xff]
      %v3493 = vld [vmem:[%s3482 + $0x50] sm:$0xff]
      %v3494 = vld [vmem:[%s3482 + $0x58] sm:$0xff]
      %v3495 = vld [vmem:[%s3482 + $0x60] sm:$0xff]
      %v3496 = vld [vmem:[%s3482 + $0x68] sm:$0xff]
      %v3497 = vld [vmem:[%s3482 + $0x70] sm:$0xff]
      %v3498 = vld [vmem:[%s3482 + $0x78] sm:$0xff]
      %3499 = vmatprep.subr.mxu0 0.0
      %v3500 = vand.u32 %v3483, 4294901760
      %3501 = vmatpush1.msra.mxu0 %v3500
      %3502 = vmatprep.subr.mxu0 0.0
      %v3503 = vand.u32 %v3484, 4294901760
      %3504 = vmatpush1.msra.mxu0 %v3503
      %3505 = vmatprep.subr.mxu0 0.0
      %v3506 = vand.u32 %v3485, 4294901760
      %3507 = vmatpush1.msra.mxu0 %v3506
      %3508 = vmatprep.subr.mxu0 0.0
      %v3509 = vand.u32 %v3486, 4294901760
      %3510 = vmatpush1.msra.mxu0 %v3509
      %3511 = vmatprep.subr.mxu0 0.0
      %v3512 = vand.u32 %v3487, 4294901760
      %3513 = vmatpush1.msra.mxu0 %v3512
      %3514 = vmatprep.subr.mxu0 0.0
      %v3515 = vand.u32 %v3488, 4294901760
      %3516 = vmatpush1.msra.mxu0 %v3515
      %3517 = vmatprep.subr.mxu0 0.0
      %v3518 = vand.u32 %v3489, 4294901760
      %3519 = vmatpush1.msra.mxu0 %v3518
      %3520 = vmatprep.subr.mxu0 0.0
      %v3521 = vand.u32 %v3490, 4294901760
      %3522 = vmatpush1.msra.mxu0 %v3521
      %3523 = vmatprep.subr.mxu0 0.0
      %v3524 = vand.u32 %v3491, 4294901760
      %3525 = vmatpush1.msra.mxu0 %v3524
      %3526 = vmatprep.subr.mxu0 0.0
      %v3527 = vand.u32 %v3492, 4294901760
      %3528 = vmatpush1.msra.mxu0 %v3527
      %3529 = vmatprep.subr.mxu0 0.0
      %v3530 = vand.u32 %v3493, 4294901760
      %3531 = vmatpush1.msra.mxu0 %v3530
      %3532 = vmatprep.subr.mxu0 0.0
      %v3533 = vand.u32 %v3494, 4294901760
      %3534 = vmatpush1.msra.mxu0 %v3533
      %3535 = vmatprep.subr.mxu0 0.0
      %v3536 = vand.u32 %v3495, 4294901760
      %3537 = vmatpush1.msra.mxu0 %v3536
      %3538 = vmatprep.subr.mxu0 0.0
      %v3539 = vand.u32 %v3496, 4294901760
      %3540 = vmatpush1.msra.mxu0 %v3539
      %3541 = vmatprep.subr.mxu0 0.0
      %v3542 = vand.u32 %v3497, 4294901760
      %3543 = vmatpush1.msra.mxu0 %v3542
      %3544 = vmatprep.subr.mxu0 0.0
      %v3545 = vand.u32 %v3498, 4294901760
      %3546 = vmatpush1.msra.mxu0 %v3545
      %3547 = vmatprep.subr.mxu0 0.0
      %3548 = vmatpush1.msra.mxu0 0.0
      %3549 = vmatprep.subr.mxu0 0.0
      %3550 = vmatpush1.msra.mxu0 0.0
      %3551 = vmatprep.subr.mxu0 0.0
      %3552 = vmatpush1.msra.mxu0 0.0
      %3553 = vmatprep.subr.mxu0 0.0
      %3554 = vmatpush1.msra.mxu0 0.0
      %3555 = vmatprep.subr.mxu0 0.0
      %3556 = vmatpush1.msra.mxu0 0.0
      %3557 = vmatprep.subr.mxu0 0.0
      %3558 = vmatpush1.msra.mxu0 0.0
      %3559 = vmatprep.subr.mxu0 0.0
      %3560 = vmatpush1.msra.mxu0 0.0
      %3561 = vmatprep.subr.mxu0 0.0
      %3562 = vmatpush1.msra.mxu0 0.0
      %3563 = vmatprep.subr.mxu0 0.0
      %3564 = vmatpush1.msra.mxu0 0.0
      %3565 = vmatprep.subr.mxu0 0.0
      %3566 = vmatpush1.msra.mxu0 0.0
      %3567 = vmatprep.subr.mxu0 0.0
      %3568 = vmatpush1.msra.mxu0 0.0
      %3569 = vmatprep.subr.mxu0 0.0
      %3570 = vmatpush1.msra.mxu0 0.0
      %3571 = vmatprep.subr.mxu0 0.0
      %3572 = vmatpush1.msra.mxu0 0.0
      %3573 = vmatprep.subr.mxu0 0.0
      %3574 = vmatpush1.msra.mxu0 0.0
      %3575 = vmatprep.subr.mxu0 0.0
      %3576 = vmatpush1.msra.mxu0 0.0
      %3577 = vmatprep.subr.mxu0 0.0
      %3578 = vmatpush1.msra.mxu0 0.0
      %3579 = vmatprep.mubr.f32.mxu0 0.0
      %v3580 = vand.u32 %v3480, 4294901760
      %v3581 = vsub.f32 %v3480, %v3580
      %v3582 = vand.u32 %v3581, 4294901760
      %v3583 = vsub.f32 %v3581, %v3582
      %v3584 = vand.u32 %v3583, 4294901760
      %3585 = vmatmul.mubr.f32.gmra.mrb[0].mxu0 %v3584
      %v3586 = vpop.f32.mrb[0].mxu0
      %v3587 = vadd.f32 0.0, %v3586
      %v3588 = vpop.f32.mrb[0].mxu0
      %3589 = vmatprep.mubr.f32.mxu0 0.0
      %v3590 = vand.u32 %v3481, 4294901760
      %v3591 = vsub.f32 %v3481, %v3590
      %v3592 = vand.u32 %v3591, 4294901760
      %v3593 = vsub.f32 %v3591, %v3592
      %v3594 = vand.u32 %v3593, 4294901760
      %3595 = vmatmul.mubr.f32.gmra.mrb[0].mxu0 %v3594
      %v3596 = vpop.f32.mrb[0].mxu0
      %v3597 = vadd.f32 0.0, %v3596
      %v3598 = vpop.f32.mrb[0].mxu0
      %3599 = vdwg.mxu0
      %3600 = vmatprep.subr.mxu0 0.0
      %v3601 = vand.u32 %v3483, 4294901760
      %v3602 = vsub.f32 %v3483, %v3601
      %v3603 = vand.u32 %v3602, 4294901760
      %v3604 = vsub.f32 %v3602, %v3603
      %v3605 = vand.u32 %v3604, 4294901760
      %3606 = vmatpush1.msra.mxu0 %v3605
      %3607 = vmatprep.subr.mxu0 0.0
      %v3608 = vand.u32 %v3484, 4294901760
      %v3609 = vsub.f32 %v3484, %v3608
      %v3610 = vand.u32 %v3609, 4294901760
      %v3611 = vsub.f32 %v3609, %v3610
      %v3612 = vand.u32 %v3611, 4294901760
      %3613 = vmatpush1.msra.mxu0 %v3612
      %3614 = vmatprep.subr.mxu0 0.0
      %v3615 = vand.u32 %v3485, 4294901760
      %v3616 = vsub.f32 %v3485, %v3615
      %v3617 = vand.u32 %v3616, 4294901760
      %v3618 = vsub.f32 %v3616, %v3617
      %v3619 = vand.u32 %v3618, 4294901760
      %3620 = vmatpush1.msra.mxu0 %v3619
      %3621 = vmatprep.subr.mxu0 0.0
      %v3622 = vand.u32 %v3486, 4294901760
      %v3623 = vsub.f32 %v3486, %v3622
      %v3624 = vand.u32 %v3623, 4294901760
      %v3625 = vsub.f32 %v3623, %v3624
      %v3626 = vand.u32 %v3625, 4294901760
      %3627 = vmatpush1.msra.mxu0 %v3626
      %3628 = vmatprep.subr.mxu0 0.0
      %v3629 = vand.u32 %v3487, 4294901760
      %v3630 = vsub.f32 %v3487, %v3629
      %v3631 = vand.u32 %v3630, 4294901760
      %v3632 = vsub.f32 %v3630, %v3631
      %v3633 = vand.u32 %v3632, 4294901760
      %3634 = vmatpush1.msra.mxu0 %v3633
      %3635 = vmatprep.subr.mxu0 0.0
      %v3636 = vand.u32 %v3488, 4294901760
      %v3637 = vsub.f32 %v3488, %v3636
      %v3638 = vand.u32 %v3637, 4294901760
      %v3639 = vsub.f32 %v3637, %v3638
      %v3640 = vand.u32 %v3639, 4294901760
      %3641 = vmatpush1.msra.mxu0 %v3640
      %3642 = vmatprep.subr.mxu0 0.0
      %v3643 = vand.u32 %v3489, 4294901760
      %v3644 = vsub.f32 %v3489, %v3643
      %v3645 = vand.u32 %v3644, 4294901760
      %v3646 = vsub.f32 %v3644, %v3645
      %v3647 = vand.u32 %v3646, 4294901760
      %3648 = vmatpush1.msra.mxu0 %v3647
      %3649 = vmatprep.subr.mxu0 0.0
      %v3650 = vand.u32 %v3490, 4294901760
      %v3651 = vsub.f32 %v3490, %v3650
      %v3652 = vand.u32 %v3651, 4294901760
      %v3653 = vsub.f32 %v3651, %v3652
      %v3654 = vand.u32 %v3653, 4294901760
      %3655 = vmatpush1.msra.mxu0 %v3654
      %3656 = vmatprep.subr.mxu0 0.0
      %v3657 = vand.u32 %v3491, 4294901760
      %v3658 = vsub.f32 %v3491, %v3657
      %v3659 = vand.u32 %v3658, 4294901760
      %v3660 = vsub.f32 %v3658, %v3659
      %v3661 = vand.u32 %v3660, 4294901760
      %3662 = vmatpush1.msra.mxu0 %v3661
      %3663 = vmatprep.subr.mxu0 0.0
      %v3664 = vand.u32 %v3492, 4294901760
      %v3665 = vsub.f32 %v3492, %v3664
      %v3666 = vand.u32 %v3665, 4294901760
      %v3667 = vsub.f32 %v3665, %v3666
      %v3668 = vand.u32 %v3667, 4294901760
      %3669 = vmatpush1.msra.mxu0 %v3668
      %3670 = vmatprep.subr.mxu0 0.0
      %v3671 = vand.u32 %v3493, 4294901760
      %v3672 = vsub.f32 %v3493, %v3671
      %v3673 = vand.u32 %v3672, 4294901760
      %v3674 = vsub.f32 %v3672, %v3673
      %v3675 = vand.u32 %v3674, 4294901760
      %3676 = vmatpush1.msra.mxu0 %v3675
      %3677 = vmatprep.subr.mxu0 0.0
      %v3678 = vand.u32 %v3494, 4294901760
      %v3679 = vsub.f32 %v3494, %v3678
      %v3680 = vand.u32 %v3679, 4294901760
      %v3681 = vsub.f32 %v3679, %v3680
      %v3682 = vand.u32 %v3681, 4294901760
      %3683 = vmatpush1.msra.mxu0 %v3682
      %3684 = vmatprep.subr.mxu0 0.0
      %v3685 = vand.u32 %v3495, 4294901760
      %v3686 = vsub.f32 %v3495, %v3685
      %v3687 = vand.u32 %v3686, 4294901760
      %v3688 = vsub.f32 %v3686, %v3687
      %v3689 = vand.u32 %v3688, 4294901760
      %3690 = vmatpush1.msra.mxu0 %v3689
      %3691 = vmatprep.subr.mxu0 0.0
      %v3692 = vand.u32 %v3496, 4294901760
      %v3693 = vsub.f32 %v3496, %v3692
      %v3694 = vand.u32 %v3693, 4294901760
      %v3695 = vsub.f32 %v3693, %v3694
      %v3696 = vand.u32 %v3695, 4294901760
      %3697 = vmatpush1.msra.mxu0 %v3696
      %3698 = vmatprep.subr.mxu0 0.0
      %v3699 = vand.u32 %v3497, 4294901760
      %v3700 = vsub.f32 %v3497, %v3699
      %v3701 = vand.u32 %v3700, 4294901760
      %v3702 = vsub.f32 %v3700, %v3701
      %v3703 = vand.u32 %v3702, 4294901760
      %3704 = vmatpush1.msra.mxu0 %v3703
      %3705 = vmatprep.subr.mxu0 0.0
      %v3706 = vand.u32 %v3498, 4294901760
      %v3707 = vsub.f32 %v3498, %v3706
      %v3708 = vand.u32 %v3707, 4294901760
      %v3709 = vsub.f32 %v3707, %v3708
      %v3710 = vand.u32 %v3709, 4294901760
      %3711 = vmatpush1.msra.mxu0 %v3710
      %3712 = vmatprep.subr.mxu0 0.0
      %3713 = vmatpush1.msra.mxu0 0.0
      %3714 = vmatprep.subr.mxu0 0.0
      %3715 = vmatpush1.msra.mxu0 0.0
      %3716 = vmatprep.subr.mxu0 0.0
      %3717 = vmatpush1.msra.mxu0 0.0
      %3718 = vmatprep.subr.mxu0 0.0
      %3719 = vmatpush1.msra.mxu0 0.0
      %3720 = vmatprep.subr.mxu0 0.0
      %3721 = vmatpush1.msra.mxu0 0.0
      %3722 = vmatprep.subr.mxu0 0.0
      %3723 = vmatpush1.msra.mxu0 0.0
      %3724 = vmatprep.subr.mxu0 0.0
      %3725 = vmatpush1.msra.mxu0 0.0
      %3726 = vmatprep.subr.mxu0 0.0
      %3727 = vmatpush1.msra.mxu0 0.0
      %3728 = vmatprep.subr.mxu0 0.0
      %3729 = vmatpush1.msra.mxu0 0.0
      %3730 = vmatprep.subr.mxu0 0.0
      %3731 = vmatpush1.msra.mxu0 0.0
      %3732 = vmatprep.subr.mxu0 0.0
      %3733 = vmatpush1.msra.mxu0 0.0
      %3734 = vmatprep.subr.mxu0 0.0
      %3735 = vmatpush1.msra.mxu0 0.0
      %3736 = vmatprep.subr.mxu0 0.0
      %3737 = vmatpush1.msra.mxu0 0.0
      %3738 = vmatprep.subr.mxu0 0.0
      %3739 = vmatpush1.msra.mxu0 0.0
      %3740 = vmatprep.subr.mxu0 0.0
      %3741 = vmatpush1.msra.mxu0 0.0
      %3742 = vmatprep.subr.mxu0 0.0
      %3743 = vmatpush1.msra.mxu0 0.0
      %3744 = vmatprep.mubr.f32.mxu0 0.0
      %v3745 = vand.u32 %v3480, 4294901760
      %3746 = vmatmul.mubr.f32.gmra.mrb[0].mxu0 %v3745
      %v3747 = vpop.f32.mrb[0].mxu0
      %v3748 = vadd.f32 %v3587, %v3747
      %v3749 = vpop.f32.mrb[0].mxu0
      %3750 = vmatprep.mubr.f32.mxu0 0.0
      %v3751 = vand.u32 %v3481, 4294901760
      %3752 = vmatmul.mubr.f32.gmra.mrb[0].mxu0 %v3751
      %v3753 = vpop.f32.mrb[0].mxu0
      %v3754 = vadd.f32 %v3597, %v3753
      %v3755 = vpop.f32.mrb[0].mxu0
      %3756 = vdwg.mxu0
      %3757 = vmatprep.subr.mxu0 0.0
      %v3758 = vand.u32 %v3483, 4294901760
      %v3759 = vsub.f32 %v3483, %v3758
      %3760 = vmatpush1.msra.mxu0 %v3759
      %3761 = vmatprep.subr.mxu0 0.0
      %v3762 = vand.u32 %v3484, 4294901760
      %v3763 = vsub.f32 %v3484, %v3762
      %3764 = vmatpush1.msra.mxu0 %v3763
      %3765 = vmatprep.subr.mxu0 0.0
      %v3766 = vand.u32 %v3485, 4294901760
      %v3767 = vsub.f32 %v3485, %v3766
      %3768 = vmatpush1.msra.mxu0 %v3767
      %3769 = vmatprep.subr.mxu0 0.0
      %v3770 = vand.u32 %v3486, 4294901760
      %v3771 = vsub.f32 %v3486, %v3770
      %3772 = vmatpush1.msra.mxu0 %v3771
      %3773 = vmatprep.subr.mxu0 0.0
      %v3774 = vand.u32 %v3487, 4294901760
      %v3775 = vsub.f32 %v3487, %v3774
      %3776 = vmatpush1.msra.mxu0 %v3775
      %3777 = vmatprep.subr.mxu0 0.0
      %v3778 = vand.u32 %v3488, 4294901760
      %v3779 = vsub.f32 %v3488, %v3778
      %3780 = vmatpush1.msra.mxu0 %v3779
      %3781 = vmatprep.subr.mxu0 0.0
      %v3782 = vand.u32 %v3489, 4294901760
      %v3783 = vsub.f32 %v3489, %v3782
      %3784 = vmatpush1.msra.mxu0 %v3783
      %3785 = vmatprep.subr.mxu0 0.0
      %v3786 = vand.u32 %v3490, 4294901760
      %v3787 = vsub.f32 %v3490, %v3786
      %3788 = vmatpush1.msra.mxu0 %v3787
      %3789 = vmatprep.subr.mxu0 0.0
      %v3790 = vand.u32 %v3491, 4294901760
      %v3791 = vsub.f32 %v3491, %v3790
      %3792 = vmatpush1.msra.mxu0 %v3791
      %3793 = vmatprep.subr.mxu0 0.0
      %v3794 = vand.u32 %v3492, 4294901760
      %v3795 = vsub.f32 %v3492, %v3794
      %3796 = vmatpush1.msra.mxu0 %v3795
      %3797 = vmatprep.subr.mxu0 0.0
      %v3798 = vand.u32 %v3493, 4294901760
      %v3799 = vsub.f32 %v3493, %v3798
      %3800 = vmatpush1.msra.mxu0 %v3799
      %3801 = vmatprep.subr.mxu0 0.0
      %v3802 = vand.u32 %v3494, 4294901760
      %v3803 = vsub.f32 %v3494, %v3802
      %3804 = vmatpush1.msra.mxu0 %v3803
      %3805 = vmatprep.subr.mxu0 0.0
      %v3806 = vand.u32 %v3495, 4294901760
      %v3807 = vsub.f32 %v3495, %v3806
      %3808 = vmatpush1.msra.mxu0 %v3807
      %3809 = vmatprep.subr.mxu0 0.0
      %v3810 = vand.u32 %v3496, 4294901760
      %v3811 = vsub.f32 %v3496, %v3810
      %3812 = vmatpush1.msra.mxu0 %v3811
      %3813 = vmatprep.subr.mxu0 0.0
      %v3814 = vand.u32 %v3497, 4294901760
      %v3815 = vsub.f32 %v3497, %v3814
      %3816 = vmatpush1.msra.mxu0 %v3815
      %3817 = vmatprep.subr.mxu0 0.0
      %v3818 = vand.u32 %v3498, 4294901760
      %v3819 = vsub.f32 %v3498, %v3818
      %3820 = vmatpush1.msra.mxu0 %v3819
      %3821 = vmatprep.subr.mxu0 0.0
      %3822 = vmatpush1.msra.mxu0 0.0
      %3823 = vmatprep.subr.mxu0 0.0
      %3824 = vmatpush1.msra.mxu0 0.0
      %3825 = vmatprep.subr.mxu0 0.0
      %3826 = vmatpush1.msra.mxu0 0.0
      %3827 = vmatprep.subr.mxu0 0.0
      %3828 = vmatpush1.msra.mxu0 0.0
      %3829 = vmatprep.subr.mxu0 0.0
      %3830 = vmatpush1.msra.mxu0 0.0
      %3831 = vmatprep.subr.mxu0 0.0
      %3832 = vmatpush1.msra.mxu0 0.0
      %3833 = vmatprep.subr.mxu0 0.0
      %3834 = vmatpush1.msra.mxu0 0.0
      %3835 = vmatprep.subr.mxu0 0.0
      %3836 = vmatpush1.msra.mxu0 0.0
      %3837 = vmatprep.subr.mxu0 0.0
      %3838 = vmatpush1.msra.mxu0 0.0
      %3839 = vmatprep.subr.mxu0 0.0
      %3840 = vmatpush1.msra.mxu0 0.0
      %3841 = vmatprep.subr.mxu0 0.0
      %3842 = vmatpush1.msra.mxu0 0.0
      %3843 = vmatprep.subr.mxu0 0.0
      %3844 = vmatpush1.msra.mxu0 0.0
      %3845 = vmatprep.subr.mxu0 0.0
      %3846 = vmatpush1.msra.mxu0 0.0
      %3847 = vmatprep.subr.mxu0 0.0
      %3848 = vmatpush1.msra.mxu0 0.0
      %3849 = vmatprep.subr.mxu0 0.0
      %3850 = vmatpush1.msra.mxu0 0.0
      %3851 = vmatprep.subr.mxu0 0.0
      %3852 = vmatpush1.msra.mxu0 0.0
      %3853 = vmatprep.mubr.f32.mxu0 0.0
      %v3854 = vand.u32 %v3480, 4294901760
      %v3855 = vsub.f32 %v3480, %v3854
      %3856 = vmatmul.mubr.f32.gmra.mrb[0].mxu0 %v3855
      %v3857 = vpop.f32.mrb[0].mxu0
      %v3858 = vadd.f32 %v3748, %v3857
      %v3859 = vpop.f32.mrb[0].mxu0
      %3860 = vmatprep.mubr.f32.mxu0 0.0
      %v3861 = vand.u32 %v3481, 4294901760
      %v3862 = vsub.f32 %v3481, %v3861
      %3863 = vmatmul.mubr.f32.gmra.mrb[0].mxu0 %v3862
      %v3864 = vpop.f32.mrb[0].mxu0
      %v3865 = vadd.f32 %v3754, %v3864
      %v3866 = vpop.f32.mrb[0].mxu0
      %3867 = vdwg.mxu0
      %3868 = vmatprep.subr.mxu0 0.0
      %v3869 = vand.u32 %v3483, 4294901760
      %3870 = vmatpush1.msra.mxu0 %v3869
      %3871 = vmatprep.subr.mxu0 0.0
      %v3872 = vand.u32 %v3484, 4294901760
      %3873 = vmatpush1.msra.mxu0 %v3872
      %3874 = vmatprep.subr.mxu0 0.0
      %v3875 = vand.u32 %v3485, 4294901760
      %3876 = vmatpush1.msra.mxu0 %v3875
      %3877 = vmatprep.subr.mxu0 0.0
      %v3878 = vand.u32 %v3486, 4294901760
      %3879 = vmatpush1.msra.mxu0 %v3878
      %3880 = vmatprep.subr.mxu0 0.0
      %v3881 = vand.u32 %v3487, 4294901760
      %3882 = vmatpush1.msra.mxu0 %v3881
      %3883 = vmatprep.subr.mxu0 0.0
      %v3884 = vand.u32 %v3488, 4294901760
      %3885 = vmatpush1.msra.mxu0 %v3884
      %3886 = vmatprep.subr.mxu0 0.0
      %v3887 = vand.u32 %v3489, 4294901760
      %3888 = vmatpush1.msra.mxu0 %v3887
      %3889 = vmatprep.subr.mxu0 0.0
      %v3890 = vand.u32 %v3490, 4294901760
      %3891 = vmatpush1.msra.mxu0 %v3890
      %3892 = vmatprep.subr.mxu0 0.0
      %v3893 = vand.u32 %v3491, 4294901760
      %3894 = vmatpush1.msra.mxu0 %v3893
      %3895 = vmatprep.subr.mxu0 0.0
      %v3896 = vand.u32 %v3492, 4294901760
      %3897 = vmatpush1.msra.mxu0 %v3896
      %3898 = vmatprep.subr.mxu0 0.0
      %v3899 = vand.u32 %v3493, 4294901760
      %3900 = vmatpush1.msra.mxu0 %v3899
      %3901 = vmatprep.subr.mxu0 0.0
      %v3902 = vand.u32 %v3494, 4294901760
      %3903 = vmatpush1.msra.mxu0 %v3902
      %3904 = vmatprep.subr.mxu0 0.0
      %v3905 = vand.u32 %v3495, 4294901760
      %3906 = vmatpush1.msra.mxu0 %v3905
      %3907 = vmatprep.subr.mxu0 0.0
      %v3908 = vand.u32 %v3496, 4294901760
      %3909 = vmatpush1.msra.mxu0 %v3908
      %3910 = vmatprep.subr.mxu0 0.0
      %v3911 = vand.u32 %v3497, 4294901760
      %3912 = vmatpush1.msra.mxu0 %v3911
      %3913 = vmatprep.subr.mxu0 0.0
      %v3914 = vand.u32 %v3498, 4294901760
      %3915 = vmatpush1.msra.mxu0 %v3914
      %3916 = vmatprep.subr.mxu0 0.0
      %3917 = vmatpush1.msra.mxu0 0.0
      %3918 = vmatprep.subr.mxu0 0.0
      %3919 = vmatpush1.msra.mxu0 0.0
      %3920 = vmatprep.subr.mxu0 0.0
      %3921 = vmatpush1.msra.mxu0 0.0
      %3922 = vmatprep.subr.mxu0 0.0
      %3923 = vmatpush1.msra.mxu0 0.0
      %3924 = vmatprep.subr.mxu0 0.0
      %3925 = vmatpush1.msra.mxu0 0.0
      %3926 = vmatprep.subr.mxu0 0.0
      %3927 = vmatpush1.msra.mxu0 0.0
      %3928 = vmatprep.subr.mxu0 0.0
      %3929 = vmatpush1.msra.mxu0 0.0
      %3930 = vmatprep.subr.mxu0 0.0
      %3931 = vmatpush1.msra.mxu0 0.0
      %3932 = vmatprep.subr.mxu0 0.0
      %3933 = vmatpush1.msra.mxu0 0.0
      %3934 = vmatprep.subr.mxu0 0.0
      %3935 = vmatpush1.msra.mxu0 0.0
      %3936 = vmatprep.subr.mxu0 0.0
      %3937 = vmatpush1.msra.mxu0 0.0
      %3938 = vmatprep.subr.mxu0 0.0
      %3939 = vmatpush1.msra.mxu0 0.0
      %3940 = vmatprep.subr.mxu0 0.0
      %3941 = vmatpush1.msra.mxu0 0.0
      %3942 = vmatprep.subr.mxu0 0.0
      %3943 = vmatpush1.msra.mxu0 0.0
      %3944 = vmatprep.subr.mxu0 0.0
      %3945 = vmatpush1.msra.mxu0 0.0
      %3946 = vmatprep.subr.mxu0 0.0
      %3947 = vmatpush1.msra.mxu0 0.0
      %3948 = vmatprep.mubr.f32.mxu0 0.0
      %v3949 = vand.u32 %v3480, 4294901760
      %v3950 = vsub.f32 %v3480, %v3949
      %v3951 = vand.u32 %v3950, 4294901760
      %3952 = vmatmul.mubr.f32.gmra.mrb[0].mxu0 %v3951
      %v3953 = vpop.f32.mrb[0].mxu0
      %v3954 = vadd.f32 %v3858, %v3953
      %v3955 = vpop.f32.mrb[0].mxu0
      %3956 = vmatprep.mubr.f32.mxu0 0.0
      %v3957 = vand.u32 %v3481, 4294901760
      %v3958 = vsub.f32 %v3481, %v3957
      %v3959 = vand.u32 %v3958, 4294901760
      %3960 = vmatmul.mubr.f32.gmra.mrb[0].mxu0 %v3959
      %v3961 = vpop.f32.mrb[0].mxu0
      %v3962 = vadd.f32 %v3865, %v3961
      %v3963 = vpop.f32.mrb[0].mxu0
      %3964 = vdwg.mxu0
      %3965 = vmatprep.subr.mxu0 0.0
      %v3966 = vand.u32 %v3483, 4294901760
      %v3967 = vsub.f32 %v3483, %v3966
      %v3968 = vand.u32 %v3967, 4294901760
      %3969 = vmatpush1.msra.mxu0 %v3968
      %3970 = vmatprep.subr.mxu0 0.0
      %v3971 = vand.u32 %v3484, 4294901760
      %v3972 = vsub.f32 %v3484, %v3971
      %v3973 = vand.u32 %v3972, 4294901760
      %3974 = vmatpush1.msra.mxu0 %v3973
      %3975 = vmatprep.subr.mxu0 0.0
      %v3976 = vand.u32 %v3485, 4294901760
      %v3977 = vsub.f32 %v3485, %v3976
      %v3978 = vand.u32 %v3977, 4294901760
      %3979 = vmatpush1.msra.mxu0 %v3978
      %3980 = vmatprep.subr.mxu0 0.0
      %v3981 = vand.u32 %v3486, 4294901760
      %v3982 = vsub.f32 %v3486, %v3981
      %v3983 = vand.u32 %v3982, 4294901760
      %3984 = vmatpush1.msra.mxu0 %v3983
      %3985 = vmatprep.subr.mxu0 0.0
      %v3986 = vand.u32 %v3487, 4294901760
      %v3987 = vsub.f32 %v3487, %v3986
      %v3988 = vand.u32 %v3987, 4294901760
      %3989 = vmatpush1.msra.mxu0 %v3988
      %3990 = vmatprep.subr.mxu0 0.0
      %v3991 = vand.u32 %v3488, 4294901760
      %v3992 = vsub.f32 %v3488, %v3991
      %v3993 = vand.u32 %v3992, 4294901760
      %3994 = vmatpush1.msra.mxu0 %v3993
      %3995 = vmatprep.subr.mxu0 0.0
      %v3996 = vand.u32 %v3489, 4294901760
      %v3997 = vsub.f32 %v3489, %v3996
      %v3998 = vand.u32 %v3997, 4294901760
      %3999 = vmatpush1.msra.mxu0 %v3998
      %4000 = vmatprep.subr.mxu0 0.0
      %v4001 = vand.u32 %v3490, 4294901760
      %v4002 = vsub.f32 %v3490, %v4001
      %v4003 = vand.u32 %v4002, 4294901760
      %4004 = vmatpush1.msra.mxu0 %v4003
      %4005 = vmatprep.subr.mxu0 0.0
      %v4006 = vand.u32 %v3491, 4294901760
      %v4007 = vsub.f32 %v3491, %v4006
      %v4008 = vand.u32 %v4007, 4294901760
      %4009 = vmatpush1.msra.mxu0 %v4008
      %4010 = vmatprep.subr.mxu0 0.0
      %v4011 = vand.u32 %v3492, 4294901760
      %v4012 = vsub.f32 %v3492, %v4011
      %v4013 = vand.u32 %v4012, 4294901760
      %4014 = vmatpush1.msra.mxu0 %v4013
      %4015 = vmatprep.subr.mxu0 0.0
      %v4016 = vand.u32 %v3493, 4294901760
      %v4017 = vsub.f32 %v3493, %v4016
      %v4018 = vand.u32 %v4017, 4294901760
      %4019 = vmatpush1.msra.mxu0 %v4018
      %4020 = vmatprep.subr.mxu0 0.0
      %v4021 = vand.u32 %v3494, 4294901760
      %v4022 = vsub.f32 %v3494, %v4021
      %v4023 = vand.u32 %v4022, 4294901760
      %4024 = vmatpush1.msra.mxu0 %v4023
      %4025 = vmatprep.subr.mxu0 0.0
      %v4026 = vand.u32 %v3495, 4294901760
      %v4027 = vsub.f32 %v3495, %v4026
      %v4028 = vand.u32 %v4027, 4294901760
      %4029 = vmatpush1.msra.mxu0 %v4028
      %4030 = vmatprep.subr.mxu0 0.0
      %v4031 = vand.u32 %v3496, 4294901760
      %v4032 = vsub.f32 %v3496, %v4031
      %v4033 = vand.u32 %v4032, 4294901760
      %4034 = vmatpush1.msra.mxu0 %v4033
      %4035 = vmatprep.subr.mxu0 0.0
      %v4036 = vand.u32 %v3497, 4294901760
      %v4037 = vsub.f32 %v3497, %v4036
      %v4038 = vand.u32 %v4037, 4294901760
      %4039 = vmatpush1.msra.mxu0 %v4038
      %4040 = vmatprep.subr.mxu0 0.0
      %v4041 = vand.u32 %v3498, 4294901760
      %v4042 = vsub.f32 %v3498, %v4041
      %v4043 = vand.u32 %v4042, 4294901760
      %4044 = vmatpush1.msra.mxu0 %v4043
      %4045 = vmatprep.subr.mxu0 0.0
      %4046 = vmatpush1.msra.mxu0 0.0
      %4047 = vmatprep.subr.mxu0 0.0
      %4048 = vmatpush1.msra.mxu0 0.0
      %4049 = vmatprep.subr.mxu0 0.0
      %4050 = vmatpush1.msra.mxu0 0.0
      %4051 = vmatprep.subr.mxu0 0.0
      %4052 = vmatpush1.msra.mxu0 0.0
      %4053 = vmatprep.subr.mxu0 0.0
      %4054 = vmatpush1.msra.mxu0 0.0
      %4055 = vmatprep.subr.mxu0 0.0
      %4056 = vmatpush1.msra.mxu0 0.0
      %4057 = vmatprep.subr.mxu0 0.0
      %4058 = vmatpush1.msra.mxu0 0.0
      %4059 = vmatprep.subr.mxu0 0.0
      %4060 = vmatpush1.msra.mxu0 0.0
      %4061 = vmatprep.subr.mxu0 0.0
      %4062 = vmatpush1.msra.mxu0 0.0
      %4063 = vmatprep.subr.mxu0 0.0
      %4064 = vmatpush1.msra.mxu0 0.0
      %4065 = vmatprep.subr.mxu0 0.0
      %4066 = vmatpush1.msra.mxu0 0.0
      %4067 = vmatprep.subr.mxu0 0.0
      %4068 = vmatpush1.msra.mxu0 0.0
      %4069 = vmatprep.subr.mxu0 0.0
      %4070 = vmatpush1.msra.mxu0 0.0
      %4071 = vmatprep.subr.mxu0 0.0
      %4072 = vmatpush1.msra.mxu0 0.0
      %4073 = vmatprep.subr.mxu0 0.0
      %4074 = vmatpush1.msra.mxu0 0.0
      %4075 = vmatprep.subr.mxu0 0.0
      %4076 = vmatpush1.msra.mxu0 0.0
      %4077 = vmatprep.mubr.f32.mxu0 0.0
      %v4078 = vand.u32 %v3480, 4294901760
      %4079 = vmatmul.mubr.f32.gmra.mrb[0].mxu0 %v4078
      %v4080 = vpop.f32.mrb[0].mxu0
      %v4081 = vadd.f32 %v3954, %v4080
      %v4082 = vpop.f32.mrb[0].mxu0
      %4083 = vmatprep.mubr.f32.mxu0 0.0
      %v4084 = vand.u32 %v3481, 4294901760
      %4085 = vmatmul.mubr.f32.gmra.mrb[0].mxu0 %v4084
      %v4086 = vpop.f32.mrb[0].mxu0
      %v4087 = vadd.f32 %v3962, %v4086
      %v4088 = vpop.f32.mrb[0].mxu0
      %4089 = vdwg.mxu0
      %4090 = vmatprep.subr.mxu0 0.0
      %v4091 = vand.u32 %v3483, 4294901760
      %4092 = vmatpush1.msra.mxu0 %v4091
      %4093 = vmatprep.subr.mxu0 0.0
      %v4094 = vand.u32 %v3484, 4294901760
      %4095 = vmatpush1.msra.mxu0 %v4094
      %4096 = vmatprep.subr.mxu0 0.0
      %v4097 = vand.u32 %v3485, 4294901760
      %4098 = vmatpush1.msra.mxu0 %v4097
      %4099 = vmatprep.subr.mxu0 0.0
      %v4100 = vand.u32 %v3486, 4294901760
      %4101 = vmatpush1.msra.mxu0 %v4100
      %4102 = vmatprep.subr.mxu0 0.0
      %v4103 = vand.u32 %v3487, 4294901760
      %4104 = vmatpush1.msra.mxu0 %v4103
      %4105 = vmatprep.subr.mxu0 0.0
      %v4106 = vand.u32 %v3488, 4294901760
      %4107 = vmatpush1.msra.mxu0 %v4106
      %4108 = vmatprep.subr.mxu0 0.0
      %v4109 = vand.u32 %v3489, 4294901760
      %4110 = vmatpush1.msra.mxu0 %v4109
      %4111 = vmatprep.subr.mxu0 0.0
      %v4112 = vand.u32 %v3490, 4294901760
      %4113 = vmatpush1.msra.mxu0 %v4112
      %4114 = vmatprep.subr.mxu0 0.0
      %v4115 = vand.u32 %v3491, 4294901760
      %4116 = vmatpush1.msra.mxu0 %v4115
      %4117 = vmatprep.subr.mxu0 0.0
      %v4118 = vand.u32 %v3492, 4294901760
      %4119 = vmatpush1.msra.mxu0 %v4118
      %4120 = vmatprep.subr.mxu0 0.0
      %v4121 = vand.u32 %v3493, 4294901760
      %4122 = vmatpush1.msra.mxu0 %v4121
      %4123 = vmatprep.subr.mxu0 0.0
      %v4124 = vand.u32 %v3494, 4294901760
      %4125 = vmatpush1.msra.mxu0 %v4124
      %4126 = vmatprep.subr.mxu0 0.0
      %v4127 = vand.u32 %v3495, 4294901760
      %4128 = vmatpush1.msra.mxu0 %v4127
      %4129 = vmatprep.subr.mxu0 0.0
      %v4130 = vand.u32 %v3496, 4294901760
      %4131 = vmatpush1.msra.mxu0 %v4130
      %4132 = vmatprep.subr.mxu0 0.0
      %v4133 = vand.u32 %v3497, 4294901760
      %4134 = vmatpush1.msra.mxu0 %v4133
      %4135 = vmatprep.subr.mxu0 0.0
      %v4136 = vand.u32 %v3498, 4294901760
      %4137 = vmatpush1.msra.mxu0 %v4136
      %4138 = vmatprep.subr.mxu0 0.0
      %4139 = vmatpush1.msra.mxu0 0.0
      %4140 = vmatprep.subr.mxu0 0.0
      %4141 = vmatpush1.msra.mxu0 0.0
      %4142 = vmatprep.subr.mxu0 0.0
      %4143 = vmatpush1.msra.mxu0 0.0
      %4144 = vmatprep.subr.mxu0 0.0
      %4145 = vmatpush1.msra.mxu0 0.0
      %4146 = vmatprep.subr.mxu0 0.0
      %4147 = vmatpush1.msra.mxu0 0.0
      %4148 = vmatprep.subr.mxu0 0.0
      %4149 = vmatpush1.msra.mxu0 0.0
      %4150 = vmatprep.subr.mxu0 0.0
      %4151 = vmatpush1.msra.mxu0 0.0
      %4152 = vmatprep.subr.mxu0 0.0
      %4153 = vmatpush1.msra.mxu0 0.0
      %4154 = vmatprep.subr.mxu0 0.0
      %4155 = vmatpush1.msra.mxu0 0.0
      %4156 = vmatprep.subr.mxu0 0.0
      %4157 = vmatpush1.msra.mxu0 0.0
      %4158 = vmatprep.subr.mxu0 0.0
      %4159 = vmatpush1.msra.mxu0 0.0
      %4160 = vmatprep.subr.mxu0 0.0
      %4161 = vmatpush1.msra.mxu0 0.0
      %4162 = vmatprep.subr.mxu0 0.0
      %4163 = vmatpush1.msra.mxu0 0.0
      %4164 = vmatprep.subr.mxu0 0.0
      %4165 = vmatpush1.msra.mxu0 0.0
      %4166 = vmatprep.subr.mxu0 0.0
      %4167 = vmatpush1.msra.mxu0 0.0
      %4168 = vmatprep.subr.mxu0 0.0
      %4169 = vmatpush1.msra.mxu0 0.0
      %4170 = vmatprep.mubr.f32.mxu0 0.0
      %v4171 = vand.u32 %v3480, 4294901760
      %4172 = vmatmul.mubr.f32.gmra.mrb[0].mxu0 %v4171
      %v4173 = vpop.f32.mrb[0].mxu0
      %v4174 = vadd.f32 %v4081, %v4173
      %v4175 = vpop.f32.mrb[0].mxu0
      %4176 = vmatprep.mubr.f32.mxu0 0.0
      %v4177 = vand.u32 %v3481, 4294901760
      %4178 = vmatmul.mubr.f32.gmra.mrb[0].mxu0 %v4177
      %v4179 = vpop.f32.mrb[0].mxu0
      %v4180 = vadd.f32 %v4087, %v4179
      %v4181 = vpop.f32.mrb[0].mxu0
      %4182 = vdwg.mxu0
      %v4183 = vadd.f32 %v3471, %v4174
      %v4184 = vadd.f32 %v3477, %v4180
      %v4185 = vld [vmem:[%s4] sm:$0x1]
      %v4187 = vlaneseq
      %v4188 = vshrl.u32 %v4187, 7
      %v4189 = vsub.s32 0, %v4188
      %v4190 = vrot.slane %v4185, %v4189
      %v4192 = vadd.f32 %v4183, %v4190
      %v4193 = vadd.f32 %v4184, %v4190
      %v4194 = vmax.f32 %v4192, 0.0
      %v4195 = vmax.f32 %v4193, 0.0
      %4196 = vst [vmem:[%s258] sm:$0xff] %v4194
      %4197 = vst [vmem:[%s258 + $0x8] sm:$0xff] %v4195
      %4200 = vrot.lane.b32.xlu0 %v4194, 112
      %v4201 = vpop.permute.xlu0 %4200
      %4202 = vrot.lane.b32.xlu0 %v4195, 112
      %v4203 = vpop.permute.xlu0 %4202
      %4206 = vrot.lane.b32.xlu0 %v4194, 96
      %v4207 = vpop.permute.xlu0 %4206
      %4208 = vrot.lane.b32.xlu0 %v4195, 96
      %v4209 = vpop.permute.xlu0 %4208
      %4212 = vrot.lane.b32.xlu0 %v4194, 80
      %v4213 = vpop.permute.xlu0 %4212
      %4214 = vrot.lane.b32.xlu0 %v4195, 80
      %v4215 = vpop.permute.xlu0 %4214
      %4218 = vrot.lane.b32.xlu0 %v4194, 64
      %v4219 = vpop.permute.xlu0 %4218
      %4220 = vrot.lane.b32.xlu0 %v4195, 64
      %v4221 = vpop.permute.xlu0 %4220
      %4224 = vrot.lane.b32.xlu0 %v4194, 48
      %v4225 = vpop.permute.xlu0 %4224
      %4226 = vrot.lane.b32.xlu0 %v4195, 48
      %v4227 = vpop.permute.xlu0 %4226
      %4230 = vrot.lane.b32.xlu0 %v4194, 32
      %v4231 = vpop.permute.xlu0 %4230
      %4232 = vrot.lane.b32.xlu0 %v4195, 32
      %v4233 = vpop.permute.xlu0 %4232
      %4236 = vrot.lane.b32.xlu0 %v4194, 16
      %v4237 = vpop.permute.xlu0 %4236
      %4238 = vrot.lane.b32.xlu0 %v4195, 16
      %v4239 = vpop.permute.xlu0 %4238
      %v4242 = vcombine.low %v4194, %v4207
      %v4243 = vcombine.high %v4194, %v4207
      %v4245 = vunpack.c.l.s4 1983009808
      %v4246 = vunpack.c.0.s8 %v4245
      %v4247 = vlaneseq
      %v4248 = vshrl.u32 %v4247, 7
      %v4249 = vsub.s32 %v4246, %v4248
      %v4250 = vrot.slane %v4242, %v4249
      %v4252 = vunpack.c.l.s4 1983009808
      %v4253 = vunpack.c.0.s8 %v4252
      %v4254 = vlaneseq
      %v4255 = vshrl.u32 %v4254, 7
      %v4256 = vsub.s32 %v4253, %v4255
      %v4257 = vrot.slane %v4243, %v4256
      %v4258 = vcombine.low %v4201, %v4213
      %v4259 = vcombine.high %v4201, %v4213
      %v4261 = vunpack.c.l.s4 1983009808
      %v4262 = vunpack.c.0.s8 %v4261
      %v4263 = vlaneseq
      %v4264 = vshrl.u32 %v4263, 7
      %v4265 = vsub.s32 %v4262, %v4264
      %v4266 = vrot.slane %v4258, %v4265
      %v4268 = vunpack.c.l.s4 1983009808
      %v4269 = vunpack.c.0.s8 %v4268
      %v4270 = vlaneseq
      %v4271 = vshrl.u32 %v4270, 7
      %v4272 = vsub.s32 %v4269, %v4271
      %v4273 = vrot.slane %v4259, %v4272
      %v4274 = vcombine.low %v4219, %v4231
      %v4275 = vcombine.high %v4219, %v4231
      %v4277 = vunpack.c.l.s4 1983009808
      %v4278 = vunpack.c.0.s8 %v4277
      %v4279 = vlaneseq
      %v4280 = vshrl.u32 %v4279, 7
      %v4281 = vsub.s32 %v4278, %v4280
      %v4282 = vrot.slane %v4274, %v4281
      %v4284 = vunpack.c.l.s4 1983009808
      %v4285 = vunpack.c.0.s8 %v4284
      %v4286 = vlaneseq
      %v4287 = vshrl.u32 %v4286, 7
      %v4288 = vsub.s32 %v4285, %v4287
      %v4289 = vrot.slane %v4275, %v4288
      %v4290 = vcombine.low %v4225, %v4237
      %v4291 = vcombine.high %v4225, %v4237
      %v4293 = vunpack.c.l.s4 1983009808
      %v4294 = vunpack.c.0.s8 %v4293
      %v4295 = vlaneseq
      %v4296 = vshrl.u32 %v4295, 7
      %v4297 = vsub.s32 %v4294, %v4296
      %v4298 = vrot.slane %v4290, %v4297
      %v4300 = vunpack.c.l.s4 1983009808
      %v4301 = vunpack.c.0.s8 %v4300
      %v4302 = vlaneseq
      %v4303 = vshrl.u32 %v4302, 7
      %v4304 = vsub.s32 %v4301, %v4303
      %v4305 = vrot.slane %v4291, %v4304
      %v4306 = vcombine.low %v4250, %v4266
      %v4307 = vcombine.high %v4250, %v4266
      %v4309 = vunpack.c.l.s4 1934713408
      %v4310 = vunpack.c.0.s8 %v4309
      %v4311 = vlaneseq
      %v4312 = vshrl.u32 %v4311, 7
      %v4313 = vsub.s32 %v4310, %v4312
      %v4314 = vrot.slane %v4306, %v4313
      %v4316 = vunpack.c.l.s4 1934713408
      %v4317 = vunpack.c.0.s8 %v4316
      %v4318 = vlaneseq
      %v4319 = vshrl.u32 %v4318, 7
      %v4320 = vsub.s32 %v4317, %v4319
      %v4321 = vrot.slane %v4307, %v4320
      %v4322 = vcombine.low %v4257, %v4273
      %v4323 = vcombine.high %v4257, %v4273
      %v4325 = vunpack.c.l.s4 1934713408
      %v4326 = vunpack.c.0.s8 %v4325
      %v4327 = vlaneseq
      %v4328 = vshrl.u32 %v4327, 7
      %v4329 = vsub.s32 %v4326, %v4328
      %v4330 = vrot.slane %v4322, %v4329
      %v4332 = vunpack.c.l.s4 1934713408
      %v4333 = vunpack.c.0.s8 %v4332
      %v4334 = vlaneseq
      %v4335 = vshrl.u32 %v4334, 7
      %v4336 = vsub.s32 %v4333, %v4335
      %v4337 = vrot.slane %v4323, %v4336
      %v4338 = vcombine.low %v4282, %v4298
      %v4339 = vcombine.high %v4282, %v4298
      %v4341 = vunpack.c.l.s4 1934713408
      %v4342 = vunpack.c.0.s8 %v4341
      %v4343 = vlaneseq
      %v4344 = vshrl.u32 %v4343, 7
      %v4345 = vsub.s32 %v4342, %v4344
      %v4346 = vrot.slane %v4338, %v4345
      %v4348 = vunpack.c.l.s4 1934713408
      %v4349 = vunpack.c.0.s8 %v4348
      %v4350 = vlaneseq
      %v4351 = vshrl.u32 %v4350, 7
      %v4352 = vsub.s32 %v4349, %v4351
      %v4353 = vrot.slane %v4339, %v4352
      %v4354 = vcombine.low %v4289, %v4305
      %v4355 = vcombine.high %v4289, %v4305
      %v4357 = vunpack.c.l.s4 1934713408
      %v4358 = vunpack.c.0.s8 %v4357
      %v4359 = vlaneseq
      %v4360 = vshrl.u32 %v4359, 7
      %v4361 = vsub.s32 %v4358, %v4360
      %v4362 = vrot.slane %v4354, %v4361
      %v4364 = vunpack.c.l.s4 1934713408
      %v4365 = vunpack.c.0.s8 %v4364
      %v4366 = vlaneseq
      %v4367 = vshrl.u32 %v4366, 7
      %v4368 = vsub.s32 %v4365, %v4367
      %v4369 = vrot.slane %v4355, %v4368
      %v4370 = vcombine.low %v4314, %v4346
      %v4371 = vcombine.high %v4314, %v4346
      %v4372 = vcombine.low %v4321, %v4353
      %v4373 = vcombine.high %v4321, %v4353
      %v4374 = vcombine.low %v4330, %v4362
      %v4375 = vcombine.high %v4330, %v4362
      %v4376 = vcombine.low %v4337, %v4369
      %v4377 = vcombine.high %v4337, %v4369
      %v4378 = vcombine.low %v4195, %v4209
      %v4379 = vcombine.high %v4195, %v4209
      %v4381 = vunpack.c.l.s4 1983009808
      %v4382 = vunpack.c.0.s8 %v4381
      %v4383 = vlaneseq
      %v4384 = vshrl.u32 %v4383, 7
      %v4385 = vsub.s32 %v4382, %v4384
      %v4386 = vrot.slane %v4378, %v4385
      %v4388 = vunpack.c.l.s4 1983009808
      %v4389 = vunpack.c.0.s8 %v4388
      %v4390 = vlaneseq
      %v4391 = vshrl.u32 %v4390, 7
      %v4392 = vsub.s32 %v4389, %v4391
      %v4393 = vrot.slane %v4379, %v4392
      %v4394 = vcombine.low %v4203, %v4215
      %v4395 = vcombine.high %v4203, %v4215
      %v4397 = vunpack.c.l.s4 1983009808
      %v4398 = vunpack.c.0.s8 %v4397
      %v4399 = vlaneseq
      %v4400 = vshrl.u32 %v4399, 7
      %v4401 = vsub.s32 %v4398, %v4400
      %v4402 = vrot.slane %v4394, %v4401
      %v4404 = vunpack.c.l.s4 1983009808
      %v4405 = vunpack.c.0.s8 %v4404
      %v4406 = vlaneseq
      %v4407 = vshrl.u32 %v4406, 7
      %v4408 = vsub.s32 %v4405, %v4407
      %v4409 = vrot.slane %v4395, %v4408
      %v4410 = vcombine.low %v4221, %v4233
      %v4411 = vcombine.high %v4221, %v4233
      %v4413 = vunpack.c.l.s4 1983009808
      %v4414 = vunpack.c.0.s8 %v4413
      %v4415 = vlaneseq
      %v4416 = vshrl.u32 %v4415, 7
      %v4417 = vsub.s32 %v4414, %v4416
      %v4418 = vrot.slane %v4410, %v4417
      %v4420 = vunpack.c.l.s4 1983009808
      %v4421 = vunpack.c.0.s8 %v4420
      %v4422 = vlaneseq
      %v4423 = vshrl.u32 %v4422, 7
      %v4424 = vsub.s32 %v4421, %v4423
      %v4425 = vrot.slane %v4411, %v4424
      %v4426 = vcombine.low %v4227, %v4239
      %v4427 = vcombine.high %v4227, %v4239
      %v4429 = vunpack.c.l.s4 1983009808
      %v4430 = vunpack.c.0.s8 %v4429
      %v4431 = vlaneseq
      %v4432 = vshrl.u32 %v4431, 7
      %v4433 = vsub.s32 %v4430, %v4432
      %v4434 = vrot.slane %v4426, %v4433
      %v4436 = vunpack.c.l.s4 1983009808
      %v4437 = vunpack.c.0.s8 %v4436
      %v4438 = vlaneseq
      %v4439 = vshrl.u32 %v4438, 7
      %v4440 = vsub.s32 %v4437, %v4439
      %v4441 = vrot.slane %v4427, %v4440
      %v4442 = vcombine.low %v4386, %v4402
      %v4443 = vcombine.high %v4386, %v4402
      %v4445 = vunpack.c.l.s4 1934713408
      %v4446 = vunpack.c.0.s8 %v4445
      %v4447 = vlaneseq
      %v4448 = vshrl.u32 %v4447, 7
      %v4449 = vsub.s32 %v4446, %v4448
      %v4450 = vrot.slane %v4442, %v4449
      %v4452 = vunpack.c.l.s4 1934713408
      %v4453 = vunpack.c.0.s8 %v4452
      %v4454 = vlaneseq
      %v4455 = vshrl.u32 %v4454, 7
      %v4456 = vsub.s32 %v4453, %v4455
      %v4457 = vrot.slane %v4443, %v4456
      %v4458 = vcombine.low %v4393, %v4409
      %v4459 = vcombine.high %v4393, %v4409
      %v4461 = vunpack.c.l.s4 1934713408
      %v4462 = vunpack.c.0.s8 %v4461
      %v4463 = vlaneseq
      %v4464 = vshrl.u32 %v4463, 7
      %v4465 = vsub.s32 %v4462, %v4464
      %v4466 = vrot.slane %v4458, %v4465
      %v4468 = vunpack.c.l.s4 1934713408
      %v4469 = vunpack.c.0.s8 %v4468
      %v4470 = vlaneseq
      %v4471 = vshrl.u32 %v4470, 7
      %v4472 = vsub.s32 %v4469, %v4471
      %v4473 = vrot.slane %v4459, %v4472
      %v4474 = vcombine.low %v4418, %v4434
      %v4475 = vcombine.high %v4418, %v4434
      %v4477 = vunpack.c.l.s4 1934713408
      %v4478 = vunpack.c.0.s8 %v4477
      %v4479 = vlaneseq
      %v4480 = vshrl.u32 %v4479, 7
      %v4481 = vsub.s32 %v4478, %v4480
      %v4482 = vrot.slane %v4474, %v4481
      %v4484 = vunpack.c.l.s4 1934713408
      %v4485 = vunpack.c.0.s8 %v4484
      %v4486 = vlaneseq
      %v4487 = vshrl.u32 %v4486, 7
      %v4488 = vsub.s32 %v4485, %v4487
      %v4489 = vrot.slane %v4475, %v4488
      %v4490 = vcombine.low %v4425, %v4441
      %v4491 = vcombine.high %v4425, %v4441
      %v4493 = vunpack.c.l.s4 1934713408
      %v4494 = vunpack.c.0.s8 %v4493
      %v4495 = vlaneseq
      %v4496 = vshrl.u32 %v4495, 7
      %v4497 = vsub.s32 %v4494, %v4496
      %v4498 = vrot.slane %v4490, %v4497
      %v4500 = vunpack.c.l.s4 1934713408
      %v4501 = vunpack.c.0.s8 %v4500
      %v4502 = vlaneseq
      %v4503 = vshrl.u32 %v4502, 7
      %v4504 = vsub.s32 %v4501, %v4503
      %v4505 = vrot.slane %v4491, %v4504
      %v4506 = vcombine.low %v4450, %v4482
      %v4507 = vcombine.high %v4450, %v4482
      %v4508 = vcombine.low %v4457, %v4489
      %v4509 = vcombine.high %v4457, %v4489
      %v4510 = vcombine.low %v4466, %v4498
      %v4511 = vcombine.high %v4466, %v4498
      %v4512 = vcombine.low %v4473, %v4505
      %v4513 = vcombine.high %v4473, %v4505
      %v4514 = vmax.f32 %v4370, %v4371
      %v4515 = vmax.f32 %v4374, %v4375
      %v4516 = vmax.f32 %v4506, %v4507
      %v4517 = vmax.f32 %v4510, %v4511
      %v4518 = vmax.f32 %v4372, %v4373
      %v4519 = vmax.f32 %v4376, %v4377
      %v4520 = vmax.f32 %v4508, %v4509
      %v4521 = vmax.f32 %v4512, %v4513
      %4526 = vrot.lane.b32.xlu0 %v4514, 120
      %v4527 = vpop.permute.xlu0 %4526
      %4528 = vrot.lane.b32.xlu0 %v4515, 120
      %v4529 = vpop.permute.xlu0 %4528
      %4530 = vrot.lane.b32.xlu0 %v4516, 120
      %v4531 = vpop.permute.xlu0 %4530
      %4532 = vrot.lane.b32.xlu0 %v4517, 120
      %v4533 = vpop.permute.xlu0 %4532
      %v4538 = vmax.f32 %v4514, %v4527
      %v4539 = vmax.f32 %v4515, %v4529
      %v4540 = vmax.f32 %v4516, %v4531
      %v4541 = vmax.f32 %v4517, %v4533
      %4546 = vrot.lane.b32.xlu0 %v4518, 120
      %v4547 = vpop.permute.xlu0 %4546
      %4548 = vrot.lane.b32.xlu0 %v4519, 120
      %v4549 = vpop.permute.xlu0 %4548
      %4550 = vrot.lane.b32.xlu0 %v4520, 120
      %v4551 = vpop.permute.xlu0 %4550
      %4552 = vrot.lane.b32.xlu0 %v4521, 120
      %v4553 = vpop.permute.xlu0 %4552
      %v4558 = vmax.f32 %v4518, %v4547
      %v4559 = vmax.f32 %v4519, %v4549
      %v4560 = vmax.f32 %v4520, %v4551
      %v4561 = vmax.f32 %v4521, %v4553
      %v4562 = vcombine.low %v4538, %v4540
      %v4563 = vcombine.high %v4538, %v4540
      %v4565 = vunpack.c.l.s4 1983009808
      %v4566 = vunpack.c.0.s8 %v4565
      %v4567 = vlaneseq
      %v4568 = vshrl.u32 %v4567, 7
      %v4569 = vsub.s32 %v4566, %v4568
      %v4570 = vrot.slane %v4562, %v4569
      %v4572 = vunpack.c.l.s4 1983009808
      %v4573 = vunpack.c.0.s8 %v4572
      %v4574 = vlaneseq
      %v4575 = vshrl.u32 %v4574, 7
      %v4576 = vsub.s32 %v4573, %v4575
      %v4577 = vrot.slane %v4563, %v4576
      %v4578 = vcombine.low %v4539, %v4541
      %v4579 = vcombine.high %v4539, %v4541
      %v4581 = vunpack.c.l.s4 1983009808
      %v4582 = vunpack.c.0.s8 %v4581
      %v4583 = vlaneseq
      %v4584 = vshrl.u32 %v4583, 7
      %v4585 = vsub.s32 %v4582, %v4584
      %v4586 = vrot.slane %v4578, %v4585
      %v4588 = vunpack.c.l.s4 1983009808
      %v4589 = vunpack.c.0.s8 %v4588
      %v4590 = vlaneseq
      %v4591 = vshrl.u32 %v4590, 7
      %v4592 = vsub.s32 %v4589, %v4591
      %v4593 = vrot.slane %v4579, %v4592
      %v4594 = vcombine.low %v4570, %v4586
      %v4595 = vcombine.high %v4570, %v4586
      %v4597 = vunpack.c.l.s4 1934713408
      %v4598 = vunpack.c.0.s8 %v4597
      %v4599 = vlaneseq
      %v4600 = vshrl.u32 %v4599, 7
      %v4601 = vsub.s32 %v4598, %v4600
      %v4602 = vrot.slane %v4594, %v4601
      %v4604 = vunpack.c.l.s4 1934713408
      %v4605 = vunpack.c.0.s8 %v4604
      %v4606 = vlaneseq
      %v4607 = vshrl.u32 %v4606, 7
      %v4608 = vsub.s32 %v4605, %v4607
      %v4609 = vrot.slane %v4595, %v4608
      %v4610 = vcombine.low %v4577, %v4593
      %v4611 = vcombine.high %v4577, %v4593
      %v4613 = vunpack.c.l.s4 1934713408
      %v4614 = vunpack.c.0.s8 %v4613
      %v4615 = vlaneseq
      %v4616 = vshrl.u32 %v4615, 7
      %v4617 = vsub.s32 %v4614, %v4616
      %v4618 = vrot.slane %v4610, %v4617
      %v4620 = vunpack.c.l.s4 1934713408
      %v4621 = vunpack.c.0.s8 %v4620
      %v4622 = vlaneseq
      %v4623 = vshrl.u32 %v4622, 7
      %v4624 = vsub.s32 %v4621, %v4623
      %v4625 = vrot.slane %v4611, %v4624
      %v4626 = vcombine.high %v4602, 0.0
      %v4627 = vcombine.high %v4609, 0.0
      %v4628 = vcombine.high %v4618, 0.0
      %v4629 = vcombine.high %v4625, 0.0
      %4631 = vrot.lane.b32.xlu0 %v4626, 8
      %v4632 = vpop.permute.xlu0 %4631
      %4635 = vrot.lane.b32.xlu0 %v4609, 16
      %v4636 = vpop.permute.xlu0 %4635
      %4639 = vrot.lane.b32.xlu0 %v4627, 24
      %v4640 = vpop.permute.xlu0 %4639
      %4643 = vrot.lane.b32.xlu0 %v4618, 32
      %v4644 = vpop.permute.xlu0 %4643
      %4647 = vrot.lane.b32.xlu0 %v4628, 40
      %v4648 = vpop.permute.xlu0 %4647
      %4651 = vrot.lane.b32.xlu0 %v4625, 48
      %v4652 = vpop.permute.xlu0 %4651
      %4655 = vrot.lane.b32.xlu0 %v4629, 56
      %v4656 = vpop.permute.xlu0 %4655
      %vm4658 = vcmask 64512
      %v4659 = vsel %vm4658, %v4602, %v4632
      %vm4660 = vcmask 130048
      %v4661 = vsel %vm4660, %v4659, %v4636
      %vm4662 = vcmask 195584
      %v4663 = vsel %vm4662, %v4661, %v4640
      %vm4664 = vcmask 261120
      %v4665 = vsel %vm4664, %v4663, %v4644
      %vm4666 = vcmask 326656
      %v4667 = vsel %vm4666, %v4665, %v4648
      %vm4668 = vcmask 392192
      %v4669 = vsel %vm4668, %v4667, %v4652
      %vm4670 = vcmask 457728
      %v4671 = vsel %vm4670, %v4669, %v4656
      %v4672 = vcombine.low %v4558, %v4560
      %v4673 = vcombine.high %v4558, %v4560
      %v4675 = vunpack.c.l.s4 1983009808
      %v4676 = vunpack.c.0.s8 %v4675
      %v4677 = vlaneseq
      %v4678 = vshrl.u32 %v4677, 7
      %v4679 = vsub.s32 %v4676, %v4678
      %v4680 = vrot.slane %v4672, %v4679
      %v4682 = vunpack.c.l.s4 1983009808
      %v4683 = vunpack.c.0.s8 %v4682
      %v4684 = vlaneseq
      %v4685 = vshrl.u32 %v4684, 7
      %v4686 = vsub.s32 %v4683, %v4685
      %v4687 = vrot.slane %v4673, %v4686
      %v4688 = vcombine.low %v4559, %v4561
      %v4689 = vcombine.high %v4559, %v4561
      %v4691 = vunpack.c.l.s4 1983009808
      %v4692 = vunpack.c.0.s8 %v4691
      %v4693 = vlaneseq
      %v4694 = vshrl.u32 %v4693, 7
      %v4695 = vsub.s32 %v4692, %v4694
      %v4696 = vrot.slane %v4688, %v4695
      %v4698 = vunpack.c.l.s4 1983009808
      %v4699 = vunpack.c.0.s8 %v4698
      %v4700 = vlaneseq
      %v4701 = vshrl.u32 %v4700, 7
      %v4702 = vsub.s32 %v4699, %v4701
      %v4703 = vrot.slane %v4689, %v4702
      %v4704 = vcombine.low %v4680, %v4696
      %v4705 = vcombine.high %v4680, %v4696
      %v4707 = vunpack.c.l.s4 1934713408
      %v4708 = vunpack.c.0.s8 %v4707
      %v4709 = vlaneseq
      %v4710 = vshrl.u32 %v4709, 7
      %v4711 = vsub.s32 %v4708, %v4710
      %v4712 = vrot.slane %v4704, %v4711
      %v4714 = vunpack.c.l.s4 1934713408
      %v4715 = vunpack.c.0.s8 %v4714
      %v4716 = vlaneseq
      %v4717 = vshrl.u32 %v4716, 7
      %v4718 = vsub.s32 %v4715, %v4717
      %v4719 = vrot.slane %v4705, %v4718
      %v4720 = vcombine.low %v4687, %v4703
      %v4721 = vcombine.high %v4687, %v4703
      %v4723 = vunpack.c.l.s4 1934713408
      %v4724 = vunpack.c.0.s8 %v4723
      %v4725 = vlaneseq
      %v4726 = vshrl.u32 %v4725, 7
      %v4727 = vsub.s32 %v4724, %v4726
      %v4728 = vrot.slane %v4720, %v4727
      %v4730 = vunpack.c.l.s4 1934713408
      %v4731 = vunpack.c.0.s8 %v4730
      %v4732 = vlaneseq
      %v4733 = vshrl.u32 %v4732, 7
      %v4734 = vsub.s32 %v4731, %v4733
      %v4735 = vrot.slane %v4721, %v4734
      %v4736 = vcombine.high %v4712, 0.0
      %v4737 = vcombine.high %v4719, 0.0
      %v4738 = vcombine.high %v4728, 0.0
      %v4739 = vcombine.high %v4735, 0.0
      %4741 = vrot.lane.b32.xlu0 %v4736, 8
      %v4742 = vpop.permute.xlu0 %4741
      %4745 = vrot.lane.b32.xlu0 %v4719, 16
      %v4746 = vpop.permute.xlu0 %4745
      %4749 = vrot.lane.b32.xlu0 %v4737, 24
      %v4750 = vpop.permute.xlu0 %4749
      %4753 = vrot.lane.b32.xlu0 %v4728, 32
      %v4754 = vpop.permute.xlu0 %4753
      %4757 = vrot.lane.b32.xlu0 %v4738, 40
      %v4758 = vpop.permute.xlu0 %4757
      %4761 = vrot.lane.b32.xlu0 %v4735, 48
      %v4762 = vpop.permute.xlu0 %4761
      %4765 = vrot.lane.b32.xlu0 %v4739, 56
      %v4766 = vpop.permute.xlu0 %4765
      %v4768 = vsel %vm4658, %v4712, %v4742
      %v4769 = vsel %vm4660, %v4768, %v4746
      %v4770 = vsel %vm4662, %v4769, %v4750
      %v4771 = vsel %vm4664, %v4770, %v4754
      %v4772 = vsel %vm4666, %v4771, %v4758
      %v4773 = vsel %vm4668, %v4772, %v4762
      %v4774 = vsel %vm4670, %v4773, %v4766
      %4776 = vrot.lane.b32.xlu0 %v4774, 64
      %v4777 = vpop.permute.xlu0 %4776
      %v4779 = vsel %vm290, %v4671, %v4777
      %4780 = vst [vmem:[%s262] sm:$0xf] %v4779
      %p4781 = scmp.lt.s32.totalorder %s18, 1
      %s4782 = scalar_select %p4781, %s18, 1
      %s4783 = smul.addr %s4782, 2
      %s4784 = smul.addr %s4783, 8
      %s4785 = scalar_lea.vmem %s5, %s4784
      %p4786 = scmp.lt.s32.totalorder %s18, 1
      %s4787 = scalar_select %p4786, %s18, 1
      %s4788 = smul.addr %s4787, 4
      %s4789 = scalar_lea.vmem %s6, %s4788
      // Predicated region
      $region45: #{down_conv.1} parent=39 // pred_check
        %p4790 = pneg %p146
      $region46: #{down_conv.1} parent=39 // pred_check_branch
        %4792 = sbr.rel (%p4790) target = $region48
      $region47: #{down_conv.1} parent=39 // pred_region
        _
      $region48: #{down_conv.1} parent=39 // pred_fallthru
        _
      // Predicated region
      $region49: #{down_conv.1} parent=39 // pred_check
        %p4793 = pneg %p172
      $region50: #{down_conv.1} parent=39 // pred_check_branch
        %4795 = sbr.rel (%p4793) target = $region52
      $region51: #{down_conv.1} parent=39 // pred_region
        _
      $region52: #{down_conv.1} parent=39 // pred_fallthru
        _
    $region40: #{down_conv.1} parent=5 // pred_fallthru
      _
    %p4796 = scmp.le.s32.totalorder 2, %s13
    // Predicated region
    $region53: #{down_conv.1} parent=5 // pred_check
      %p4797 = pneg %p4796
    $region54: #{down_conv.1} parent=5 // pred_check_branch
      %4799 = sbr.rel (%p4797) target = $region56
    $region55: #{down_conv.1} parent=5 // pred_region
      %s4800 = ssub.s32 %s13, 2
      // Predicated region
      $region57: #{down_conv.1} parent=55 // pred_check
        %p4801 = pneg %p152
      $region58: #{down_conv.1} parent=55 // pred_check_branch
        %4803 = sbr.rel (%p4801) target = $region60
      $region59: #{down_conv.1} parent=55 // pred_region
        %p4804 = scmp.lt.s32.totalorder %s19, 1
        %s4805 = scalar_select %p4804, %s19, 1
        %s4806 = smul.addr %s4805, 2
        %s4807 = smul.addr %s4806, 8
        %s4808 = scalar_lea.vmem %s5, %s4807
      $region60: #{down_conv.1} parent=55 // pred_fallthru
        _
      // Predicated region
      $region61: #{down_conv.1} parent=55 // pred_check
        %p4809 = pneg %p178
      $region62: #{down_conv.1} parent=55 // pred_check_branch
        %4811 = sbr.rel (%p4809) target = $region64
      $region63: #{down_conv.1} parent=55 // pred_region
        %p4812 = scmp.lt.s32.totalorder %s19, 1
        %s4813 = scalar_select %p4812, %s19, 1
        %s4814 = smul.addr %s4813, 4
        %s4815 = scalar_lea.vmem %s6, %s4814
      $region64: #{down_conv.1} parent=55 // pred_fallthru
        _
    $region56: #{down_conv.1} parent=5 // pred_fallthru
      _
  $region6: #{down_conv.1} parent=0 // loop_footer
    %s17 = sadd.s32 1, %s13
  $region7: #{down_conv.1} parent=0 // loop_footer_branch
    %12 = sbr.rel target = $region3
  $region8: #{down_conv.1} parent=0 // loop_exit
    _

</llo_original>
